<compile_context>
chip_gen: v6e
topology: v6e:2x2x1
jax: 0.10.0
libtpu: 0.0.40
codegen_flags: <defaults>
</compile_context>

<pallas_src>
import numpy as np
import jax
import jax.numpy as jnp
from jax import lax
from jax.experimental import pallas as pl
from jax.experimental.pallas import tpu as pltpu

# ----------------------------- hyperparameters ------------------------------
N_EMBD = 32
N_HEAD = 4
HEAD_DIM = N_EMBD // N_HEAD
N_FF = 64
N_LAYER = 2
N_CLASS = 10
N_CHANNEL = 4
IMG_SIZE = 16
PATCH = 4
T_MAX = 100

NP_SIDE = IMG_SIZE // PATCH
NUM_PATCHES = NP_SIDE * NP_SIDE          # 16
SEQ = 2 + NUM_PATCHES                    # 18: patches + timestep tok + label tok
SEQ_PAD = 24                             # padded to a multiple of 8 sublanes
K_IN = N_CHANNEL * PATCH * PATCH         # flattened patch dim (conv-as-matmul)
OUT_DIM = PATCH * PATCH * N_CHANNEL      # per-patch output dim (64)
OUT_PAD = 128                            # lane-dense padded output width
LN_EPS = 1e-5                            # PyTorch LayerNorm default
NEG_INF = np.float32(-1e30)


# --------------------------------- kernel -----------------------------------
def _layer_norm(x, w, b):
    mu = jnp.mean(x, axis=-1, keepdims=True)
    var = jnp.mean(jnp.square(x - mu), axis=-1, keepdims=True)
    return (x - mu) * lax.rsqrt(var + LN_EPS) * w + b


def _gelu_exact(x):
    # nn.GELU default = exact erf-based GELU
    return 0.5 * x * (1.0 + lax.erf(x * np.float32(1.0 / np.sqrt(2.0))))


def dit_kernel(feats_ref, base_ref, pe_w_ref,
               a_ref, bm_ref,
               ln1_w_ref, ln1_b_ref, ln2_w_ref, ln2_b_ref,
               fc1_w_ref, fc1_b_ref, fc2_w_ref, fc2_b_ref,
               lnf_w_ref, lnf_b_ref, outw_ref, outb_ref,
               o_ref):
    f32 = jnp.float32
    bf16 = jnp.bfloat16
    R = feats_ref.shape[0]
    scale = np.float32(1.0 / np.sqrt(HEAD_DIM))

    # ---- in-kernel static attention mask (no R^2 HBM traffic) ----
    # Keys visible to query row r are exactly columns [elem_start, elem_start+SEQ)
    # where elem_start = SEQ_PAD * (r // SEQ_PAD).  Built with f32 mul/floor/
    # compare only (no vector integer division) for safe Mosaic lowering.
    rowf = lax.broadcasted_iota(jnp.int32, (R, R), 0).astype(f32)
    colf = lax.broadcasted_iota(jnp.int32, (R, R), 1).astype(f32)
    start = jnp.floor(rowf * np.float32(1.0 / SEQ_PAD)) * np.float32(SEQ_PAD)
    keep = (colf >= start) & (colf < start + np.float32(SEQ))
    mask = jnp.where(keep, np.float32(0.0), NEG_INF)

    # ---- patch embedding fused with token packing ----
    # non-patch rows of `feats` are zero; their embeddings live in `base`.
    x = base_ref[...] + jnp.dot(feats_ref[...], pe_w_ref[...],
                                preferred_element_type=f32)        # (R, D) f32

    for l in range(N_LAYER):
        # ---- self-attention (pre-norm), fused per-head weights ----
        h = _layer_norm(x, ln1_w_ref[l], ln1_b_ref[l])             # (R, D) f32
        h16 = h.astype(bf16)
        # lane-dense fused weights: one (R,32)x(32,128) matmul each for
        # HA = h @ [A_0..A_3] and HB = h @ [B_0..B_3].
        ha_all = jnp.dot(h16, a_ref[l], preferred_element_type=f32).astype(bf16)
        hb_all = jnp.dot(h16, bm_ref[l], preferred_element_type=f32).astype(bf16)
        attn = None
        for hh in range(N_HEAD):
            ha = ha_all[:, hh * N_EMBD:(hh + 1) * N_EMBD]          # (R, 32)
            hb = hb_all[:, hh * N_EMBD:(hh + 1) * N_EMBD]          # (R, 32)
            # s = q k^T = (h A_h) h^T
            s = lax.dot_general(ha, h16, (((1,), (1,)), ((), ())),
                                preferred_element_type=f32) * scale
            s = s + mask                                           # (R, R) f32
            s = s - jnp.max(s, axis=-1, keepdims=True)
            p = jnp.exp(s)
            p = p * pl.reciprocal(jnp.sum(p, axis=-1, keepdims=True),
                                  approx=True)
            pa = jnp.dot(p.astype(bf16), hb, preferred_element_type=f32)
            attn = pa if attn is None else attn + pa
        x = x + attn

        # ---- MLP (pre-norm); element-wise math stays f32 ----
        h = _layer_norm(x, ln2_w_ref[l], ln2_b_ref[l])
        h = jnp.dot(h.astype(bf16), fc1_w_ref[l],
                    preferred_element_type=f32) + fc1_b_ref[l]
        h = _gelu_exact(h)
        h = jnp.dot(h.astype(bf16), fc2_w_ref[l],
                    preferred_element_type=f32) + fc2_b_ref[l]
        x = x + h

    # ---- output layer: LN + lane-dense (128-wide, zero-padded) projection ----
    # kept in f32: one tiny matmul, output-facing precision.
    h = _layer_norm(x, lnf_w_ref[...], lnf_b_ref[...])
    o_ref[...] = jnp.dot(h, outw_ref[...],
                         preferred_element_type=f32) + outb_ref[...]


# --------------------------- weight prep (run once) --------------------------
def prepare_weights(params):
    """Hoisted weight-only prep: fused per-head A/Bm (lane-dense), padded output
    projection, bf16 casts.  Run once per parameter set, not per forward."""
    f32 = jnp.float32
    bf16 = jnp.bfloat16

    def split_cols(w):                                   # (L,D,D)->(L,H,D,hd)
        return w.reshape(N_LAYER, N_EMBD, N_HEAD, HEAD_DIM).transpose(0, 2, 1, 3)

    wq_h = split_cols(params['wq'])
    wk_h = split_cols(params['wk'])
    wv_h = split_cols(params['wv'])
    wo_h = params['wo'].reshape(N_LAYER, N_HEAD, HEAD_DIM, N_EMBD)
    A = jnp.einsum('lhdk,lhek->lhde', wq_h, wk_h)        # (L,H,D,D)
    Bm = jnp.einsum('lhdk,lhke->lhde', wv_h, wo_h)       # (L,H,D,D)
    # lane-dense concatenation over heads: (L, D, H*D) = (L, 32, 128)
    A_all = A.transpose(0, 2, 1, 3).reshape(N_LAYER, N_EMBD, N_HEAD * N_EMBD)
    B_all = Bm.transpose(0, 2, 1, 3).reshape(N_LAYER, N_EMBD, N_HEAD * N_EMBD)

    out_w_pad = jnp.zeros((N_EMBD, OUT_PAD), f32).at[:, :OUT_DIM].set(params['out_w'])
    out_b_pad = jnp.zeros((1, OUT_PAD), f32).at[:, :OUT_DIM].set(params['out_b'])

    return dict(
        pe_w=params['pe_w'].astype(bf16), pe_b=params['pe_b'],
        pos=params['pos'], t_emb=params['t_emb'], l_emb=params['l_emb'],
        A=A_all.astype(bf16), Bm=B_all.astype(bf16),
        ln1_w=params['ln1_w'], ln1_b=params['ln1_b'],
        ln2_w=params['ln2_w'], ln2_b=params['ln2_b'],
        fc1_w=params['fc1_w'].astype(bf16), fc1_b=params['fc1_b'],
        fc2_w=params['fc2_w'].astype(bf16), fc2_b=params['fc2_b'],
        lnf_w=params['lnf_w'], lnf_b=params['lnf_b'],
        out_w=out_w_pad, out_b=out_b_pad)


# ------------------------------ wrapper (glue) -------------------------------
def _full_spec(arr):
    nd = arr.ndim
    return pl.BlockSpec(arr.shape, lambda g, _nd=nd: (0,) * _nd)


def dit_forward(prep, x, t, label):
    """x: (B, C, H, W) NCHW float32; t, label: (B,) int32.  Returns NCHW f32."""
    B = x.shape[0]
    # batch-tile selection: fat row blocks (R up to 384), but keep >=2 grid
    # steps so both v7x TensorCores get work under the "parallel" axis.
    bb = max(1, min(16, -(-B // 2)))
    G = -(-B // bb)                       # number of grid steps
    B_pad = G * bb
    R = bb * SEQ_PAD                      # rows per grid step

    # --- patchify: NCHW -> (B, num_patches, C*P*P), (c, p1, p2) order ---
    xp = x.reshape(B, N_CHANNEL, NP_SIDE, PATCH, NP_SIDE, PATCH)
    xp = xp.transpose(0, 2, 4, 1, 3, 5).reshape(B, NUM_PATCHES, K_IN)

    # --- feats: flattened patch pixels on patch rows, zero elsewhere ---
    feats = jnp.concatenate(
        [xp, jnp.zeros((B, SEQ_PAD - NUM_PATCHES, K_IN), jnp.float32)], axis=1)

    # --- base: pos-emb (+ pe bias / t-emb / label-emb), token order
    #     [patches..., timestep, label, pad...] ---
    patch_base = prep['pe_b'] + prep['pos'][2:, :]             # (NUM_PATCHES, D)
    te = prep['t_emb'][t] + prep['pos'][0][None, :]            # (B, D)
    lab = prep['l_emb'][label] + prep['pos'][1][None, :]       # (B, D)
    base = jnp.concatenate(
        [jnp.broadcast_to(patch_base[None], (B, NUM_PATCHES, N_EMBD)),
         te[:, None, :], lab[:, None, :],
         jnp.zeros((B, SEQ_PAD - SEQ, N_EMBD), jnp.float32)], axis=1)

    if B_pad > B:
        feats = jnp.concatenate(
            [feats, jnp.zeros((B_pad - B, SEQ_PAD, K_IN), jnp.float32)], axis=0)
        base = jnp.concatenate(
            [base, jnp.zeros((B_pad - B, SEQ_PAD, N_EMBD), jnp.float32)], axis=0)

    feats = feats.reshape(B_pad * SEQ_PAD, K_IN).astype(jnp.bfloat16)
    base = base.reshape(B_pad * SEQ_PAD, N_EMBD)

    weights = [prep['pe_w'], prep['A'], prep['Bm'],
               prep['ln1_w'], prep['ln1_b'], prep['ln2_w'], prep['ln2_b'],
               prep['fc1_w'], prep['fc1_b'], prep['fc2_w'], prep['fc2_b'],
               prep['lnf_w'], prep['lnf_b'], prep['out_w'], prep['out_b']]

    in_specs = [
        pl.BlockSpec((R, K_IN), lambda g: (g, 0)),
        pl.BlockSpec((R, N_EMBD), lambda g: (g, 0)),
    ] + [_full_spec(w) for w in weights]

    # --- advisory cost estimate (lets XLA schedule around the small call) ---
    per_layer_flops = (2 * 2 * R * N_EMBD * (N_HEAD * N_EMBD)      # HA, HB
                       + N_HEAD * 2 * (2 * R * R * N_EMBD)         # scores, p@hb
                       + 2 * (2 * R * N_EMBD * N_FF))              # fc1, fc2
    flops = G * (2 * R * K_IN * N_EMBD + N_LAYER * per_layer_flops
                 + 2 * R * N_EMBD * OUT_PAD)
    transcend = G * N_LAYER * (N_HEAD * R * R + R * N_FF)
    w_bytes = sum(int(np.prod(w.shape)) * w.dtype.itemsize for w in weights)
    io_bytes = (B_pad * SEQ_PAD * (K_IN * 2 + N_EMBD * 4 + OUT_PAD * 4))
    cost = pl.CostEstimate(flops=flops, transcendentals=transcend,
                           bytes_accessed=io_bytes + w_bytes)

    out = pl.pallas_call(
        dit_kernel,
        out_shape=jax.ShapeDtypeStruct((B_pad * SEQ_PAD, OUT_PAD), jnp.float32),
        grid=(G,),
        in_specs=in_specs,
        out_specs=pl.BlockSpec((R, OUT_PAD), lambda g: (g, 0)),
        compiler_params=pltpu.CompilerParams(dimension_semantics=("parallel",)),
        cost_estimate=cost,
    )(feats, base, *weights)

    # --- strip padding, un-patchify: 'B (H W) (P1 P2 C) -> B C (H P1) (W P2)'
    out = out.reshape(B_pad, SEQ_PAD, OUT_PAD)[:B, :NUM_PATCHES, :OUT_DIM]
    img = out.reshape(B, NP_SIDE, NP_SIDE, PATCH, PATCH, N_CHANNEL)
    img = img.transpose(0, 5, 1, 3, 2, 4).reshape(B, N_CHANNEL, IMG_SIZE, IMG_SIZE)
    return img


# ----------------------------- parameter init --------------------------------
def init_params(key):
    keys = iter(jax.random.split(key, 32))

    def nrm(shape, s=0.02):
        return jax.random.normal(next(keys), shape, jnp.float32) * s

    p = {}
    # patch embedding (conv weight flattened to (C*P*P, D)), with bias
    p['pe_w'] = nrm((K_IN, N_EMBD))
    p['pe_b'] = nrm((1, N_EMBD))
    # positional embedding (1, SEQ, D) squeezed to (SEQ, D): [te, lab, patches]
    p['pos'] = nrm((SEQ, N_EMBD), 1.0)
    # embedding tables
    p['t_emb'] = nrm((T_MAX, N_EMBD), 1.0)
    p['l_emb'] = nrm((N_CLASS + 1, N_EMBD), 1.0)
    # per-layer stacked weights
    p['ln1_w'] = jnp.ones((N_LAYER, 1, N_EMBD), jnp.float32)
    p['ln1_b'] = jnp.zeros((N_LAYER, 1, N_EMBD), jnp.float32)
    p['wq'] = nrm((N_LAYER, N_EMBD, N_EMBD))
    p['wk'] = nrm((N_LAYER, N_EMBD, N_EMBD))
    p['wv'] = nrm((N_LAYER, N_EMBD, N_EMBD))
    p['wo'] = nrm((N_LAYER, N_EMBD, N_EMBD))
    p['ln2_w'] = jnp.ones((N_LAYER, 1, N_EMBD), jnp.float32)
    p['ln2_b'] = jnp.zeros((N_LAYER, 1, N_EMBD), jnp.float32)
    p['fc1_w'] = nrm((N_LAYER, N_EMBD, N_FF))
    p['fc1_b'] = nrm((N_LAYER, 1, N_FF))
    p['fc2_w'] = nrm((N_LAYER, N_FF, N_EMBD))
    p['fc2_b'] = nrm((N_LAYER, 1, N_EMBD))
    # output layer
    p['lnf_w'] = jnp.ones((1, N_EMBD), jnp.float32)
    p['lnf_b'] = jnp.zeros((1, N_EMBD), jnp.float32)
    p['out_w'] = nrm((N_EMBD, OUT_DIM))
    p['out_b'] = nrm((1, OUT_DIM))
    return p


# ------------------------- pure-JAX reference (check) ------------------------
def dit_reference(params, x, t, label):
    B = x.shape[0]
    xp = x.reshape(B, N_CHANNEL, NP_SIDE, PATCH, NP_SIDE, PATCH)
    xp = xp.transpose(0, 2, 4, 1, 3, 5).reshape(B, NUM_PATCHES, K_IN)
    pe = xp @ params['pe_w'] + params['pe_b']
    te = params['t_emb'][t][:, None, :]
    lab = params['l_emb'][label][:, None, :]
    h = jnp.concatenate([te, lab, pe], axis=1) + params['pos'][None]

    def ln(z, w, b):
        mu = z.mean(-1, keepdims=True)
        var = ((z - mu) ** 2).mean(-1, keepdims=True)
        return (z - mu) / jnp.sqrt(var + LN_EPS) * w + b

    for l in range(N_LAYER):
        z = ln(h, params['ln1_w'][l], params['ln1_b'][l])
        q = z @ params['wq'][l]
        k = z @ params['wk'][l]
        v = z @ params['wv'][l]
        q = q.reshape(B, SEQ, N_HEAD, HEAD_DIM).transpose(0, 2, 1, 3)
        k = k.reshape(B, SEQ, N_HEAD, HEAD_DIM).transpose(0, 2, 1, 3)
        v = v.reshape(B, SEQ, N_HEAD, HEAD_DIM).transpose(0, 2, 1, 3)
        s = (q @ k.transpose(0, 1, 3, 2)) / np.sqrt(HEAD_DIM)
        p = jax.nn.softmax(s, axis=-1)
        a = (p @ v).transpose(0, 2, 1, 3).reshape(B, SEQ, N_EMBD)
        h = h + a @ params['wo'][l]
        z = ln(h, params['ln2_w'][l], params['ln2_b'][l])
        z = z @ params['fc1_w'][l] + params['fc1_b'][l]
        z = 0.5 * z * (1.0 + lax.erf(z / np.sqrt(2.0)))
        h = h + z @ params['fc2_w'][l] + params['fc2_b'][l]
    z = ln(h, params['lnf_w'], params['lnf_b'])[:, 2:, :]
    out = z @ params['out_w'] + params['out_b']
    img = out.reshape(B, NP_SIDE, NP_SIDE, PATCH, PATCH, N_CHANNEL)
    img = img.transpose(0, 5, 1, 3, 2, 4).reshape(B, N_CHANNEL, IMG_SIZE, IMG_SIZE)
    return img


# ----------------------------------- main ------------------------------------
if __name__ == "__main__":
    key = jax.random.PRNGKey(0)
    kp, kx, kt, kl = jax.random.split(key, 4)
    params = init_params(kp)
    prep = prepare_weights(params)        # weight-only prep, once per param set

    B = 2
    x = jax.random.normal(kx, (B, N_CHANNEL, IMG_SIZE, IMG_SIZE), jnp.float32)
    t = jax.random.randint(kt, (B,), 0, T_MAX, dtype=jnp.int32)
    label = jax.random.randint(kl, (B,), 0, N_CLASS + 1, dtype=jnp.int32)

    fwd = jax.jit(dit_forward)
    img = jax.block_until_ready(fwd(prep, x, t, label))

    ref = dit_reference(params, x, t, label)
    assert img.shape == (B, N_CHANNEL, IMG_SIZE, IMG_SIZE), img.shape
    err = float(jnp.max(jnp.abs(img - ref)))
    if err > 5e-3:
        raise AssertionError(f"kernel mismatch vs JAX reference: max|diff|={err}")

    print("KERNEL_OK")
</pallas_src>

<mosaic_0001>
module attributes {stable_mosaic.version = 11 : i64} {
  func.func @dit_kernel(%arg0: i32, %arg1: memref<24x64xbf16, #tpu.memory_space<vmem>>, %arg2: memref<24x32xf32, #tpu.memory_space<vmem>>, %arg3: memref<64x32xbf16, #tpu.memory_space<vmem>>, %arg4: memref<2x32x128xbf16, #tpu.memory_space<vmem>>, %arg5: memref<2x32x128xbf16, #tpu.memory_space<vmem>>, %arg6: memref<2x1x32xf32, #tpu.memory_space<vmem>>, %arg7: memref<2x1x32xf32, #tpu.memory_space<vmem>>, %arg8: memref<2x1x32xf32, #tpu.memory_space<vmem>>, %arg9: memref<2x1x32xf32, #tpu.memory_space<vmem>>, %arg10: memref<2x32x64xbf16, #tpu.memory_space<vmem>>, %arg11: memref<2x1x64xf32, #tpu.memory_space<vmem>>, %arg12: memref<2x64x32xbf16, #tpu.memory_space<vmem>>, %arg13: memref<2x1x32xf32, #tpu.memory_space<vmem>>, %arg14: memref<1x32xf32, #tpu.memory_space<vmem>>, %arg15: memref<1x32xf32, #tpu.memory_space<vmem>>, %arg16: memref<32x128xf32, #tpu.memory_space<vmem>>, %arg17: memref<1x128xf32, #tpu.memory_space<vmem>>, %arg18: memref<24x128xf32, #tpu.memory_space<vmem>>) attributes {dimension_semantics = [#tpu.dimension_semantics<parallel>], iteration_bounds = array<i64: 2>, scalar_prefetch = 0 : i64, scratch_operands = 0 : i64, tpu.core_type = #tpu.core_type<tc>, window_params = [{transform_indices = @transform_0, window_bounds = array<i64: 24, 64>}, {transform_indices = @transform_1, window_bounds = array<i64: 24, 32>}, {pipeline_mode = #tpu.pipeline_mode<synchronous>, transform_indices = @transform_2, window_bounds = array<i64: 64, 32>}, {pipeline_mode = #tpu.pipeline_mode<synchronous>, transform_indices = @transform_3, window_bounds = array<i64: 2, 32, 128>}, {pipeline_mode = #tpu.pipeline_mode<synchronous>, transform_indices = @transform_4, window_bounds = array<i64: 2, 32, 128>}, {pipeline_mode = #tpu.pipeline_mode<synchronous>, transform_indices = @transform_5, window_bounds = array<i64: 2, 1, 32>}, {pipeline_mode = #tpu.pipeline_mode<synchronous>, transform_indices = @transform_6, window_bounds = array<i64: 2, 1, 32>}, {pipeline_mode = #tpu.pipeline_mode<synchronous>, transform_indices = @transform_7, window_bounds = array<i64: 2, 1, 32>}, {pipeline_mode = #tpu.pipeline_mode<synchronous>, transform_indices = @transform_8, window_bounds = array<i64: 2, 1, 32>}, {pipeline_mode = #tpu.pipeline_mode<synchronous>, transform_indices = @transform_9, window_bounds = array<i64: 2, 32, 64>}, {pipeline_mode = #tpu.pipeline_mode<synchronous>, transform_indices = @transform_10, window_bounds = array<i64: 2, 1, 64>}, {pipeline_mode = #tpu.pipeline_mode<synchronous>, transform_indices = @transform_11, window_bounds = array<i64: 2, 64, 32>}, {pipeline_mode = #tpu.pipeline_mode<synchronous>, transform_indices = @transform_12, window_bounds = array<i64: 2, 1, 32>}, {pipeline_mode = #tpu.pipeline_mode<synchronous>, transform_indices = @transform_13, window_bounds = array<i64: 1, 32>}, {pipeline_mode = #tpu.pipeline_mode<synchronous>, transform_indices = @transform_14, window_bounds = array<i64: 1, 32>}, {pipeline_mode = #tpu.pipeline_mode<synchronous>, transform_indices = @transform_15, window_bounds = array<i64: 32, 128>}, {pipeline_mode = #tpu.pipeline_mode<synchronous>, transform_indices = @transform_16, window_bounds = array<i64: 1, 128>}, {transform_indices = @transform_17, window_bounds = array<i64: 24, 128>}]} {
    %0 = tpu.iota {dimensions = array<i32: 0>} : vector<24x24xi32>
    %1 = arith.sitofp %0 : vector<24x24xi32> to vector<24x24xf32>
    %2 = tpu.iota {dimensions = array<i32: 1>} : vector<24x24xi32>
    %3 = arith.sitofp %2 : vector<24x24xi32> to vector<24x24xf32>
    %cst = arith.constant 0.0416666679 : f32
    %4 = vector.broadcast %cst : f32 to vector<24x24xf32>
    %5 = arith.mulf %1, %4 : vector<24x24xf32>
    %6 = math.floor %5 : vector<24x24xf32>
    %cst_0 = arith.constant 2.400000e+01 : f32
    %7 = vector.broadcast %cst_0 : f32 to vector<24x24xf32>
    %8 = arith.mulf %6, %7 : vector<24x24xf32>
    %9 = arith.cmpf oge, %3, %8 : vector<24x24xf32>
    %cst_1 = arith.constant 1.800000e+01 : f32
    %10 = vector.broadcast %cst_1 : f32 to vector<24x24xf32>
    %11 = arith.addf %8, %10 : vector<24x24xf32>
    %12 = arith.cmpf olt, %3, %11 : vector<24x24xf32>
    %13 = arith.andi %9, %12 : vector<24x24xi1>
    %cst_2 = arith.constant 0.000000e+00 : f32
    %cst_3 = arith.constant -1.000000e+30 : f32
    %14 = vector.broadcast %cst_2 : f32 to vector<24x24xf32>
    %15 = vector.broadcast %cst_3 : f32 to vector<24x24xf32>
    %16 = arith.select %13, %14, %15 : vector<24x24xi1>, vector<24x24xf32>
    %c0 = arith.constant 0 : index
    %c0_4 = arith.constant 0 : index
    %17 = vector.load %arg2[%c0, %c0_4] : memref<24x32xf32, #tpu.memory_space<vmem>>, vector<24x32xf32>
    %c0_5 = arith.constant 0 : index
    %c0_6 = arith.constant 0 : index
    %18 = vector.load %arg1[%c0_5, %c0_6] : memref<24x64xbf16, #tpu.memory_space<vmem>>, vector<24x64xbf16>
    %c0_7 = arith.constant 0 : index
    %c0_8 = arith.constant 0 : index
    %19 = vector.load %arg3[%c0_7, %c0_8] : memref<64x32xbf16, #tpu.memory_space<vmem>>, vector<64x32xbf16>
    %cst_9 = arith.constant dense<0.000000e+00> : vector<24x32xf32>
    %20 = tpu.matmul %18, %19, %cst_9 {dimension_numbers = #tpu.dot_dimension_numbers<[1], [0], [0], [1], [0, 0, 1, 1], [], []>} : vector<24x64xbf16>, vector<64x32xbf16>, vector<24x32xf32> -> vector<24x32xf32>
    %21 = arith.addf %17, %20 : vector<24x32xf32>
    %c0_10 = arith.constant 0 : index
    %c0_11 = arith.constant 0 : index
    %c0_12 = arith.constant 0 : index
    %22 = vector.load %arg6[%c0_10, %c0_11, %c0_12] : memref<2x1x32xf32, #tpu.memory_space<vmem>>, vector<1x1x32xf32>
    %23 = vector.shape_cast %22 : vector<1x1x32xf32> to vector<1x32xf32>
    %c0_13 = arith.constant 0 : index
    %c0_14 = arith.constant 0 : index
    %c0_15 = arith.constant 0 : index
    %24 = vector.load %arg7[%c0_13, %c0_14, %c0_15] : memref<2x1x32xf32, #tpu.memory_space<vmem>>, vector<1x1x32xf32>
    %25 = vector.shape_cast %24 : vector<1x1x32xf32> to vector<1x32xf32>
    %cst_16 = arith.constant dense<0.000000e+00> : vector<24xf32>
    %26 = vector.multi_reduction <add>, %21, %cst_16 [1] : vector<24x32xf32> to vector<24xf32>
    %27 = vector.shape_cast %26 : vector<24xf32> to vector<24x1xf32>
    %cst_17 = arith.constant 3.200000e+01 : f32
    %28 = vector.broadcast %cst_17 : f32 to vector<24x1xf32>
    %29 = arith.divf %27, %28 : vector<24x1xf32>
    %30 = vector.broadcast %29 : vector<24x1xf32> to vector<24x32xf32>
    %31 = arith.subf %21, %30 : vector<24x32xf32>
    %32 = arith.mulf %31, %31 : vector<24x32xf32>
    %cst_18 = arith.constant dense<0.000000e+00> : vector<24xf32>
    %33 = vector.multi_reduction <add>, %32, %cst_18 [1] : vector<24x32xf32> to vector<24xf32>
    %34 = vector.shape_cast %33 : vector<24xf32> to vector<24x1xf32>
    %cst_19 = arith.constant 3.200000e+01 : f32
    %35 = vector.broadcast %cst_19 : f32 to vector<24x1xf32>
    %36 = arith.divf %34, %35 : vector<24x1xf32>
    %37 = vector.broadcast %29 : vector<24x1xf32> to vector<24x32xf32>
    %38 = arith.subf %21, %37 : vector<24x32xf32>
    %cst_20 = arith.constant 9.99999974E-6 : f32
    %39 = vector.broadcast %cst_20 : f32 to vector<24x1xf32>
    %40 = arith.addf %36, %39 : vector<24x1xf32>
    %41 = math.rsqrt %40 : vector<24x1xf32>
    %42 = vector.broadcast %41 : vector<24x1xf32> to vector<24x32xf32>
    %43 = arith.mulf %38, %42 : vector<24x32xf32>
    %44 = vector.broadcast %23 : vector<1x32xf32> to vector<24x32xf32>
    %45 = arith.mulf %43, %44 : vector<24x32xf32>
    %46 = vector.broadcast %25 : vector<1x32xf32> to vector<24x32xf32>
    %47 = arith.addf %45, %46 : vector<24x32xf32>
    %48 = arith.truncf %47 : vector<24x32xf32> to vector<24x32xbf16>
    %c0_21 = arith.constant 0 : index
    %c0_22 = arith.constant 0 : index
    %c0_23 = arith.constant 0 : index
    %49 = vector.load %arg4[%c0_21, %c0_22, %c0_23] : memref<2x32x128xbf16, #tpu.memory_space<vmem>>, vector<1x32x128xbf16>
    %50 = vector.shape_cast %49 : vector<1x32x128xbf16> to vector<32x128xbf16>
    %cst_24 = arith.constant dense<0.000000e+00> : vector<24x128xf32>
    %51 = tpu.matmul %48, %50, %cst_24 {dimension_numbers = #tpu.dot_dimension_numbers<[1], [0], [0], [1], [0, 0, 1, 1], [], []>} : vector<24x32xbf16>, vector<32x128xbf16>, vector<24x128xf32> -> vector<24x128xf32>
    %52 = arith.truncf %51 : vector<24x128xf32> to vector<24x128xbf16>
    %c0_25 = arith.constant 0 : index
    %c0_26 = arith.constant 0 : index
    %c0_27 = arith.constant 0 : index
    %53 = vector.load %arg5[%c0_25, %c0_26, %c0_27] : memref<2x32x128xbf16, #tpu.memory_space<vmem>>, vector<1x32x128xbf16>
    %54 = vector.shape_cast %53 : vector<1x32x128xbf16> to vector<32x128xbf16>
    %cst_28 = arith.constant dense<0.000000e+00> : vector<24x128xf32>
    %55 = tpu.matmul %48, %54, %cst_28 {dimension_numbers = #tpu.dot_dimension_numbers<[1], [0], [0], [1], [0, 0, 1, 1], [], []>} : vector<24x32xbf16>, vector<32x128xbf16>, vector<24x128xf32> -> vector<24x128xf32>
    %56 = arith.truncf %55 : vector<24x128xf32> to vector<24x128xbf16>
    %57 = vector.extract_strided_slice %52 {offsets = [0, 0], sizes = [24, 32], strides = [1, 1]} : vector<24x128xbf16> to vector<24x32xbf16>
    %58 = vector.extract_strided_slice %56 {offsets = [0, 0], sizes = [24, 32], strides = [1, 1]} : vector<24x128xbf16> to vector<24x32xbf16>
    %cst_29 = arith.constant dense<0.000000e+00> : vector<24x24xf32>
    %59 = tpu.matmul %57, %48, %cst_29 {dimension_numbers = #tpu.dot_dimension_numbers<[1], [1], [0], [0], [0, 0, 1, 0], [], []>} : vector<24x32xbf16>, vector<24x32xbf16>, vector<24x24xf32> -> vector<24x24xf32>
    %cst_30 = arith.constant 0.353553385 : f32
    %60 = vector.broadcast %cst_30 : f32 to vector<24x24xf32>
    %61 = arith.mulf %59, %60 : vector<24x24xf32>
    %62 = arith.addf %61, %16 : vector<24x24xf32>
    %cst_31 = arith.constant dense<0xFF800000> : vector<24xf32>
    %63 = vector.multi_reduction <maximumf>, %62, %cst_31 [1] : vector<24x24xf32> to vector<24xf32>
    %64 = vector.shape_cast %63 : vector<24xf32> to vector<24x1xf32>
    %65 = vector.broadcast %64 : vector<24x1xf32> to vector<24x24xf32>
    %66 = arith.subf %62, %65 : vector<24x24xf32>
    %67 = math.exp %66 : vector<24x24xf32>
    %cst_32 = arith.constant dense<0.000000e+00> : vector<24xf32>
    %68 = vector.multi_reduction <add>, %67, %cst_32 [1] : vector<24x24xf32> to vector<24xf32>
    %69 = vector.shape_cast %68 : vector<24xf32> to vector<24x1xf32>
    %70 = tpu.reciprocal %69 {approx = true} : vector<24x1xf32> -> vector<24x1xf32>
    %71 = vector.broadcast %70 : vector<24x1xf32> to vector<24x24xf32>
    %72 = arith.mulf %67, %71 : vector<24x24xf32>
    %73 = arith.truncf %72 : vector<24x24xf32> to vector<24x24xbf16>
    %cst_33 = arith.constant dense<0.000000e+00> : vector<24x32xf32>
    %74 = tpu.matmul %73, %58, %cst_33 {dimension_numbers = #tpu.dot_dimension_numbers<[1], [0], [0], [1], [0, 0, 1, 1], [], []>} : vector<24x24xbf16>, vector<24x32xbf16>, vector<24x32xf32> -> vector<24x32xf32>
    %75 = vector.extract_strided_slice %52 {offsets = [0, 32], sizes = [24, 32], strides = [1, 1]} : vector<24x128xbf16> to vector<24x32xbf16>
    %76 = vector.extract_strided_slice %56 {offsets = [0, 32], sizes = [24, 32], strides = [1, 1]} : vector<24x128xbf16> to vector<24x32xbf16>
    %cst_34 = arith.constant dense<0.000000e+00> : vector<24x24xf32>
    %77 = tpu.matmul %75, %48, %cst_34 {dimension_numbers = #tpu.dot_dimension_numbers<[1], [1], [0], [0], [0, 0, 1, 0], [], []>} : vector<24x32xbf16>, vector<24x32xbf16>, vector<24x24xf32> -> vector<24x24xf32>
    %cst_35 = arith.constant 0.353553385 : f32
    %78 = vector.broadcast %cst_35 : f32 to vector<24x24xf32>
    %79 = arith.mulf %77, %78 : vector<24x24xf32>
    %80 = arith.addf %79, %16 : vector<24x24xf32>
    %cst_36 = arith.constant dense<0xFF800000> : vector<24xf32>
    %81 = vector.multi_reduction <maximumf>, %80, %cst_36 [1] : vector<24x24xf32> to vector<24xf32>
    %82 = vector.shape_cast %81 : vector<24xf32> to vector<24x1xf32>
    %83 = vector.broadcast %82 : vector<24x1xf32> to vector<24x24xf32>
    %84 = arith.subf %80, %83 : vector<24x24xf32>
    %85 = math.exp %84 : vector<24x24xf32>
    %cst_37 = arith.constant dense<0.000000e+00> : vector<24xf32>
    %86 = vector.multi_reduction <add>, %85, %cst_37 [1] : vector<24x24xf32> to vector<24xf32>
    %87 = vector.shape_cast %86 : vector<24xf32> to vector<24x1xf32>
    %88 = tpu.reciprocal %87 {approx = true} : vector<24x1xf32> -> vector<24x1xf32>
    %89 = vector.broadcast %88 : vector<24x1xf32> to vector<24x24xf32>
    %90 = arith.mulf %85, %89 : vector<24x24xf32>
    %91 = arith.truncf %90 : vector<24x24xf32> to vector<24x24xbf16>
    %cst_38 = arith.constant dense<0.000000e+00> : vector<24x32xf32>
    %92 = tpu.matmul %91, %76, %cst_38 {dimension_numbers = #tpu.dot_dimension_numbers<[1], [0], [0], [1], [0, 0, 1, 1], [], []>} : vector<24x24xbf16>, vector<24x32xbf16>, vector<24x32xf32> -> vector<24x32xf32>
    %93 = arith.addf %74, %92 : vector<24x32xf32>
    %94 = vector.extract_strided_slice %52 {offsets = [0, 64], sizes = [24, 32], strides = [1, 1]} : vector<24x128xbf16> to vector<24x32xbf16>
    %95 = vector.extract_strided_slice %56 {offsets = [0, 64], sizes = [24, 32], strides = [1, 1]} : vector<24x128xbf16> to vector<24x32xbf16>
    %cst_39 = arith.constant dense<0.000000e+00> : vector<24x24xf32>
    %96 = tpu.matmul %94, %48, %cst_39 {dimension_numbers = #tpu.dot_dimension_numbers<[1], [1], [0], [0], [0, 0, 1, 0], [], []>} : vector<24x32xbf16>, vector<24x32xbf16>, vector<24x24xf32> -> vector<24x24xf32>
    %cst_40 = arith.constant 0.353553385 : f32
    %97 = vector.broadcast %cst_40 : f32 to vector<24x24xf32>
    %98 = arith.mulf %96, %97 : vector<24x24xf32>
    %99 = arith.addf %98, %16 : vector<24x24xf32>
    %cst_41 = arith.constant dense<0xFF800000> : vector<24xf32>
    %100 = vector.multi_reduction <maximumf>, %99, %cst_41 [1] : vector<24x24xf32> to vector<24xf32>
    %101 = vector.shape_cast %100 : vector<24xf32> to vector<24x1xf32>
    %102 = vector.broadcast %101 : vector<24x1xf32> to vector<24x24xf32>
    %103 = arith.subf %99, %102 : vector<24x24xf32>
    %104 = math.exp %103 : vector<24x24xf32>
    %cst_42 = arith.constant dense<0.000000e+00> : vector<24xf32>
    %105 = vector.multi_reduction <add>, %104, %cst_42 [1] : vector<24x24xf32> to vector<24xf32>
    %106 = vector.shape_cast %105 : vector<24xf32> to vector<24x1xf32>
    %107 = tpu.reciprocal %106 {approx = true} : vector<24x1xf32> -> vector<24x1xf32>
    %108 = vector.broadcast %107 : vector<24x1xf32> to vector<24x24xf32>
    %109 = arith.mulf %104, %108 : vector<24x24xf32>
    %110 = arith.truncf %109 : vector<24x24xf32> to vector<24x24xbf16>
    %cst_43 = arith.constant dense<0.000000e+00> : vector<24x32xf32>
    %111 = tpu.matmul %110, %95, %cst_43 {dimension_numbers = #tpu.dot_dimension_numbers<[1], [0], [0], [1], [0, 0, 1, 1], [], []>} : vector<24x24xbf16>, vector<24x32xbf16>, vector<24x32xf32> -> vector<24x32xf32>
    %112 = arith.addf %93, %111 : vector<24x32xf32>
    %113 = vector.extract_strided_slice %52 {offsets = [0, 96], sizes = [24, 32], strides = [1, 1]} : vector<24x128xbf16> to vector<24x32xbf16>
    %114 = vector.extract_strided_slice %56 {offsets = [0, 96], sizes = [24, 32], strides = [1, 1]} : vector<24x128xbf16> to vector<24x32xbf16>
    %cst_44 = arith.constant dense<0.000000e+00> : vector<24x24xf32>
    %115 = tpu.matmul %113, %48, %cst_44 {dimension_numbers = #tpu.dot_dimension_numbers<[1], [1], [0], [0], [0, 0, 1, 0], [], []>} : vector<24x32xbf16>, vector<24x32xbf16>, vector<24x24xf32> -> vector<24x24xf32>
    %cst_45 = arith.constant 0.353553385 : f32
    %116 = vector.broadcast %cst_45 : f32 to vector<24x24xf32>
    %117 = arith.mulf %115, %116 : vector<24x24xf32>
    %118 = arith.addf %117, %16 : vector<24x24xf32>
    %cst_46 = arith.constant dense<0xFF800000> : vector<24xf32>
    %119 = vector.multi_reduction <maximumf>, %118, %cst_46 [1] : vector<24x24xf32> to vector<24xf32>
    %120 = vector.shape_cast %119 : vector<24xf32> to vector<24x1xf32>
    %121 = vector.broadcast %120 : vector<24x1xf32> to vector<24x24xf32>
    %122 = arith.subf %118, %121 : vector<24x24xf32>
    %123 = math.exp %122 : vector<24x24xf32>
    %cst_47 = arith.constant dense<0.000000e+00> : vector<24xf32>
    %124 = vector.multi_reduction <add>, %123, %cst_47 [1] : vector<24x24xf32> to vector<24xf32>
    %125 = vector.shape_cast %124 : vector<24xf32> to vector<24x1xf32>
    %126 = tpu.reciprocal %125 {approx = true} : vector<24x1xf32> -> vector<24x1xf32>
    %127 = vector.broadcast %126 : vector<24x1xf32> to vector<24x24xf32>
    %128 = arith.mulf %123, %127 : vector<24x24xf32>
    %129 = arith.truncf %128 : vector<24x24xf32> to vector<24x24xbf16>
    %cst_48 = arith.constant dense<0.000000e+00> : vector<24x32xf32>
    %130 = tpu.matmul %129, %114, %cst_48 {dimension_numbers = #tpu.dot_dimension_numbers<[1], [0], [0], [1], [0, 0, 1, 1], [], []>} : vector<24x24xbf16>, vector<24x32xbf16>, vector<24x32xf32> -> vector<24x32xf32>
    %131 = arith.addf %112, %130 : vector<24x32xf32>
    %132 = arith.addf %21, %131 : vector<24x32xf32>
    %c0_49 = arith.constant 0 : index
    %c0_50 = arith.constant 0 : index
    %c0_51 = arith.constant 0 : index
    %133 = vector.load %arg8[%c0_49, %c0_50, %c0_51] : memref<2x1x32xf32, #tpu.memory_space<vmem>>, vector<1x1x32xf32>
    %134 = vector.shape_cast %133 : vector<1x1x32xf32> to vector<1x32xf32>
    %c0_52 = arith.constant 0 : index
    %c0_53 = arith.constant 0 : index
    %c0_54 = arith.constant 0 : index
    %135 = vector.load %arg9[%c0_52, %c0_53, %c0_54] : memref<2x1x32xf32, #tpu.memory_space<vmem>>, vector<1x1x32xf32>
    %136 = vector.shape_cast %135 : vector<1x1x32xf32> to vector<1x32xf32>
    %cst_55 = arith.constant dense<0.000000e+00> : vector<24xf32>
    %137 = vector.multi_reduction <add>, %132, %cst_55 [1] : vector<24x32xf32> to vector<24xf32>
    %138 = vector.shape_cast %137 : vector<24xf32> to vector<24x1xf32>
    %cst_56 = arith.constant 3.200000e+01 : f32
    %139 = vector.broadcast %cst_56 : f32 to vector<24x1xf32>
    %140 = arith.divf %138, %139 : vector<24x1xf32>
    %141 = vector.broadcast %140 : vector<24x1xf32> to vector<24x32xf32>
    %142 = arith.subf %132, %141 : vector<24x32xf32>
    %143 = arith.mulf %142, %142 : vector<24x32xf32>
    %cst_57 = arith.constant dense<0.000000e+00> : vector<24xf32>
    %144 = vector.multi_reduction <add>, %143, %cst_57 [1] : vector<24x32xf32> to vector<24xf32>
    %145 = vector.shape_cast %144 : vector<24xf32> to vector<24x1xf32>
    %cst_58 = arith.constant 3.200000e+01 : f32
    %146 = vector.broadcast %cst_58 : f32 to vector<24x1xf32>
    %147 = arith.divf %145, %146 : vector<24x1xf32>
    %148 = vector.broadcast %140 : vector<24x1xf32> to vector<24x32xf32>
    %149 = arith.subf %132, %148 : vector<24x32xf32>
    %cst_59 = arith.constant 9.99999974E-6 : f32
    %150 = vector.broadcast %cst_59 : f32 to vector<24x1xf32>
    %151 = arith.addf %147, %150 : vector<24x1xf32>
    %152 = math.rsqrt %151 : vector<24x1xf32>
    %153 = vector.broadcast %152 : vector<24x1xf32> to vector<24x32xf32>
    %154 = arith.mulf %149, %153 : vector<24x32xf32>
    %155 = vector.broadcast %134 : vector<1x32xf32> to vector<24x32xf32>
    %156 = arith.mulf %154, %155 : vector<24x32xf32>
    %157 = vector.broadcast %136 : vector<1x32xf32> to vector<24x32xf32>
    %158 = arith.addf %156, %157 : vector<24x32xf32>
    %159 = arith.truncf %158 : vector<24x32xf32> to vector<24x32xbf16>
    %c0_60 = arith.constant 0 : index
    %c0_61 = arith.constant 0 : index
    %c0_62 = arith.constant 0 : index
    %160 = vector.load %arg10[%c0_60, %c0_61, %c0_62] : memref<2x32x64xbf16, #tpu.memory_space<vmem>>, vector<1x32x64xbf16>
    %161 = vector.shape_cast %160 : vector<1x32x64xbf16> to vector<32x64xbf16>
    %cst_63 = arith.constant dense<0.000000e+00> : vector<24x64xf32>
    %162 = tpu.matmul %159, %161, %cst_63 {dimension_numbers = #tpu.dot_dimension_numbers<[1], [0], [0], [1], [0, 0, 1, 1], [], []>} : vector<24x32xbf16>, vector<32x64xbf16>, vector<24x64xf32> -> vector<24x64xf32>
    %c0_64 = arith.constant 0 : index
    %c0_65 = arith.constant 0 : index
    %c0_66 = arith.constant 0 : index
    %163 = vector.load %arg11[%c0_64, %c0_65, %c0_66] : memref<2x1x64xf32, #tpu.memory_space<vmem>>, vector<1x1x64xf32>
    %164 = vector.shape_cast %163 : vector<1x1x64xf32> to vector<1x64xf32>
    %165 = vector.broadcast %164 : vector<1x64xf32> to vector<24x64xf32>
    %166 = arith.addf %162, %165 : vector<24x64xf32>
    %cst_67 = arith.constant 5.000000e-01 : f32
    %167 = vector.broadcast %cst_67 : f32 to vector<24x64xf32>
    %168 = arith.mulf %167, %166 : vector<24x64xf32>
    %cst_68 = arith.constant 0.707106769 : f32
    %169 = vector.broadcast %cst_68 : f32 to vector<24x64xf32>
    %170 = arith.mulf %166, %169 : vector<24x64xf32>
    %171 = math.erf %170 : vector<24x64xf32>
    %cst_69 = arith.constant 1.000000e+00 : f32
    %172 = vector.broadcast %cst_69 : f32 to vector<24x64xf32>
    %173 = arith.addf %172, %171 : vector<24x64xf32>
    %174 = arith.mulf %168, %173 : vector<24x64xf32>
    %175 = arith.truncf %174 : vector<24x64xf32> to vector<24x64xbf16>
    %c0_70 = arith.constant 0 : index
    %c0_71 = arith.constant 0 : index
    %c0_72 = arith.constant 0 : index
    %176 = vector.load %arg12[%c0_70, %c0_71, %c0_72] : memref<2x64x32xbf16, #tpu.memory_space<vmem>>, vector<1x64x32xbf16>
    %177 = vector.shape_cast %176 : vector<1x64x32xbf16> to vector<64x32xbf16>
    %cst_73 = arith.constant dense<0.000000e+00> : vector<24x32xf32>
    %178 = tpu.matmul %175, %177, %cst_73 {dimension_numbers = #tpu.dot_dimension_numbers<[1], [0], [0], [1], [0, 0, 1, 1], [], []>} : vector<24x64xbf16>, vector<64x32xbf16>, vector<24x32xf32> -> vector<24x32xf32>
    %c0_74 = arith.constant 0 : index
    %c0_75 = arith.constant 0 : index
    %c0_76 = arith.constant 0 : index
    %179 = vector.load %arg13[%c0_74, %c0_75, %c0_76] : memref<2x1x32xf32, #tpu.memory_space<vmem>>, vector<1x1x32xf32>
    %180 = vector.shape_cast %179 : vector<1x1x32xf32> to vector<1x32xf32>
    %181 = vector.broadcast %180 : vector<1x32xf32> to vector<24x32xf32>
    %182 = arith.addf %178, %181 : vector<24x32xf32>
    %183 = arith.addf %132, %182 : vector<24x32xf32>
    %c1 = arith.constant 1 : index
    %c0_77 = arith.constant 0 : index
    %c0_78 = arith.constant 0 : index
    %184 = vector.load %arg6[%c1, %c0_77, %c0_78] : memref<2x1x32xf32, #tpu.memory_space<vmem>>, vector<1x1x32xf32>
    %185 = vector.shape_cast %184 : vector<1x1x32xf32> to vector<1x32xf32>
    %c1_79 = arith.constant 1 : index
    %c0_80 = arith.constant 0 : index
    %c0_81 = arith.constant 0 : index
    %186 = vector.load %arg7[%c1_79, %c0_80, %c0_81] : memref<2x1x32xf32, #tpu.memory_space<vmem>>, vector<1x1x32xf32>
    %187 = vector.shape_cast %186 : vector<1x1x32xf32> to vector<1x32xf32>
    %cst_82 = arith.constant dense<0.000000e+00> : vector<24xf32>
    %188 = vector.multi_reduction <add>, %183, %cst_82 [1] : vector<24x32xf32> to vector<24xf32>
    %189 = vector.shape_cast %188 : vector<24xf32> to vector<24x1xf32>
    %cst_83 = arith.constant 3.200000e+01 : f32
    %190 = vector.broadcast %cst_83 : f32 to vector<24x1xf32>
    %191 = arith.divf %189, %190 : vector<24x1xf32>
    %192 = vector.broadcast %191 : vector<24x1xf32> to vector<24x32xf32>
    %193 = arith.subf %183, %192 : vector<24x32xf32>
    %194 = arith.mulf %193, %193 : vector<24x32xf32>
    %cst_84 = arith.constant dense<0.000000e+00> : vector<24xf32>
    %195 = vector.multi_reduction <add>, %194, %cst_84 [1] : vector<24x32xf32> to vector<24xf32>
    %196 = vector.shape_cast %195 : vector<24xf32> to vector<24x1xf32>
    %cst_85 = arith.constant 3.200000e+01 : f32
    %197 = vector.broadcast %cst_85 : f32 to vector<24x1xf32>
    %198 = arith.divf %196, %197 : vector<24x1xf32>
    %199 = vector.broadcast %191 : vector<24x1xf32> to vector<24x32xf32>
    %200 = arith.subf %183, %199 : vector<24x32xf32>
    %cst_86 = arith.constant 9.99999974E-6 : f32
    %201 = vector.broadcast %cst_86 : f32 to vector<24x1xf32>
    %202 = arith.addf %198, %201 : vector<24x1xf32>
    %203 = math.rsqrt %202 : vector<24x1xf32>
    %204 = vector.broadcast %203 : vector<24x1xf32> to vector<24x32xf32>
    %205 = arith.mulf %200, %204 : vector<24x32xf32>
    %206 = vector.broadcast %185 : vector<1x32xf32> to vector<24x32xf32>
    %207 = arith.mulf %205, %206 : vector<24x32xf32>
    %208 = vector.broadcast %187 : vector<1x32xf32> to vector<24x32xf32>
    %209 = arith.addf %207, %208 : vector<24x32xf32>
    %210 = arith.truncf %209 : vector<24x32xf32> to vector<24x32xbf16>
    %c1_87 = arith.constant 1 : index
    %c0_88 = arith.constant 0 : index
    %c0_89 = arith.constant 0 : index
    %211 = vector.load %arg4[%c1_87, %c0_88, %c0_89] : memref<2x32x128xbf16, #tpu.memory_space<vmem>>, vector<1x32x128xbf16>
    %212 = vector.shape_cast %211 : vector<1x32x128xbf16> to vector<32x128xbf16>
    %cst_90 = arith.constant dense<0.000000e+00> : vector<24x128xf32>
    %213 = tpu.matmul %210, %212, %cst_90 {dimension_numbers = #tpu.dot_dimension_numbers<[1], [0], [0], [1], [0, 0, 1, 1], [], []>} : vector<24x32xbf16>, vector<32x128xbf16>, vector<24x128xf32> -> vector<24x128xf32>
    %214 = arith.truncf %213 : vector<24x128xf32> to vector<24x128xbf16>
    %c1_91 = arith.constant 1 : index
    %c0_92 = arith.constant 0 : index
    %c0_93 = arith.constant 0 : index
    %215 = vector.load %arg5[%c1_91, %c0_92, %c0_93] : memref<2x32x128xbf16, #tpu.memory_space<vmem>>, vector<1x32x128xbf16>
    %216 = vector.shape_cast %215 : vector<1x32x128xbf16> to vector<32x128xbf16>
    %cst_94 = arith.constant dense<0.000000e+00> : vector<24x128xf32>
    %217 = tpu.matmul %210, %216, %cst_94 {dimension_numbers = #tpu.dot_dimension_numbers<[1], [0], [0], [1], [0, 0, 1, 1], [], []>} : vector<24x32xbf16>, vector<32x128xbf16>, vector<24x128xf32> -> vector<24x128xf32>
    %218 = arith.truncf %217 : vector<24x128xf32> to vector<24x128xbf16>
    %219 = vector.extract_strided_slice %214 {offsets = [0, 0], sizes = [24, 32], strides = [1, 1]} : vector<24x128xbf16> to vector<24x32xbf16>
    %220 = vector.extract_strided_slice %218 {offsets = [0, 0], sizes = [24, 32], strides = [1, 1]} : vector<24x128xbf16> to vector<24x32xbf16>
    %cst_95 = arith.constant dense<0.000000e+00> : vector<24x24xf32>
    %221 = tpu.matmul %219, %210, %cst_95 {dimension_numbers = #tpu.dot_dimension_numbers<[1], [1], [0], [0], [0, 0, 1, 0], [], []>} : vector<24x32xbf16>, vector<24x32xbf16>, vector<24x24xf32> -> vector<24x24xf32>
    %cst_96 = arith.constant 0.353553385 : f32
    %222 = vector.broadcast %cst_96 : f32 to vector<24x24xf32>
    %223 = arith.mulf %221, %222 : vector<24x24xf32>
    %224 = arith.addf %223, %16 : vector<24x24xf32>
    %cst_97 = arith.constant dense<0xFF800000> : vector<24xf32>
    %225 = vector.multi_reduction <maximumf>, %224, %cst_97 [1] : vector<24x24xf32> to vector<24xf32>
    %226 = vector.shape_cast %225 : vector<24xf32> to vector<24x1xf32>
    %227 = vector.broadcast %226 : vector<24x1xf32> to vector<24x24xf32>
    %228 = arith.subf %224, %227 : vector<24x24xf32>
    %229 = math.exp %228 : vector<24x24xf32>
    %cst_98 = arith.constant dense<0.000000e+00> : vector<24xf32>
    %230 = vector.multi_reduction <add>, %229, %cst_98 [1] : vector<24x24xf32> to vector<24xf32>
    %231 = vector.shape_cast %230 : vector<24xf32> to vector<24x1xf32>
    %232 = tpu.reciprocal %231 {approx = true} : vector<24x1xf32> -> vector<24x1xf32>
    %233 = vector.broadcast %232 : vector<24x1xf32> to vector<24x24xf32>
    %234 = arith.mulf %229, %233 : vector<24x24xf32>
    %235 = arith.truncf %234 : vector<24x24xf32> to vector<24x24xbf16>
    %cst_99 = arith.constant dense<0.000000e+00> : vector<24x32xf32>
    %236 = tpu.matmul %235, %220, %cst_99 {dimension_numbers = #tpu.dot_dimension_numbers<[1], [0], [0], [1], [0, 0, 1, 1], [], []>} : vector<24x24xbf16>, vector<24x32xbf16>, vector<24x32xf32> -> vector<24x32xf32>
    %237 = vector.extract_strided_slice %214 {offsets = [0, 32], sizes = [24, 32], strides = [1, 1]} : vector<24x128xbf16> to vector<24x32xbf16>
    %238 = vector.extract_strided_slice %218 {offsets = [0, 32], sizes = [24, 32], strides = [1, 1]} : vector<24x128xbf16> to vector<24x32xbf16>
    %cst_100 = arith.constant dense<0.000000e+00> : vector<24x24xf32>
    %239 = tpu.matmul %237, %210, %cst_100 {dimension_numbers = #tpu.dot_dimension_numbers<[1], [1], [0], [0], [0, 0, 1, 0], [], []>} : vector<24x32xbf16>, vector<24x32xbf16>, vector<24x24xf32> -> vector<24x24xf32>
    %cst_101 = arith.constant 0.353553385 : f32
    %240 = vector.broadcast %cst_101 : f32 to vector<24x24xf32>
    %241 = arith.mulf %239, %240 : vector<24x24xf32>
    %242 = arith.addf %241, %16 : vector<24x24xf32>
    %cst_102 = arith.constant dense<0xFF800000> : vector<24xf32>
    %243 = vector.multi_reduction <maximumf>, %242, %cst_102 [1] : vector<24x24xf32> to vector<24xf32>
    %244 = vector.shape_cast %243 : vector<24xf32> to vector<24x1xf32>
    %245 = vector.broadcast %244 : vector<24x1xf32> to vector<24x24xf32>
    %246 = arith.subf %242, %245 : vector<24x24xf32>
    %247 = math.exp %246 : vector<24x24xf32>
    %cst_103 = arith.constant dense<0.000000e+00> : vector<24xf32>
    %248 = vector.multi_reduction <add>, %247, %cst_103 [1] : vector<24x24xf32> to vector<24xf32>
    %249 = vector.shape_cast %248 : vector<24xf32> to vector<24x1xf32>
    %250 = tpu.reciprocal %249 {approx = true} : vector<24x1xf32> -> vector<24x1xf32>
    %251 = vector.broadcast %250 : vector<24x1xf32> to vector<24x24xf32>
    %252 = arith.mulf %247, %251 : vector<24x24xf32>
    %253 = arith.truncf %252 : vector<24x24xf32> to vector<24x24xbf16>
    %cst_104 = arith.constant dense<0.000000e+00> : vector<24x32xf32>
    %254 = tpu.matmul %253, %238, %cst_104 {dimension_numbers = #tpu.dot_dimension_numbers<[1], [0], [0], [1], [0, 0, 1, 1], [], []>} : vector<24x24xbf16>, vector<24x32xbf16>, vector<24x32xf32> -> vector<24x32xf32>
    %255 = arith.addf %236, %254 : vector<24x32xf32>
    %256 = vector.extract_strided_slice %214 {offsets = [0, 64], sizes = [24, 32], strides = [1, 1]} : vector<24x128xbf16> to vector<24x32xbf16>
    %257 = vector.extract_strided_slice %218 {offsets = [0, 64], sizes = [24, 32], strides = [1, 1]} : vector<24x128xbf16> to vector<24x32xbf16>
    %cst_105 = arith.constant dense<0.000000e+00> : vector<24x24xf32>
    %258 = tpu.matmul %256, %210, %cst_105 {dimension_numbers = #tpu.dot_dimension_numbers<[1], [1], [0], [0], [0, 0, 1, 0], [], []>} : vector<24x32xbf16>, vector<24x32xbf16>, vector<24x24xf32> -> vector<24x24xf32>
    %cst_106 = arith.constant 0.353553385 : f32
    %259 = vector.broadcast %cst_106 : f32 to vector<24x24xf32>
    %260 = arith.mulf %258, %259 : vector<24x24xf32>
    %261 = arith.addf %260, %16 : vector<24x24xf32>
    %cst_107 = arith.constant dense<0xFF800000> : vector<24xf32>
    %262 = vector.multi_reduction <maximumf>, %261, %cst_107 [1] : vector<24x24xf32> to vector<24xf32>
    %263 = vector.shape_cast %262 : vector<24xf32> to vector<24x1xf32>
    %264 = vector.broadcast %263 : vector<24x1xf32> to vector<24x24xf32>
    %265 = arith.subf %261, %264 : vector<24x24xf32>
    %266 = math.exp %265 : vector<24x24xf32>
    %cst_108 = arith.constant dense<0.000000e+00> : vector<24xf32>
    %267 = vector.multi_reduction <add>, %266, %cst_108 [1] : vector<24x24xf32> to vector<24xf32>
    %268 = vector.shape_cast %267 : vector<24xf32> to vector<24x1xf32>
    %269 = tpu.reciprocal %268 {approx = true} : vector<24x1xf32> -> vector<24x1xf32>
    %270 = vector.broadcast %269 : vector<24x1xf32> to vector<24x24xf32>
    %271 = arith.mulf %266, %270 : vector<24x24xf32>
    %272 = arith.truncf %271 : vector<24x24xf32> to vector<24x24xbf16>
    %cst_109 = arith.constant dense<0.000000e+00> : vector<24x32xf32>
    %273 = tpu.matmul %272, %257, %cst_109 {dimension_numbers = #tpu.dot_dimension_numbers<[1], [0], [0], [1], [0, 0, 1, 1], [], []>} : vector<24x24xbf16>, vector<24x32xbf16>, vector<24x32xf32> -> vector<24x32xf32>
    %274 = arith.addf %255, %273 : vector<24x32xf32>
    %275 = vector.extract_strided_slice %214 {offsets = [0, 96], sizes = [24, 32], strides = [1, 1]} : vector<24x128xbf16> to vector<24x32xbf16>
    %276 = vector.extract_strided_slice %218 {offsets = [0, 96], sizes = [24, 32], strides = [1, 1]} : vector<24x128xbf16> to vector<24x32xbf16>
    %cst_110 = arith.constant dense<0.000000e+00> : vector<24x24xf32>
    %277 = tpu.matmul %275, %210, %cst_110 {dimension_numbers = #tpu.dot_dimension_numbers<[1], [1], [0], [0], [0, 0, 1, 0], [], []>} : vector<24x32xbf16>, vector<24x32xbf16>, vector<24x24xf32> -> vector<24x24xf32>
    %cst_111 = arith.constant 0.353553385 : f32
    %278 = vector.broadcast %cst_111 : f32 to vector<24x24xf32>
    %279 = arith.mulf %277, %278 : vector<24x24xf32>
    %280 = arith.addf %279, %16 : vector<24x24xf32>
    %cst_112 = arith.constant dense<0xFF800000> : vector<24xf32>
    %281 = vector.multi_reduction <maximumf>, %280, %cst_112 [1] : vector<24x24xf32> to vector<24xf32>
    %282 = vector.shape_cast %281 : vector<24xf32> to vector<24x1xf32>
    %283 = vector.broadcast %282 : vector<24x1xf32> to vector<24x24xf32>
    %284 = arith.subf %280, %283 : vector<24x24xf32>
    %285 = math.exp %284 : vector<24x24xf32>
    %cst_113 = arith.constant dense<0.000000e+00> : vector<24xf32>
    %286 = vector.multi_reduction <add>, %285, %cst_113 [1] : vector<24x24xf32> to vector<24xf32>
    %287 = vector.shape_cast %286 : vector<24xf32> to vector<24x1xf32>
    %288 = tpu.reciprocal %287 {approx = true} : vector<24x1xf32> -> vector<24x1xf32>
    %289 = vector.broadcast %288 : vector<24x1xf32> to vector<24x24xf32>
    %290 = arith.mulf %285, %289 : vector<24x24xf32>
    %291 = arith.truncf %290 : vector<24x24xf32> to vector<24x24xbf16>
    %cst_114 = arith.constant dense<0.000000e+00> : vector<24x32xf32>
    %292 = tpu.matmul %291, %276, %cst_114 {dimension_numbers = #tpu.dot_dimension_numbers<[1], [0], [0], [1], [0, 0, 1, 1], [], []>} : vector<24x24xbf16>, vector<24x32xbf16>, vector<24x32xf32> -> vector<24x32xf32>
    %293 = arith.addf %274, %292 : vector<24x32xf32>
    %294 = arith.addf %183, %293 : vector<24x32xf32>
    %c1_115 = arith.constant 1 : index
    %c0_116 = arith.constant 0 : index
    %c0_117 = arith.constant 0 : index
    %295 = vector.load %arg8[%c1_115, %c0_116, %c0_117] : memref<2x1x32xf32, #tpu.memory_space<vmem>>, vector<1x1x32xf32>
    %296 = vector.shape_cast %295 : vector<1x1x32xf32> to vector<1x32xf32>
    %c1_118 = arith.constant 1 : index
    %c0_119 = arith.constant 0 : index
    %c0_120 = arith.constant 0 : index
    %297 = vector.load %arg9[%c1_118, %c0_119, %c0_120] : memref<2x1x32xf32, #tpu.memory_space<vmem>>, vector<1x1x32xf32>
    %298 = vector.shape_cast %297 : vector<1x1x32xf32> to vector<1x32xf32>
    %cst_121 = arith.constant dense<0.000000e+00> : vector<24xf32>
    %299 = vector.multi_reduction <add>, %294, %cst_121 [1] : vector<24x32xf32> to vector<24xf32>
    %300 = vector.shape_cast %299 : vector<24xf32> to vector<24x1xf32>
    %cst_122 = arith.constant 3.200000e+01 : f32
    %301 = vector.broadcast %cst_122 : f32 to vector<24x1xf32>
    %302 = arith.divf %300, %301 : vector<24x1xf32>
    %303 = vector.broadcast %302 : vector<24x1xf32> to vector<24x32xf32>
    %304 = arith.subf %294, %303 : vector<24x32xf32>
    %305 = arith.mulf %304, %304 : vector<24x32xf32>
    %cst_123 = arith.constant dense<0.000000e+00> : vector<24xf32>
    %306 = vector.multi_reduction <add>, %305, %cst_123 [1] : vector<24x32xf32> to vector<24xf32>
    %307 = vector.shape_cast %306 : vector<24xf32> to vector<24x1xf32>
    %cst_124 = arith.constant 3.200000e+01 : f32
    %308 = vector.broadcast %cst_124 : f32 to vector<24x1xf32>
    %309 = arith.divf %307, %308 : vector<24x1xf32>
    %310 = vector.broadcast %302 : vector<24x1xf32> to vector<24x32xf32>
    %311 = arith.subf %294, %310 : vector<24x32xf32>
    %cst_125 = arith.constant 9.99999974E-6 : f32
    %312 = vector.broadcast %cst_125 : f32 to vector<24x1xf32>
    %313 = arith.addf %309, %312 : vector<24x1xf32>
    %314 = math.rsqrt %313 : vector<24x1xf32>
    %315 = vector.broadcast %314 : vector<24x1xf32> to vector<24x32xf32>
    %316 = arith.mulf %311, %315 : vector<24x32xf32>
    %317 = vector.broadcast %296 : vector<1x32xf32> to vector<24x32xf32>
    %318 = arith.mulf %316, %317 : vector<24x32xf32>
    %319 = vector.broadcast %298 : vector<1x32xf32> to vector<24x32xf32>
    %320 = arith.addf %318, %319 : vector<24x32xf32>
    %321 = arith.truncf %320 : vector<24x32xf32> to vector<24x32xbf16>
    %c1_126 = arith.constant 1 : index
    %c0_127 = arith.constant 0 : index
    %c0_128 = arith.constant 0 : index
    %322 = vector.load %arg10[%c1_126, %c0_127, %c0_128] : memref<2x32x64xbf16, #tpu.memory_space<vmem>>, vector<1x32x64xbf16>
    %323 = vector.shape_cast %322 : vector<1x32x64xbf16> to vector<32x64xbf16>
    %cst_129 = arith.constant dense<0.000000e+00> : vector<24x64xf32>
    %324 = tpu.matmul %321, %323, %cst_129 {dimension_numbers = #tpu.dot_dimension_numbers<[1], [0], [0], [1], [0, 0, 1, 1], [], []>} : vector<24x32xbf16>, vector<32x64xbf16>, vector<24x64xf32> -> vector<24x64xf32>
    %c1_130 = arith.constant 1 : index
    %c0_131 = arith.constant 0 : index
    %c0_132 = arith.constant 0 : index
    %325 = vector.load %arg11[%c1_130, %c0_131, %c0_132] : memref<2x1x64xf32, #tpu.memory_space<vmem>>, vector<1x1x64xf32>
    %326 = vector.shape_cast %325 : vector<1x1x64xf32> to vector<1x64xf32>
    %327 = vector.broadcast %326 : vector<1x64xf32> to vector<24x64xf32>
    %328 = arith.addf %324, %327 : vector<24x64xf32>
    %cst_133 = arith.constant 5.000000e-01 : f32
    %329 = vector.broadcast %cst_133 : f32 to vector<24x64xf32>
    %330 = arith.mulf %329, %328 : vector<24x64xf32>
    %cst_134 = arith.constant 0.707106769 : f32
    %331 = vector.broadcast %cst_134 : f32 to vector<24x64xf32>
    %332 = arith.mulf %328, %331 : vector<24x64xf32>
    %333 = math.erf %332 : vector<24x64xf32>
    %cst_135 = arith.constant 1.000000e+00 : f32
    %334 = vector.broadcast %cst_135 : f32 to vector<24x64xf32>
    %335 = arith.addf %334, %333 : vector<24x64xf32>
    %336 = arith.mulf %330, %335 : vector<24x64xf32>
    %337 = arith.truncf %336 : vector<24x64xf32> to vector<24x64xbf16>
    %c1_136 = arith.constant 1 : index
    %c0_137 = arith.constant 0 : index
    %c0_138 = arith.constant 0 : index
    %338 = vector.load %arg12[%c1_136, %c0_137, %c0_138] : memref<2x64x32xbf16, #tpu.memory_space<vmem>>, vector<1x64x32xbf16>
    %339 = vector.shape_cast %338 : vector<1x64x32xbf16> to vector<64x32xbf16>
    %cst_139 = arith.constant dense<0.000000e+00> : vector<24x32xf32>
    %340 = tpu.matmul %337, %339, %cst_139 {dimension_numbers = #tpu.dot_dimension_numbers<[1], [0], [0], [1], [0, 0, 1, 1], [], []>} : vector<24x64xbf16>, vector<64x32xbf16>, vector<24x32xf32> -> vector<24x32xf32>
    %c1_140 = arith.constant 1 : index
    %c0_141 = arith.constant 0 : index
    %c0_142 = arith.constant 0 : index
    %341 = vector.load %arg13[%c1_140, %c0_141, %c0_142] : memref<2x1x32xf32, #tpu.memory_space<vmem>>, vector<1x1x32xf32>
    %342 = vector.shape_cast %341 : vector<1x1x32xf32> to vector<1x32xf32>
    %343 = vector.broadcast %342 : vector<1x32xf32> to vector<24x32xf32>
    %344 = arith.addf %340, %343 : vector<24x32xf32>
    %345 = arith.addf %294, %344 : vector<24x32xf32>
    %c0_143 = arith.constant 0 : index
    %c0_144 = arith.constant 0 : index
    %346 = vector.load %arg14[%c0_143, %c0_144] : memref<1x32xf32, #tpu.memory_space<vmem>>, vector<1x32xf32>
    %c0_145 = arith.constant 0 : index
    %c0_146 = arith.constant 0 : index
    %347 = vector.load %arg15[%c0_145, %c0_146] : memref<1x32xf32, #tpu.memory_space<vmem>>, vector<1x32xf32>
    %cst_147 = arith.constant dense<0.000000e+00> : vector<24xf32>
    %348 = vector.multi_reduction <add>, %345, %cst_147 [1] : vector<24x32xf32> to vector<24xf32>
    %349 = vector.shape_cast %348 : vector<24xf32> to vector<24x1xf32>
    %cst_148 = arith.constant 3.200000e+01 : f32
    %350 = vector.broadcast %cst_148 : f32 to vector<24x1xf32>
    %351 = arith.divf %349, %350 : vector<24x1xf32>
    %352 = vector.broadcast %351 : vector<24x1xf32> to vector<24x32xf32>
    %353 = arith.subf %345, %352 : vector<24x32xf32>
    %354 = arith.mulf %353, %353 : vector<24x32xf32>
    %cst_149 = arith.constant dense<0.000000e+00> : vector<24xf32>
    %355 = vector.multi_reduction <add>, %354, %cst_149 [1] : vector<24x32xf32> to vector<24xf32>
    %356 = vector.shape_cast %355 : vector<24xf32> to vector<24x1xf32>
    %cst_150 = arith.constant 3.200000e+01 : f32
    %357 = vector.broadcast %cst_150 : f32 to vector<24x1xf32>
    %358 = arith.divf %356, %357 : vector<24x1xf32>
    %359 = vector.broadcast %351 : vector<24x1xf32> to vector<24x32xf32>
    %360 = arith.subf %345, %359 : vector<24x32xf32>
    %cst_151 = arith.constant 9.99999974E-6 : f32
    %361 = vector.broadcast %cst_151 : f32 to vector<24x1xf32>
    %362 = arith.addf %358, %361 : vector<24x1xf32>
    %363 = math.rsqrt %362 : vector<24x1xf32>
    %364 = vector.broadcast %363 : vector<24x1xf32> to vector<24x32xf32>
    %365 = arith.mulf %360, %364 : vector<24x32xf32>
    %366 = vector.broadcast %346 : vector<1x32xf32> to vector<24x32xf32>
    %367 = arith.mulf %365, %366 : vector<24x32xf32>
    %368 = vector.broadcast %347 : vector<1x32xf32> to vector<24x32xf32>
    %369 = arith.addf %367, %368 : vector<24x32xf32>
    %c0_152 = arith.constant 0 : index
    %c0_153 = arith.constant 0 : index
    %370 = vector.load %arg16[%c0_152, %c0_153] : memref<32x128xf32, #tpu.memory_space<vmem>>, vector<32x128xf32>
    %cst_154 = arith.constant dense<0.000000e+00> : vector<24x128xf32>
    %371 = tpu.matmul %369, %370, %cst_154 {dimension_numbers = #tpu.dot_dimension_numbers<[1], [0], [0], [1], [0, 0, 1, 1], [], []>} : vector<24x32xf32>, vector<32x128xf32>, vector<24x128xf32> -> vector<24x128xf32>
    %c0_155 = arith.constant 0 : index
    %c0_156 = arith.constant 0 : index
    %372 = vector.load %arg17[%c0_155, %c0_156] : memref<1x128xf32, #tpu.memory_space<vmem>>, vector<1x128xf32>
    %373 = vector.broadcast %372 : vector<1x128xf32> to vector<24x128xf32>
    %374 = arith.addf %371, %373 : vector<24x128xf32>
    %c0_157 = arith.constant 0 : index
    %c0_158 = arith.constant 0 : index
    %375 = vector.load %arg18[%c0_157, %c0_158] : memref<24x128xf32, #tpu.memory_space<vmem>>, vector<24x128xf32>
    tpu.vector_store %arg18[%c0_157, %c0_158], %374 {strides = array<i32>} : memref<24x128xf32, #tpu.memory_space<vmem>>, vector<24x128xf32>,
    return
  }
  func.func @transform_0(%arg0: i32) -> (i32, i32) {
    %c0_i32 = arith.constant 0 : i32
    %c0_i32_0 = arith.constant 0 : i32
    return %arg0, %c0_i32 : i32, i32
  }
  func.func @transform_1(%arg0: i32) -> (i32, i32) {
    %c0_i32 = arith.constant 0 : i32
    %c0_i32_0 = arith.constant 0 : i32
    return %arg0, %c0_i32 : i32, i32
  }
  func.func @transform_2(%arg0: i32) -> (i32, i32) {
    %c0_i32 = arith.constant 0 : i32
    %c0_i32_0 = arith.constant 0 : i32
    %c0_i32_1 = arith.constant 0 : i32
    return %c0_i32, %c0_i32_0 : i32, i32
  }
  func.func @transform_3(%arg0: i32) -> (i32, i32, i32) {
    %c0_i32 = arith.constant 0 : i32
    %c0_i32_0 = arith.constant 0 : i32
    %c0_i32_1 = arith.constant 0 : i32
    %c0_i32_2 = arith.constant 0 : i32
    return %c0_i32, %c0_i32_0, %c0_i32_1 : i32, i32, i32
  }
  func.func @transform_4(%arg0: i32) -> (i32, i32, i32) {
    %c0_i32 = arith.constant 0 : i32
    %c0_i32_0 = arith.constant 0 : i32
    %c0_i32_1 = arith.constant 0 : i32
    %c0_i32_2 = arith.constant 0 : i32
    return %c0_i32, %c0_i32_0, %c0_i32_1 : i32, i32, i32
  }
  func.func @transform_5(%arg0: i32) -> (i32, i32, i32) {
    %c0_i32 = arith.constant 0 : i32
    %c0_i32_0 = arith.constant 0 : i32
    %c0_i32_1 = arith.constant 0 : i32
    %c0_i32_2 = arith.constant 0 : i32
    return %c0_i32, %c0_i32_0, %c0_i32_1 : i32, i32, i32
  }
  func.func @transform_6(%arg0: i32) -> (i32, i32, i32) {
    %c0_i32 = arith.constant 0 : i32
    %c0_i32_0 = arith.constant 0 : i32
    %c0_i32_1 = arith.constant 0 : i32
    %c0_i32_2 = arith.constant 0 : i32
    return %c0_i32, %c0_i32_0, %c0_i32_1 : i32, i32, i32
  }
  func.func @transform_7(%arg0: i32) -> (i32, i32, i32) {
    %c0_i32 = arith.constant 0 : i32
    %c0_i32_0 = arith.constant 0 : i32
    %c0_i32_1 = arith.constant 0 : i32
    %c0_i32_2 = arith.constant 0 : i32
    return %c0_i32, %c0_i32_0, %c0_i32_1 : i32, i32, i32
  }
  func.func @transform_8(%arg0: i32) -> (i32, i32, i32) {
    %c0_i32 = arith.constant 0 : i32
    %c0_i32_0 = arith.constant 0 : i32
    %c0_i32_1 = arith.constant 0 : i32
    %c0_i32_2 = arith.constant 0 : i32
    return %c0_i32, %c0_i32_0, %c0_i32_1 : i32, i32, i32
  }
  func.func @transform_9(%arg0: i32) -> (i32, i32, i32) {
    %c0_i32 = arith.constant 0 : i32
    %c0_i32_0 = arith.constant 0 : i32
    %c0_i32_1 = arith.constant 0 : i32
    %c0_i32_2 = arith.constant 0 : i32
    return %c0_i32, %c0_i32_0, %c0_i32_1 : i32, i32, i32
  }
  func.func @transform_10(%arg0: i32) -> (i32, i32, i32) {
    %c0_i32 = arith.constant 0 : i32
    %c0_i32_0 = arith.constant 0 : i32
    %c0_i32_1 = arith.constant 0 : i32
    %c0_i32_2 = arith.constant 0 : i32
    return %c0_i32, %c0_i32_0, %c0_i32_1 : i32, i32, i32
  }
  func.func @transform_11(%arg0: i32) -> (i32, i32, i32) {
    %c0_i32 = arith.constant 0 : i32
    %c0_i32_0 = arith.constant 0 : i32
    %c0_i32_1 = arith.constant 0 : i32
    %c0_i32_2 = arith.constant 0 : i32
    return %c0_i32, %c0_i32_0, %c0_i32_1 : i32, i32, i32
  }
  func.func @transform_12(%arg0: i32) -> (i32, i32, i32) {
    %c0_i32 = arith.constant 0 : i32
    %c0_i32_0 = arith.constant 0 : i32
    %c0_i32_1 = arith.constant 0 : i32
    %c0_i32_2 = arith.constant 0 : i32
    return %c0_i32, %c0_i32_0, %c0_i32_1 : i32, i32, i32
  }
  func.func @transform_13(%arg0: i32) -> (i32, i32) {
    %c0_i32 = arith.constant 0 : i32
    %c0_i32_0 = arith.constant 0 : i32
    %c0_i32_1 = arith.constant 0 : i32
    return %c0_i32, %c0_i32_0 : i32, i32
  }
  func.func @transform_14(%arg0: i32) -> (i32, i32) {
    %c0_i32 = arith.constant 0 : i32
    %c0_i32_0 = arith.constant 0 : i32
    %c0_i32_1 = arith.constant 0 : i32
    return %c0_i32, %c0_i32_0 : i32, i32
  }
  func.func @transform_15(%arg0: i32) -> (i32, i32) {
    %c0_i32 = arith.constant 0 : i32
    %c0_i32_0 = arith.constant 0 : i32
    %c0_i32_1 = arith.constant 0 : i32
    return %c0_i32, %c0_i32_0 : i32, i32
  }
  func.func @transform_16(%arg0: i32) -> (i32, i32) {
    %c0_i32 = arith.constant 0 : i32
    %c0_i32_0 = arith.constant 0 : i32
    %c0_i32_1 = arith.constant 0 : i32
    return %c0_i32, %c0_i32_0 : i32, i32
  }
  func.func @transform_17(%arg0: i32) -> (i32, i32) {
    %c0_i32 = arith.constant 0 : i32
    %c0_i32_0 = arith.constant 0 : i32
    return %arg0, %c0_i32 : i32, i32
  }
}

</mosaic_0001>

<llo_original>
// kernel: dit_forward.1
$region0: #{dit_forward.1}
  #allocation0 [shape = 'u32[]', space=smem, size = 0x4, offset = 0x4, fixed_abs, tag = 'smem constant byte address 0x4 - core index']
  #allocation1 [shape = 'u32[144,128]{1,0:T(1,128)}', space=vmem, size = 0x12000, scoped, tag = 'internal scratch']
  %s0 = inlined_call_operand.vmem [shape: bf16[48,64], index: 0, kind: input, shape index: {}]
  %s1 = inlined_call_operand.vmem [shape: f32[48,32], index: 1, kind: input, shape index: {}]
  %s2 = inlined_call_operand.vmem [shape: bf16[64,32], index: 2, kind: input, shape index: {}]
  %s3 = inlined_call_operand.vmem [shape: bf16[2,32,128], index: 3, kind: input, shape index: {}]
  %s4 = inlined_call_operand.vmem [shape: bf16[2,32,128], index: 4, kind: input, shape index: {}]
  %s5 = inlined_call_operand.vmem [shape: f32[2,1,32], index: 5, kind: input, shape index: {}]
  %s6 = inlined_call_operand.vmem [shape: f32[2,1,32], index: 6, kind: input, shape index: {}]
  %s7 = inlined_call_operand.vmem [shape: f32[2,1,32], index: 7, kind: input, shape index: {}]
  %s8 = inlined_call_operand.vmem [shape: f32[2,1,32], index: 8, kind: input, shape index: {}]
  %s9 = inlined_call_operand.vmem [shape: bf16[2,32,64], index: 9, kind: input, shape index: {}]
  %s10 = inlined_call_operand.vmem [shape: f32[2,1,64], index: 10, kind: input, shape index: {}]
  %s11 = inlined_call_operand.vmem [shape: bf16[2,64,32], index: 11, kind: input, shape index: {}]
  %s12 = inlined_call_operand.vmem [shape: f32[2,1,32], index: 12, kind: input, shape index: {}]
  %s13 = inlined_call_operand.vmem [shape: f32[1,32], index: 13, kind: input, shape index: {}]
  %s14 = inlined_call_operand.vmem [shape: f32[1,32], index: 14, kind: input, shape index: {}]
  %s15 = inlined_call_operand.vmem [shape: f32[32,128], index: 15, kind: input, shape index: {}]
  %s16 = inlined_call_operand.vmem [shape: f32[1,128], index: 16, kind: input, shape index: {}]
  %s17 = inlined_call_operand.vmem [shape: f32[48,128], index: 17, kind: output, shape index: {}]
  %s18 = sld [smem:[#allocation0]]
  $region101: #{dit_forward.1} parent=0
    _
  %s20 = ssub.s32 1, %s18
  %s21 = scalar_select 0, %s20, %s18
  loop: start=0, step=1, limit=4
  $region2: #{dit_forward.1} parent=0 // loop_pre_header
    _
  $region3: #{dit_forward.1} parent=0 // loop_header
    %s23 = sphi 0, %s27
    %p24 = scmp.ge.s32.totalorder %s23, 4
    %s33 = sphi 0, %s35
    %s36 = sphi 0, %s33
    %s37 = sphi 0, %s36
    %s53 = sphi 0, %s37
    %s59 = sphi 0, %s61
    %s62 = sphi 0, %s59
    %s63 = sphi 0, %s62
    %s79 = sphi 0, %s63
    %s83 = sphi 0, %s83
    %s85 = sphi 0, %s83
    %s86 = sphi 0, %s85
    %s100 = sphi 0, %s86
    %s104 = sphi 0, %s104
    %s106 = sphi 0, %s104
    %s107 = sphi 0, %s106
    %s121 = sphi 0, %s107
    %s125 = sphi 0, %s125
    %s127 = sphi 0, %s125
    %s128 = sphi 0, %s127
    %s142 = sphi 0, %s128
    %s146 = sphi 0, %s146
    %s148 = sphi 0, %s146
    %s149 = sphi 0, %s148
    %s163 = sphi 0, %s149
    %s167 = sphi 0, %s167
    %s169 = sphi 0, %s167
    %s170 = sphi 0, %s169
    %s184 = sphi 0, %s170
    %s188 = sphi 0, %s188
    %s190 = sphi 0, %s188
    %s191 = sphi 0, %s190
    %s205 = sphi 0, %s191
    %s209 = sphi 0, %s209
    %s211 = sphi 0, %s209
    %s212 = sphi 0, %s211
    %s226 = sphi 0, %s212
    %s230 = sphi 0, %s230
    %s232 = sphi 0, %s230
    %s233 = sphi 0, %s232
    %s247 = sphi 0, %s233
    %s251 = sphi 0, %s251
    %s253 = sphi 0, %s251
    %s254 = sphi 0, %s253
    %s268 = sphi 0, %s254
    %s272 = sphi 0, %s272
    %s274 = sphi 0, %s272
    %s275 = sphi 0, %s274
    %s289 = sphi 0, %s275
    %s293 = sphi 0, %s293
    %s295 = sphi 0, %s293
    %s296 = sphi 0, %s295
    %s310 = sphi 0, %s296
    %s314 = sphi 0, %s314
    %s316 = sphi 0, %s314
    %s317 = sphi 0, %s316
    %s331 = sphi 0, %s317
    %s335 = sphi 0, %s335
    %s337 = sphi 0, %s335
    %s338 = sphi 0, %s337
    %s352 = sphi 0, %s338
    %s356 = sphi 0, %s356
    %s358 = sphi 0, %s356
    %s359 = sphi 0, %s358
    %s373 = sphi 0, %s359
    %s377 = sphi 0, %s377
    %s379 = sphi 0, %s377
    %s380 = sphi 0, %s379
    %s394 = sphi 0, %s380
    %s400 = sphi 0, %s402
    %s403 = sphi 0, %s400
    %s404 = sphi 0, %s403
    %s420 = sphi 0, %s404
  $region4: #{dit_forward.1} parent=0 // loop_header_branch
    %26 = sbr.rel (%p24) target = $region8
  $region5: #{dit_forward.1} parent=0 // loop_body
    %s28 = ssub.s32 %s23, 1
    %s29 = ssub.s32 %s23, 2
    %s30 = sadd.s32 %s23, 1
    %s31 = ssub.s32 %s23, %s30
    %p32 = scmp.eq.s32.totalorder %s31, 0
    %s34 = sadd.s32 %s33, 1
    %s35 = scalar_select %p32, %s33, %s34
    %p38 = pneg %p32
    %p39 = scmp.eq.s32.totalorder %s23, 1
    %p40 = por %p38, %p39
    %p41 = scmp.ne.s32.totalorder %s33, %s36
    %p42 = scmp.eq.s32.totalorder %s23, 0
    %p43 = por %p41, %p42
    %p44 = scmp.ne.s32.totalorder %s33, %s36
    %p45 = scmp.eq.s32.totalorder %s28, 1
    %p46 = por %p44, %p45
    %p47 = scmp.ne.s32.totalorder %s36, %s37
    %p48 = scmp.eq.s32.totalorder %s28, 0
    %p49 = por %p47, %p48
    %p50 = scmp.ne.s32.totalorder %s36, %s37
    %p51 = scmp.eq.s32.totalorder %s29, 1
    %p52 = por %p50, %p51
    %p54 = scmp.ne.s32.totalorder %s37, %s53
    %p55 = scmp.eq.s32.totalorder %s29, 0
    %p56 = por %p54, %p55
    %s57 = ssub.s32 %s23, %s30
    %p58 = scmp.eq.s32.totalorder %s57, 0
    %s60 = sadd.s32 %s59, 1
    %s61 = scalar_select %p58, %s59, %s60
    %p64 = pneg %p58
    %p65 = scmp.eq.s32.totalorder %s23, 1
    %p66 = por %p64, %p65
    %p67 = scmp.ne.s32.totalorder %s59, %s62
    %p68 = scmp.eq.s32.totalorder %s23, 0
    %p69 = por %p67, %p68
    %p70 = scmp.ne.s32.totalorder %s59, %s62
    %p71 = scmp.eq.s32.totalorder %s28, 1
    %p72 = por %p70, %p71
    %p73 = scmp.ne.s32.totalorder %s62, %s63
    %p74 = scmp.eq.s32.totalorder %s28, 0
    %p75 = por %p73, %p74
    %p76 = scmp.ne.s32.totalorder %s62, %s63
    %p77 = scmp.eq.s32.totalorder %s29, 1
    %p78 = por %p76, %p77
    %p80 = scmp.ne.s32.totalorder %s63, %s79
    %p81 = scmp.eq.s32.totalorder %s29, 0
    %p82 = por %p80, %p81
    %s84 = sadd.s32 %s83, 1
    %p87 = scmp.eq.s32.totalorder %s23, 1
    %p88 = scmp.ne.s32.totalorder %s83, %s85
    %p89 = scmp.eq.s32.totalorder %s23, 0
    %p90 = por %p88, %p89
    %p91 = scmp.ne.s32.totalorder %s83, %s85
    %p92 = scmp.eq.s32.totalorder %s28, 1
    %p93 = por %p91, %p92
    %p94 = scmp.ne.s32.totalorder %s85, %s86
    %p95 = scmp.eq.s32.totalorder %s28, 0
    %p96 = por %p94, %p95
    %p97 = scmp.ne.s32.totalorder %s85, %s86
    %p98 = scmp.eq.s32.totalorder %s29, 1
    %p99 = por %p97, %p98
    %p101 = scmp.ne.s32.totalorder %s86, %s100
    %p102 = scmp.eq.s32.totalorder %s29, 0
    %p103 = por %p101, %p102
    %s105 = sadd.s32 %s104, 1
    %p108 = scmp.eq.s32.totalorder %s23, 1
    %p109 = scmp.ne.s32.totalorder %s104, %s106
    %p110 = scmp.eq.s32.totalorder %s23, 0
    %p111 = por %p109, %p110
    %p112 = scmp.ne.s32.totalorder %s104, %s106
    %p113 = scmp.eq.s32.totalorder %s28, 1
    %p114 = por %p112, %p113
    %p115 = scmp.ne.s32.totalorder %s106, %s107
    %p116 = scmp.eq.s32.totalorder %s28, 0
    %p117 = por %p115, %p116
    %p118 = scmp.ne.s32.totalorder %s106, %s107
    %p119 = scmp.eq.s32.totalorder %s29, 1
    %p120 = por %p118, %p119
    %p122 = scmp.ne.s32.totalorder %s107, %s121
    %p123 = scmp.eq.s32.totalorder %s29, 0
    %p124 = por %p122, %p123
    %s126 = sadd.s32 %s125, 1
    %p129 = scmp.eq.s32.totalorder %s23, 1
    %p130 = scmp.ne.s32.totalorder %s125, %s127
    %p131 = scmp.eq.s32.totalorder %s23, 0
    %p132 = por %p130, %p131
    %p133 = scmp.ne.s32.totalorder %s125, %s127
    %p134 = scmp.eq.s32.totalorder %s28, 1
    %p135 = por %p133, %p134
    %p136 = scmp.ne.s32.totalorder %s127, %s128
    %p137 = scmp.eq.s32.totalorder %s28, 0
    %p138 = por %p136, %p137
    %p139 = scmp.ne.s32.totalorder %s127, %s128
    %p140 = scmp.eq.s32.totalorder %s29, 1
    %p141 = por %p139, %p140
    %p143 = scmp.ne.s32.totalorder %s128, %s142
    %p144 = scmp.eq.s32.totalorder %s29, 0
    %p145 = por %p143, %p144
    %s147 = sadd.s32 %s146, 1
    %p150 = scmp.eq.s32.totalorder %s23, 1
    %p151 = scmp.ne.s32.totalorder %s146, %s148
    %p152 = scmp.eq.s32.totalorder %s23, 0
    %p153 = por %p151, %p152
    %p154 = scmp.ne.s32.totalorder %s146, %s148
    %p155 = scmp.eq.s32.totalorder %s28, 1
    %p156 = por %p154, %p155
    %p157 = scmp.ne.s32.totalorder %s148, %s149
    %p158 = scmp.eq.s32.totalorder %s28, 0
    %p159 = por %p157, %p158
    %p160 = scmp.ne.s32.totalorder %s148, %s149
    %p161 = scmp.eq.s32.totalorder %s29, 1
    %p162 = por %p160, %p161
    %p164 = scmp.ne.s32.totalorder %s149, %s163
    %p165 = scmp.eq.s32.totalorder %s29, 0
    %p166 = por %p164, %p165
    %s168 = sadd.s32 %s167, 1
    %p171 = scmp.eq.s32.totalorder %s23, 1
    %p172 = scmp.ne.s32.totalorder %s167, %s169
    %p173 = scmp.eq.s32.totalorder %s23, 0
    %p174 = por %p172, %p173
    %p175 = scmp.ne.s32.totalorder %s167, %s169
    %p176 = scmp.eq.s32.totalorder %s28, 1
    %p177 = por %p175, %p176
    %p178 = scmp.ne.s32.totalorder %s169, %s170
    %p179 = scmp.eq.s32.totalorder %s28, 0
    %p180 = por %p178, %p179
    %p181 = scmp.ne.s32.totalorder %s169, %s170
    %p182 = scmp.eq.s32.totalorder %s29, 1
    %p183 = por %p181, %p182
    %p185 = scmp.ne.s32.totalorder %s170, %s184
    %p186 = scmp.eq.s32.totalorder %s29, 0
    %p187 = por %p185, %p186
    %s189 = sadd.s32 %s188, 1
    %p192 = scmp.eq.s32.totalorder %s23, 1
    %p193 = scmp.ne.s32.totalorder %s188, %s190
    %p194 = scmp.eq.s32.totalorder %s23, 0
    %p195 = por %p193, %p194
    %p196 = scmp.ne.s32.totalorder %s188, %s190
    %p197 = scmp.eq.s32.totalorder %s28, 1
    %p198 = por %p196, %p197
    %p199 = scmp.ne.s32.totalorder %s190, %s191
    %p200 = scmp.eq.s32.totalorder %s28, 0
    %p201 = por %p199, %p200
    %p202 = scmp.ne.s32.totalorder %s190, %s191
    %p203 = scmp.eq.s32.totalorder %s29, 1
    %p204 = por %p202, %p203
    %p206 = scmp.ne.s32.totalorder %s191, %s205
    %p207 = scmp.eq.s32.totalorder %s29, 0
    %p208 = por %p206, %p207
    %s210 = sadd.s32 %s209, 1
    %p213 = scmp.eq.s32.totalorder %s23, 1
    %p214 = scmp.ne.s32.totalorder %s209, %s211
    %p215 = scmp.eq.s32.totalorder %s23, 0
    %p216 = por %p214, %p215
    %p217 = scmp.ne.s32.totalorder %s209, %s211
    %p218 = scmp.eq.s32.totalorder %s28, 1
    %p219 = por %p217, %p218
    %p220 = scmp.ne.s32.totalorder %s211, %s212
    %p221 = scmp.eq.s32.totalorder %s28, 0
    %p222 = por %p220, %p221
    %p223 = scmp.ne.s32.totalorder %s211, %s212
    %p224 = scmp.eq.s32.totalorder %s29, 1
    %p225 = por %p223, %p224
    %p227 = scmp.ne.s32.totalorder %s212, %s226
    %p228 = scmp.eq.s32.totalorder %s29, 0
    %p229 = por %p227, %p228
    %s231 = sadd.s32 %s230, 1
    %p234 = scmp.eq.s32.totalorder %s23, 1
    %p235 = scmp.ne.s32.totalorder %s230, %s232
    %p236 = scmp.eq.s32.totalorder %s23, 0
    %p237 = por %p235, %p236
    %p238 = scmp.ne.s32.totalorder %s230, %s232
    %p239 = scmp.eq.s32.totalorder %s28, 1
    %p240 = por %p238, %p239
    %p241 = scmp.ne.s32.totalorder %s232, %s233
    %p242 = scmp.eq.s32.totalorder %s28, 0
    %p243 = por %p241, %p242
    %p244 = scmp.ne.s32.totalorder %s232, %s233
    %p245 = scmp.eq.s32.totalorder %s29, 1
    %p246 = por %p244, %p245
    %p248 = scmp.ne.s32.totalorder %s233, %s247
    %p249 = scmp.eq.s32.totalorder %s29, 0
    %p250 = por %p248, %p249
    %s252 = sadd.s32 %s251, 1
    %p255 = scmp.eq.s32.totalorder %s23, 1
    %p256 = scmp.ne.s32.totalorder %s251, %s253
    %p257 = scmp.eq.s32.totalorder %s23, 0
    %p258 = por %p256, %p257
    %p259 = scmp.ne.s32.totalorder %s251, %s253
    %p260 = scmp.eq.s32.totalorder %s28, 1
    %p261 = por %p259, %p260
    %p262 = scmp.ne.s32.totalorder %s253, %s254
    %p263 = scmp.eq.s32.totalorder %s28, 0
    %p264 = por %p262, %p263
    %p265 = scmp.ne.s32.totalorder %s253, %s254
    %p266 = scmp.eq.s32.totalorder %s29, 1
    %p267 = por %p265, %p266
    %p269 = scmp.ne.s32.totalorder %s254, %s268
    %p270 = scmp.eq.s32.totalorder %s29, 0
    %p271 = por %p269, %p270
    %s273 = sadd.s32 %s272, 1
    %p276 = scmp.eq.s32.totalorder %s23, 1
    %p277 = scmp.ne.s32.totalorder %s272, %s274
    %p278 = scmp.eq.s32.totalorder %s23, 0
    %p279 = por %p277, %p278
    %p280 = scmp.ne.s32.totalorder %s272, %s274
    %p281 = scmp.eq.s32.totalorder %s28, 1
    %p282 = por %p280, %p281
    %p283 = scmp.ne.s32.totalorder %s274, %s275
    %p284 = scmp.eq.s32.totalorder %s28, 0
    %p285 = por %p283, %p284
    %p286 = scmp.ne.s32.totalorder %s274, %s275
    %p287 = scmp.eq.s32.totalorder %s29, 1
    %p288 = por %p286, %p287
    %p290 = scmp.ne.s32.totalorder %s275, %s289
    %p291 = scmp.eq.s32.totalorder %s29, 0
    %p292 = por %p290, %p291
    %s294 = sadd.s32 %s293, 1
    %p297 = scmp.eq.s32.totalorder %s23, 1
    %p298 = scmp.ne.s32.totalorder %s293, %s295
    %p299 = scmp.eq.s32.totalorder %s23, 0
    %p300 = por %p298, %p299
    %p301 = scmp.ne.s32.totalorder %s293, %s295
    %p302 = scmp.eq.s32.totalorder %s28, 1
    %p303 = por %p301, %p302
    %p304 = scmp.ne.s32.totalorder %s295, %s296
    %p305 = scmp.eq.s32.totalorder %s28, 0
    %p306 = por %p304, %p305
    %p307 = scmp.ne.s32.totalorder %s295, %s296
    %p308 = scmp.eq.s32.totalorder %s29, 1
    %p309 = por %p307, %p308
    %p311 = scmp.ne.s32.totalorder %s296, %s310
    %p312 = scmp.eq.s32.totalorder %s29, 0
    %p313 = por %p311, %p312
    %s315 = sadd.s32 %s314, 1
    %p318 = scmp.eq.s32.totalorder %s23, 1
    %p319 = scmp.ne.s32.totalorder %s314, %s316
    %p320 = scmp.eq.s32.totalorder %s23, 0
    %p321 = por %p319, %p320
    %p322 = scmp.ne.s32.totalorder %s314, %s316
    %p323 = scmp.eq.s32.totalorder %s28, 1
    %p324 = por %p322, %p323
    %p325 = scmp.ne.s32.totalorder %s316, %s317
    %p326 = scmp.eq.s32.totalorder %s28, 0
    %p327 = por %p325, %p326
    %p328 = scmp.ne.s32.totalorder %s316, %s317
    %p329 = scmp.eq.s32.totalorder %s29, 1
    %p330 = por %p328, %p329
    %p332 = scmp.ne.s32.totalorder %s317, %s331
    %p333 = scmp.eq.s32.totalorder %s29, 0
    %p334 = por %p332, %p333
    %s336 = sadd.s32 %s335, 1
    %p339 = scmp.eq.s32.totalorder %s23, 1
    %p340 = scmp.ne.s32.totalorder %s335, %s337
    %p341 = scmp.eq.s32.totalorder %s23, 0
    %p342 = por %p340, %p341
    %p343 = scmp.ne.s32.totalorder %s335, %s337
    %p344 = scmp.eq.s32.totalorder %s28, 1
    %p345 = por %p343, %p344
    %p346 = scmp.ne.s32.totalorder %s337, %s338
    %p347 = scmp.eq.s32.totalorder %s28, 0
    %p348 = por %p346, %p347
    %p349 = scmp.ne.s32.totalorder %s337, %s338
    %p350 = scmp.eq.s32.totalorder %s29, 1
    %p351 = por %p349, %p350
    %p353 = scmp.ne.s32.totalorder %s338, %s352
    %p354 = scmp.eq.s32.totalorder %s29, 0
    %p355 = por %p353, %p354
    %s357 = sadd.s32 %s356, 1
    %p360 = scmp.eq.s32.totalorder %s23, 1
    %p361 = scmp.ne.s32.totalorder %s356, %s358
    %p362 = scmp.eq.s32.totalorder %s23, 0
    %p363 = por %p361, %p362
    %p364 = scmp.ne.s32.totalorder %s356, %s358
    %p365 = scmp.eq.s32.totalorder %s28, 1
    %p366 = por %p364, %p365
    %p367 = scmp.ne.s32.totalorder %s358, %s359
    %p368 = scmp.eq.s32.totalorder %s28, 0
    %p369 = por %p367, %p368
    %p370 = scmp.ne.s32.totalorder %s358, %s359
    %p371 = scmp.eq.s32.totalorder %s29, 1
    %p372 = por %p370, %p371
    %p374 = scmp.ne.s32.totalorder %s359, %s373
    %p375 = scmp.eq.s32.totalorder %s29, 0
    %p376 = por %p374, %p375
    %s378 = sadd.s32 %s377, 1
    %p381 = scmp.eq.s32.totalorder %s23, 1
    %p382 = scmp.ne.s32.totalorder %s377, %s379
    %p383 = scmp.eq.s32.totalorder %s23, 0
    %p384 = por %p382, %p383
    %p385 = scmp.ne.s32.totalorder %s377, %s379
    %p386 = scmp.eq.s32.totalorder %s28, 1
    %p387 = por %p385, %p386
    %p388 = scmp.ne.s32.totalorder %s379, %s380
    %p389 = scmp.eq.s32.totalorder %s28, 0
    %p390 = por %p388, %p389
    %p391 = scmp.ne.s32.totalorder %s379, %s380
    %p392 = scmp.eq.s32.totalorder %s29, 1
    %p393 = por %p391, %p392
    %p395 = scmp.ne.s32.totalorder %s380, %s394
    %p396 = scmp.eq.s32.totalorder %s29, 0
    %p397 = por %p395, %p396
    %s398 = ssub.s32 %s23, %s30
    %p399 = scmp.eq.s32.totalorder %s398, 0
    %s401 = sadd.s32 %s400, 1
    %s402 = scalar_select %p399, %s400, %s401
    %p405 = pneg %p399
    %p406 = scmp.eq.s32.totalorder %s23, 1
    %p407 = por %p405, %p406
    %p408 = scmp.ne.s32.totalorder %s400, %s403
    %p409 = scmp.eq.s32.totalorder %s23, 0
    %p410 = por %p408, %p409
    %p411 = scmp.ne.s32.totalorder %s400, %s403
    %p412 = scmp.eq.s32.totalorder %s28, 1
    %p413 = por %p411, %p412
    %p414 = scmp.ne.s32.totalorder %s403, %s404
    %p415 = scmp.eq.s32.totalorder %s28, 0
    %p416 = por %p414, %p415
    %p417 = scmp.ne.s32.totalorder %s403, %s404
    %p418 = scmp.eq.s32.totalorder %s29, 1
    %p419 = por %p417, %p418
    %p421 = scmp.ne.s32.totalorder %s404, %s420
    %p422 = scmp.eq.s32.totalorder %s29, 0
    %p423 = por %p421, %p422
    %p424 = scmp.le.s32.totalorder 1, %s23
    %p425 = scmp.lt.s32.totalorder %s23, 3
    %p426 = pnand %p424, %p425
    %p427 = pneg %p426
    // Predicated region
    $region9: #{dit_forward.1} parent=5 // pred_check
      _
    $region10: #{dit_forward.1} parent=5 // pred_check_branch
      %429 = sbr.rel (%p426) target = $region12
    $region11: #{dit_forward.1} parent=5 // pred_region
      %s430 = ssub.s32 %s23, 1
      // Predicated region
      $region13: #{dit_forward.1} parent=11 // pred_check
        %p431 = pneg %p96
      $region14: #{dit_forward.1} parent=11 // pred_check_branch
        %433 = sbr.rel (%p431) target = $region16
      $region15: #{dit_forward.1} parent=11 // pred_region
        _
      $region16: #{dit_forward.1} parent=11 // pred_fallthru
        _
      // Predicated region
      $region17: #{dit_forward.1} parent=11 // pred_check
        %p434 = pneg %p117
      $region18: #{dit_forward.1} parent=11 // pred_check_branch
        %436 = sbr.rel (%p434) target = $region20
      $region19: #{dit_forward.1} parent=11 // pred_region
        _
      $region20: #{dit_forward.1} parent=11 // pred_fallthru
        _
      // Predicated region
      $region21: #{dit_forward.1} parent=11 // pred_check
        %p437 = pneg %p138
      $region22: #{dit_forward.1} parent=11 // pred_check_branch
        %439 = sbr.rel (%p437) target = $region24
      $region23: #{dit_forward.1} parent=11 // pred_region
        _
      $region24: #{dit_forward.1} parent=11 // pred_fallthru
        _
      // Predicated region
      $region25: #{dit_forward.1} parent=11 // pred_check
        %p440 = pneg %p159
      $region26: #{dit_forward.1} parent=11 // pred_check_branch
        %442 = sbr.rel (%p440) target = $region28
      $region27: #{dit_forward.1} parent=11 // pred_region
        _
      $region28: #{dit_forward.1} parent=11 // pred_fallthru
        _
      // Predicated region
      $region29: #{dit_forward.1} parent=11 // pred_check
        %p443 = pneg %p180
      $region30: #{dit_forward.1} parent=11 // pred_check_branch
        %445 = sbr.rel (%p443) target = $region32
      $region31: #{dit_forward.1} parent=11 // pred_region
        _
      $region32: #{dit_forward.1} parent=11 // pred_fallthru
        _
      // Predicated region
      $region33: #{dit_forward.1} parent=11 // pred_check
        %p446 = pneg %p201
      $region34: #{dit_forward.1} parent=11 // pred_check_branch
        %448 = sbr.rel (%p446) target = $region36
      $region35: #{dit_forward.1} parent=11 // pred_region
        _
      $region36: #{dit_forward.1} parent=11 // pred_fallthru
        _
      // Predicated region
      $region37: #{dit_forward.1} parent=11 // pred_check
        %p449 = pneg %p222
      $region38: #{dit_forward.1} parent=11 // pred_check_branch
        %451 = sbr.rel (%p449) target = $region40
      $region39: #{dit_forward.1} parent=11 // pred_region
        _
      $region40: #{dit_forward.1} parent=11 // pred_fallthru
        _
      // Predicated region
      $region41: #{dit_forward.1} parent=11 // pred_check
        %p452 = pneg %p243
      $region42: #{dit_forward.1} parent=11 // pred_check_branch
        %454 = sbr.rel (%p452) target = $region44
      $region43: #{dit_forward.1} parent=11 // pred_region
        _
      $region44: #{dit_forward.1} parent=11 // pred_fallthru
        _
      // Predicated region
      $region45: #{dit_forward.1} parent=11 // pred_check
        %p455 = pneg %p264
      $region46: #{dit_forward.1} parent=11 // pred_check_branch
        %457 = sbr.rel (%p455) target = $region48
      $region47: #{dit_forward.1} parent=11 // pred_region
        _
      $region48: #{dit_forward.1} parent=11 // pred_fallthru
        _
      // Predicated region
      $region49: #{dit_forward.1} parent=11 // pred_check
        %p458 = pneg %p285
      $region50: #{dit_forward.1} parent=11 // pred_check_branch
        %460 = sbr.rel (%p458) target = $region52
      $region51: #{dit_forward.1} parent=11 // pred_region
        _
      $region52: #{dit_forward.1} parent=11 // pred_fallthru
        _
      // Predicated region
      $region53: #{dit_forward.1} parent=11 // pred_check
        %p461 = pneg %p306
      $region54: #{dit_forward.1} parent=11 // pred_check_branch
        %463 = sbr.rel (%p461) target = $region56
      $region55: #{dit_forward.1} parent=11 // pred_region
        _
      $region56: #{dit_forward.1} parent=11 // pred_fallthru
        _
      // Predicated region
      $region57: #{dit_forward.1} parent=11 // pred_check
        %p464 = pneg %p327
      $region58: #{dit_forward.1} parent=11 // pred_check_branch
        %466 = sbr.rel (%p464) target = $region60
      $region59: #{dit_forward.1} parent=11 // pred_region
        _
      $region60: #{dit_forward.1} parent=11 // pred_fallthru
        _
      // Predicated region
      $region61: #{dit_forward.1} parent=11 // pred_check
        %p467 = pneg %p348
      $region62: #{dit_forward.1} parent=11 // pred_check_branch
        %469 = sbr.rel (%p467) target = $region64
      $region63: #{dit_forward.1} parent=11 // pred_region
        _
      $region64: #{dit_forward.1} parent=11 // pred_fallthru
        _
      // Predicated region
      $region65: #{dit_forward.1} parent=11 // pred_check
        %p470 = pneg %p369
      $region66: #{dit_forward.1} parent=11 // pred_check_branch
        %472 = sbr.rel (%p470) target = $region68
      $region67: #{dit_forward.1} parent=11 // pred_region
        _
      $region68: #{dit_forward.1} parent=11 // pred_fallthru
        _
      // Predicated region
      $region69: #{dit_forward.1} parent=11 // pred_check
        %p473 = pneg %p390
      $region70: #{dit_forward.1} parent=11 // pred_check_branch
        %475 = sbr.rel (%p473) target = $region72
      $region71: #{dit_forward.1} parent=11 // pred_region
        _
      $region72: #{dit_forward.1} parent=11 // pred_fallthru
        _
    $region12: #{dit_forward.1} parent=5 // pred_fallthru
      _
    %p476 = scmp.lt.s32.totalorder %s23, 2
    // Predicated region
    $region73: #{dit_forward.1} parent=5 // pred_check
      %p477 = pneg %p476
    $region74: #{dit_forward.1} parent=5 // pred_check_branch
      %479 = sbr.rel (%p477) target = $region76
    $region75: #{dit_forward.1} parent=5 // pred_region
      // Predicated region
      $region77: #{dit_forward.1} parent=75 // pred_check
        %p480 = pneg %p43
      $region78: #{dit_forward.1} parent=75 // pred_check_branch
        %482 = sbr.rel (%p480) target = $region80
      $region79: #{dit_forward.1} parent=75 // pred_region
        %s483 = smul.u32 3, %s23
        %p484 = scmp.lt.s32.totalorder %s483, 5
        %s485 = scalar_select %p484, %s483, 5
        %s486 = smul.addr %s485, 4
        %s487 = scalar_lea.vmem %s0, %s486
        %s488 = smul.u32 3, %s23
      $region80: #{dit_forward.1} parent=75 // pred_fallthru
        _
      // Predicated region
      $region81: #{dit_forward.1} parent=75 // pred_check
        %p489 = pneg %p69
      $region82: #{dit_forward.1} parent=75 // pred_check_branch
        %491 = sbr.rel (%p489) target = $region84
      $region83: #{dit_forward.1} parent=75 // pred_region
        %s492 = smul.u32 3, %s23
        %p493 = scmp.lt.s32.totalorder %s492, 5
        %s494 = scalar_select %p493, %s492, 5
        %s495 = smul.addr %s494, 8
        %s496 = scalar_lea.vmem %s1, %s495
        %s497 = smul.u32 3, %s23
      $region84: #{dit_forward.1} parent=75 // pred_fallthru
        _
    $region76: #{dit_forward.1} parent=5 // pred_fallthru
      _
    %p498 = scmp.le.s32.totalorder 1, %s23
    %p499 = scmp.lt.s32.totalorder %s23, 3
    %p500 = pnand %p498, %p499
    %p501 = pneg %p500
    // Predicated region
    $region85: #{dit_forward.1} parent=5 // pred_check
      _
    $region86: #{dit_forward.1} parent=5 // pred_check_branch
      %503 = sbr.rel (%p500) target = $region88
    $region87: #{dit_forward.1} parent=5 // pred_region
      %s504 = ssub.s32 %s23, 1
      %s505 = smul.u32 3, %s28
      %p506 = scmp.lt.s32.totalorder %s505, 5
      %s507 = scalar_select %p506, %s505, 5
      %s508 = smul.addr %s507, 4
      %s509 = scalar_lea.vmem %s0, %s508
      %p510 = pneg %p49
      %p511 = pneg %p46
      %s512 = smul.u32 3, %s28
      %p513 = scmp.lt.s32.totalorder %s512, 5
      %s514 = scalar_select %p513, %s512, 5
      %s515 = smul.addr %s514, 8
      %s516 = scalar_lea.vmem %s1, %s515
      %p517 = pneg %p75
      %p518 = pneg %p72
      %p519 = pneg %p96
      %p520 = pneg %p93
      %p521 = pneg %p117
      %p522 = pneg %p114
      %p523 = pneg %p138
      %p524 = pneg %p135
      %p525 = pneg %p159
      %p526 = pneg %p156
      %p527 = pneg %p180
      %p528 = pneg %p177
      %p529 = pneg %p201
      %p530 = pneg %p198
      %p531 = pneg %p222
      %p532 = pneg %p219
      %p533 = pneg %p243
      %p534 = pneg %p240
      %p535 = pneg %p264
      %p536 = pneg %p261
      %p537 = pneg %p285
      %p538 = pneg %p282
      %p539 = pneg %p306
      %p540 = pneg %p303
      %p541 = pneg %p327
      %p542 = pneg %p324
      %p543 = pneg %p348
      %p544 = pneg %p345
      %p545 = pneg %p369
      %p546 = pneg %p366
      %p547 = pneg %p390
      %p548 = pneg %p387
      %p549 = pneg %p416
      %p550 = pneg %p413
      %s551 = smul.u32 3, %s28
      %p552 = scmp.lt.s32.totalorder %s551, 5
      %s553 = scalar_select %p552, %s551, 5
      %s554 = smul.addr %s553, 8
      %s555 = scalar_lea.vmem %s17, %s554
      %s556 = smul.u32 3, %s28
      %p557 = scmp.lt.s32.totalorder %s556, 5
      %s558 = scalar_select %p557, %s556, 5
      %s559 = smul.addr %s558, 4
      %s560 = scalar_lea.vmem %s0, %s559
      %s561 = smul.u32 3, %s28
      %s562 = smul.u32 3, %s28
      %p563 = scmp.lt.s32.totalorder %s562, 5
      %s564 = scalar_select %p563, %s562, 5
      %s565 = smul.addr %s564, 8
      %s566 = scalar_lea.vmem %s1, %s565
      %s567 = smul.u32 3, %s28
      %s568 = smul.u32 3, %s28
      %p569 = scmp.lt.s32.totalorder %s568, 5
      %s570 = scalar_select %p569, %s568, 5
      %s571 = smul.addr %s570, 8
      %s572 = scalar_lea.vmem %s17, %s571
      %s573 = smul.u32 3, %s28
      %v575 = vlaneseq
      %v576 = vshrl.u32 %v575, 7
      %v577 = vadd.s32 %v576, 8
      %v578 = vadd.s32 %v576, 16
      %v579 = vcvt.s32.f32 %v576
      %v580 = vcvt.s32.f32 %v577
      %v581 = vcvt.s32.f32 %v578
      %v582 = vlaneseq
      %v583 = vand.u32 %v582, 127
      %v584 = vcvt.s32.f32 %v583
      %v585 = vmul.f32 %v579, 0.041666668
      %v586 = vmul.f32 %v580, 0.041666668
      %v587 = vmul.f32 %v581, 0.041666668
      %v588 = vfloor.f32 %v585
      %v589 = vfloor.f32 %v586
      %v590 = vfloor.f32 %v587
      %v591 = vmul.f32 %v588, 24.0
      %v592 = vmul.f32 %v589, 24.0
      %v593 = vmul.f32 %v590, 24.0
      %vm594 = vcmp.ge.f32.partialorder %v584, %v591
      %vm595 = vcmp.ge.f32.partialorder %v584, %v592
      %vm596 = vcmp.ge.f32.partialorder %v584, %v593
      %v597 = vadd.f32 %v591, 18.0
      %v598 = vadd.f32 %v592, 18.0
      %v599 = vadd.f32 %v593, 18.0
      %vm600 = vcmp.lt.f32.partialorder %v584, %v597
      %vm601 = vcmp.lt.f32.partialorder %v584, %v598
      %vm602 = vcmp.lt.f32.partialorder %v584, %v599
      %vm603 = vmand %vm594, %vm600
      %vm604 = vmand %vm595, %vm601
      %vm605 = vmand %vm596, %vm602
      %v606 = vsel %vm603, 0.0, -1e+30
      %v607 = vsel %vm604, 0.0, -1e+30
      %v608 = vsel %vm605, 0.0, -1e+30
      %v609 = vld [vmem:[%s566] sm:$0xff]
      %v610 = vld [vmem:[%s566 + $0x8] sm:$0xff]
      %v611 = vld [vmem:[%s566 + $0x10] sm:$0xff]
      %v612 = vld [vmem:[%s560] sm:$0xf]
      %v613 = vld [vmem:[%s560 + $0x4] sm:$0xf]
      %v614 = vld [vmem:[%s560 + $0x8] sm:$0xf]
      %v615 = vld [vmem:[%s2] sm:$0xf]
      %v616 = vld [vmem:[%s2 + $0x4] sm:$0xf]
      %v617 = vld [vmem:[%s2 + $0x8] sm:$0xf]
      %v618 = vld [vmem:[%s2 + $0xc] sm:$0xf]
      %v619 = vld [vmem:[%s2 + $0x10] sm:$0xf]
      %v620 = vld [vmem:[%s2 + $0x14] sm:$0xf]
      %v621 = vld [vmem:[%s2 + $0x18] sm:$0xf]
      %v622 = vld [vmem:[%s2 + $0x1c] sm:$0xf]
      %v626 = vunpack.c.l.b16 %v612
      %v627 = vunpack.c.l.b16 %v613
      %v628 = vunpack.c.l.b16 %v614
      %v629 = vpack.c.b16 %v627, %v626
      %v630 = vpack.c.b16 %v628, %v628
      %v639 = vunpack.c.l.b16 %v615
      %v640 = vunpack.c.l.b16 %v616
      %v641 = vunpack.c.l.b16 %v617
      %v642 = vunpack.c.l.b16 %v618
      %v643 = vunpack.c.l.b16 %v619
      %v644 = vunpack.c.l.b16 %v620
      %v645 = vunpack.c.l.b16 %v621
      %v646 = vunpack.c.l.b16 %v622
      %v647 = vpack.c.b16 %v640, %v639
      %v648 = vpack.c.b16 %v642, %v641
      %v649 = vpack.c.b16 %v644, %v643
      %v650 = vpack.c.b16 %v646, %v645
      %vm655 = vcmask 523264
      %v657 = vsel %vm655, %v629, 0
      %v660 = vsel %vm655, %v630, 0
      %662 = vmatprep.subr.bf16.mxu0 0
      %663 = vmatpush1.bf16.msra.mxu0 0
      %664 = vmatprep.subr.bf16.mxu0 0
      %665 = vmatpush1.bf16.msra.mxu0 0
      %666 = vmatprep.subr.bf16.mxu0 0
      %667 = vmatpush1.bf16.msra.mxu0 0
      %668 = vmatprep.subr.bf16.mxu0 0
      %669 = vmatpush1.bf16.msra.mxu0 0
      %670 = vmatprep.subr.bf16.mxu0 0
      %671 = vmatpush1.bf16.msra.mxu0 %v650
      %672 = vmatprep.subr.bf16.mxu0 0
      %673 = vmatpush1.bf16.msra.mxu0 %v649
      %674 = vmatprep.subr.bf16.mxu0 0
      %675 = vmatpush1.bf16.msra.mxu0 %v648
      %676 = vmatprep.subr.bf16.mxu0 0
      %677 = vmatpush1.bf16.msra.mxu0 %v647
      %678 = vmatprep.subr.bf16.mxu0 0
      %679 = vmatpush2.bf16.msra.mxu0 0
      %680 = vmatprep.subr.bf16.mxu0 0
      %681 = vmatpush2.bf16.msra.mxu0 0
      %682 = vmatprep.subr.bf16.mxu0 0
      %683 = vmatpush2.bf16.msra.mxu0 0
      %684 = vmatprep.subr.bf16.mxu0 0
      %685 = vmatpush2.bf16.msra.mxu0 0
      %686 = vmatprep.subr.bf16.mxu0 0
      %687 = vmatpush2.bf16.msra.mxu0 0
      %688 = vmatprep.subr.bf16.mxu0 0
      %689 = vmatpush2.bf16.msra.mxu0 0
      %690 = vmatprep.subr.bf16.mxu0 0
      %691 = vmatpush2.bf16.msra.mxu0 0
      %692 = vmatprep.subr.bf16.mxu0 0
      %693 = vmatpush2.bf16.msra.mxu0 0
      %694 = vmatprep.mubr.bf16.mxu0 0
      %695 = vmatmul.mubr.bf16.gmra.mxu0 %v657
      %v696 = vpop.f32.mrf.mxu0
      %v697 = vadd.f32 0.0, %v696
      %v698 = vpop.f32.mrf.mxu0
      %v699 = vpop.f32.mrf.mxu0
      %v700 = vadd.f32 0.0, %v699
      %v701 = vpop.f32.mrf.mxu0
      %702 = vmatprep.mubr.bf16.mxu0 0
      %703 = vmatmul.mubr.bf16.gmra.mxu0 %v660
      %v704 = vpop.f32.mrf.mxu0
      %v705 = vadd.f32 0.0, %v704
      %v706 = vpop.f32.mrf.mxu0
      %v707 = vpop.f32.mrf.mxu0
      %v708 = vpop.f32.mrf.mxu0
      %709 = vdwg.mxu0
      %v710 = vadd.f32 %v609, %v697
      %v711 = vadd.f32 %v610, %v700
      %v712 = vadd.f32 %v611, %v705
      %v713 = vld [vmem:[%s5] sm:$0x1]
      %v714 = vld [vmem:[%s6] sm:$0x1]
      %vm715 = vcmask 261120
      %v716 = vsel %vm715, %v710, 0.0
      %717 = vadd.xlane.f32.xlu0 %v716
      %v718 = vpop.xlane.xlu0 %717
      %v719 = vsel %vm715, %v711, 0.0
      %720 = vadd.xlane.f32.xlu0 %v719
      %v721 = vpop.xlane.xlu0 %720
      %v722 = vsel %vm715, %v712, 0.0
      %723 = vadd.xlane.f32.xlu0 %v722
      %v724 = vpop.xlane.xlu0 %723
      %v725 = vrcp.pop 32.0
      %v726 = vmul.f32 %v718, %v725
      %v727 = vmul.f32 %v721, %v725
      %v728 = vmul.f32 %v724, %v725
      %v729 = vsub.f32 %v710, %v726
      %v730 = vsub.f32 %v711, %v727
      %v731 = vsub.f32 %v712, %v728
      %v732 = vmul.f32 %v729, %v729
      %v733 = vmul.f32 %v730, %v730
      %v734 = vmul.f32 %v731, %v731
      %v735 = vsel %vm715, %v732, 0.0
      %736 = vadd.xlane.f32.xlu0 %v735
      %v737 = vpop.xlane.xlu0 %736
      %v738 = vsel %vm715, %v733, 0.0
      %739 = vadd.xlane.f32.xlu0 %v738
      %v740 = vpop.xlane.xlu0 %739
      %v741 = vsel %vm715, %v734, 0.0
      %742 = vadd.xlane.f32.xlu0 %v741
      %v743 = vpop.xlane.xlu0 %742
      %v744 = vmul.f32 %v737, %v725
      %v745 = vmul.f32 %v740, %v725
      %v746 = vmul.f32 %v743, %v725
      %v747 = vadd.f32 %v744, 1e-05
      %v748 = vadd.f32 %v745, 1e-05
      %v749 = vadd.f32 %v746, 1e-05
      %v750 = vrsqrt.pop %v747
      %v751 = vrsqrt.pop %v748
      %v752 = vrsqrt.pop %v749
      %v753 = vmul.f32 %v729, %v750
      %v754 = vmul.f32 %v730, %v751
      %v755 = vmul.f32 %v731, %v752
      %v757 = vlaneseq
      %v758 = vshrl.u32 %v757, 7
      %v759 = vsub.s32 0, %v758
      %v760 = vrot.slane %v713, %v759
      %v762 = vmul.f32 %v753, %v760
      %v763 = vmul.f32 %v754, %v760
      %v764 = vmul.f32 %v755, %v760
      %v766 = vlaneseq
      %v767 = vshrl.u32 %v766, 7
      %v768 = vsub.s32 0, %v767
      %v769 = vrot.slane %v714, %v768
      %v771 = vadd.f32 %v762, %v769
      %v772 = vadd.f32 %v763, %v769
      %v773 = vadd.f32 %v764, %v769
      %v774 = vpack.c.bf16 %v772, %v771
      %v775 = vpack.c.bf16 %v773, %v773
      %v776 = vld [vmem:[%s3] sm:$0xf]
      %v777 = vld [vmem:[%s3 + $0x4] sm:$0xf]
      %v778 = vld [vmem:[%s3 + $0x8] sm:$0xf]
      %v779 = vld [vmem:[%s3 + $0xc] sm:$0xf]
      %v784 = vunpack.c.l.b16 %v776
      %v785 = vunpack.c.l.b16 %v777
      %v786 = vunpack.c.l.b16 %v778
      %v787 = vunpack.c.l.b16 %v779
      %v788 = vpack.c.b16 %v785, %v784
      %v789 = vpack.c.b16 %v787, %v786
      %v793 = vsel %vm715, %v774, 0
      %v796 = vsel %vm715, %v775, 0
      %798 = vmatprep.subr.bf16.mxu0 0
      %799 = vmatpush1.bf16.msra.mxu0 0
      %800 = vmatprep.subr.bf16.mxu0 0
      %801 = vmatpush1.bf16.msra.mxu0 0
      %802 = vmatprep.subr.bf16.mxu0 0
      %803 = vmatpush1.bf16.msra.mxu0 0
      %804 = vmatprep.subr.bf16.mxu0 0
      %805 = vmatpush1.bf16.msra.mxu0 0
      %806 = vmatprep.subr.bf16.mxu0 0
      %807 = vmatpush1.bf16.msra.mxu0 0
      %808 = vmatprep.subr.bf16.mxu0 0
      %809 = vmatpush1.bf16.msra.mxu0 0
      %810 = vmatprep.subr.bf16.mxu0 0
      %811 = vmatpush1.bf16.msra.mxu0 %v789
      %812 = vmatprep.subr.bf16.mxu0 0
      %813 = vmatpush1.bf16.msra.mxu0 %v788
      %814 = vmatprep.subr.bf16.mxu0 0
      %815 = vmatpush2.bf16.msra.mxu0 0
      %816 = vmatprep.subr.bf16.mxu0 0
      %817 = vmatpush2.bf16.msra.mxu0 0
      %818 = vmatprep.subr.bf16.mxu0 0
      %819 = vmatpush2.bf16.msra.mxu0 0
      %820 = vmatprep.subr.bf16.mxu0 0
      %821 = vmatpush2.bf16.msra.mxu0 0
      %822 = vmatprep.subr.bf16.mxu0 0
      %823 = vmatpush2.bf16.msra.mxu0 0
      %824 = vmatprep.subr.bf16.mxu0 0
      %825 = vmatpush2.bf16.msra.mxu0 0
      %826 = vmatprep.subr.bf16.mxu0 0
      %827 = vmatpush2.bf16.msra.mxu0 0
      %828 = vmatprep.subr.bf16.mxu0 0
      %829 = vmatpush2.bf16.msra.mxu0 0
      %830 = vmatprep.mubr.bf16.mxu0 0
      %831 = vmatmul.mubr.bf16.gmra.mxu0 %v793
      %v832 = vpop.f32.mrf.mxu0
      %v833 = vadd.f32 0.0, %v832
      %v834 = vpop.f32.mrf.mxu0
      %v835 = vpop.f32.mrf.mxu0
      %v836 = vadd.f32 0.0, %v835
      %v837 = vpop.f32.mrf.mxu0
      %838 = vmatprep.mubr.bf16.mxu0 0
      %839 = vmatmul.mubr.bf16.gmra.mxu0 %v796
      %v840 = vpop.f32.mrf.mxu0
      %v841 = vadd.f32 0.0, %v840
      %v842 = vpop.f32.mrf.mxu0
      %v843 = vpop.f32.mrf.mxu0
      %v844 = vpop.f32.mrf.mxu0
      %845 = vdwg.mxu0
      %v846 = vpack.c.bf16 %v836, %v833
      %v847 = vpack.c.bf16 %v841, %v841
      %v848 = vld [vmem:[%s4] sm:$0xf]
      %v849 = vld [vmem:[%s4 + $0x4] sm:$0xf]
      %v850 = vld [vmem:[%s4 + $0x8] sm:$0xf]
      %v851 = vld [vmem:[%s4 + $0xc] sm:$0xf]
      %v856 = vunpack.c.l.b16 %v848
      %v857 = vunpack.c.l.b16 %v849
      %v858 = vunpack.c.l.b16 %v850
      %v859 = vunpack.c.l.b16 %v851
      %v860 = vpack.c.b16 %v857, %v856
      %v861 = vpack.c.b16 %v859, %v858
      %864 = vmatprep.subr.bf16.mxu0 0
      %865 = vmatpush1.bf16.msra.mxu0 0
      %866 = vmatprep.subr.bf16.mxu0 0
      %867 = vmatpush1.bf16.msra.mxu0 0
      %868 = vmatprep.subr.bf16.mxu0 0
      %869 = vmatpush1.bf16.msra.mxu0 0
      %870 = vmatprep.subr.bf16.mxu0 0
      %871 = vmatpush1.bf16.msra.mxu0 0
      %872 = vmatprep.subr.bf16.mxu0 0
      %873 = vmatpush1.bf16.msra.mxu0 0
      %874 = vmatprep.subr.bf16.mxu0 0
      %875 = vmatpush1.bf16.msra.mxu0 0
      %876 = vmatprep.subr.bf16.mxu0 0
      %877 = vmatpush1.bf16.msra.mxu0 %v861
      %878 = vmatprep.subr.bf16.mxu0 0
      %879 = vmatpush1.bf16.msra.mxu0 %v860
      %880 = vmatprep.subr.bf16.mxu0 0
      %881 = vmatpush2.bf16.msra.mxu0 0
      %882 = vmatprep.subr.bf16.mxu0 0
      %883 = vmatpush2.bf16.msra.mxu0 0
      %884 = vmatprep.subr.bf16.mxu0 0
      %885 = vmatpush2.bf16.msra.mxu0 0
      %886 = vmatprep.subr.bf16.mxu0 0
      %887 = vmatpush2.bf16.msra.mxu0 0
      %888 = vmatprep.subr.bf16.mxu0 0
      %889 = vmatpush2.bf16.msra.mxu0 0
      %890 = vmatprep.subr.bf16.mxu0 0
      %891 = vmatpush2.bf16.msra.mxu0 0
      %892 = vmatprep.subr.bf16.mxu0 0
      %893 = vmatpush2.bf16.msra.mxu0 0
      %894 = vmatprep.subr.bf16.mxu0 0
      %895 = vmatpush2.bf16.msra.mxu0 0
      %896 = vmatprep.mubr.bf16.mxu0 0
      %897 = vmatmul.mubr.bf16.gmra.mxu0 %v793
      %v898 = vpop.f32.mrf.mxu0
      %v899 = vadd.f32 0.0, %v898
      %v900 = vpop.f32.mrf.mxu0
      %v901 = vpop.f32.mrf.mxu0
      %v902 = vadd.f32 0.0, %v901
      %v903 = vpop.f32.mrf.mxu0
      %904 = vmatprep.mubr.bf16.mxu0 0
      %905 = vmatmul.mubr.bf16.gmra.mxu0 %v796
      %v906 = vpop.f32.mrf.mxu0
      %v907 = vadd.f32 0.0, %v906
      %v908 = vpop.f32.mrf.mxu0
      %v909 = vpop.f32.mrf.mxu0
      %v910 = vpop.f32.mrf.mxu0
      %911 = vdwg.mxu0
      %v912 = vpack.c.bf16 %v902, %v899
      %v913 = vpack.c.bf16 %v907, %v907
      %v915 = vsel %vm715, %v846, 0
      %v918 = vsel %vm715, %v847, 0
      %920 = vmatprep.subr.bf16.mxu0 0
      %921 = vmatpush1.bf16.xpose.msra.mxu0 0
      %922 = vmatprep.subr.bf16.mxu0 0
      %923 = vmatpush1.bf16.xpose.msra.mxu0 0
      %924 = vmatprep.subr.bf16.mxu0 0
      %925 = vmatpush1.bf16.xpose.msra.mxu0 0
      %926 = vmatprep.subr.bf16.mxu0 0
      %927 = vmatpush1.bf16.xpose.msra.mxu0 0
      %928 = vmatprep.subr.bf16.mxu0 0
      %929 = vmatpush1.bf16.xpose.msra.mxu0 0
      %930 = vmatprep.subr.bf16.mxu0 0
      %931 = vmatpush1.bf16.xpose.msra.mxu0 0
      %932 = vmatprep.subr.bf16.mxu0 0
      %933 = vmatpush1.bf16.xpose.msra.mxu0 %v796
      %934 = vmatprep.subr.bf16.mxu0 0
      %935 = vmatpush1.bf16.xpose.msra.mxu0 %v793
      %936 = vmatprep.subr.bf16.mxu0 0
      %937 = vmatpush2.bf16.xpose.msra.mxu0 0
      %938 = vmatprep.subr.bf16.mxu0 0
      %939 = vmatpush2.bf16.xpose.msra.mxu0 0
      %940 = vmatprep.subr.bf16.mxu0 0
      %941 = vmatpush2.bf16.xpose.msra.mxu0 0
      %942 = vmatprep.subr.bf16.mxu0 0
      %943 = vmatpush2.bf16.xpose.msra.mxu0 0
      %944 = vmatprep.subr.bf16.mxu0 0
      %945 = vmatpush2.bf16.xpose.msra.mxu0 0
      %946 = vmatprep.subr.bf16.mxu0 0
      %947 = vmatpush2.bf16.xpose.msra.mxu0 0
      %948 = vmatprep.subr.bf16.mxu0 0
      %949 = vmatpush2.bf16.xpose.msra.mxu0 0
      %950 = vmatprep.subr.bf16.mxu0 0
      %951 = vmatpush2.bf16.xpose.msra.mxu0 0
      %952 = vmatprep.mubr.bf16.mxu0 0
      %953 = vmatmul.mubr.bf16.gmra.mxu0 %v915
      %v954 = vpop.f32.mrf.mxu0
      %v955 = vadd.f32 0.0, %v954
      %v956 = vpop.f32.mrf.mxu0
      %v957 = vpop.f32.mrf.mxu0
      %v958 = vadd.f32 0.0, %v957
      %v959 = vpop.f32.mrf.mxu0
      %960 = vmatprep.mubr.bf16.mxu0 0
      %961 = vmatmul.mubr.bf16.gmra.mxu0 %v918
      %v962 = vpop.f32.mrf.mxu0
      %v963 = vadd.f32 0.0, %v962
      %v964 = vpop.f32.mrf.mxu0
      %v965 = vpop.f32.mrf.mxu0
      %v966 = vpop.f32.mrf.mxu0
      %967 = vdwg.mxu0
      %v968 = vmul.f32 %v955, 0.35355338
      %v969 = vmul.f32 %v958, 0.35355338
      %v970 = vmul.f32 %v963, 0.35355338
      %v971 = vadd.f32 %v968, %v606
      %v972 = vadd.f32 %v969, %v607
      %v973 = vadd.f32 %v970, %v608
      %vm974 = vcmask 195584
      %v975 = vsel %vm974, %v971, -inf
      %976 = vmax.xlane.f32.xlu0 %v975
      %v977 = vpop.xlane.xlu0 %976
      %v978 = vsel %vm974, %v972, -inf
      %979 = vmax.xlane.f32.xlu0 %v978
      %v980 = vpop.xlane.xlu0 %979
      %v981 = vsel %vm974, %v973, -inf
      %982 = vmax.xlane.f32.xlu0 %v981
      %v983 = vpop.xlane.xlu0 %982
      %v984 = vsub.f32 %v971, %v977
      %v985 = vsub.f32 %v972, %v980
      %v986 = vsub.f32 %v973, %v983
      %v987 = vmul.f32 %v984, 1.442695
      %v988 = vpow.pop %v987
      %v989 = vmul.f32 %v985, 1.442695
      %v990 = vpow.pop %v989
      %v991 = vmul.f32 %v986, 1.442695
      %v992 = vpow.pop %v991
      %v993 = vsel %vm974, %v988, 0.0
      %994 = vadd.xlane.f32.xlu0 %v993
      %v995 = vpop.xlane.xlu0 %994
      %v996 = vsel %vm974, %v990, 0.0
      %997 = vadd.xlane.f32.xlu0 %v996
      %v998 = vpop.xlane.xlu0 %997
      %v999 = vsel %vm974, %v992, 0.0
      %1000 = vadd.xlane.f32.xlu0 %v999
      %v1001 = vpop.xlane.xlu0 %1000
      %v1002 = vrcp.pop %v995
      %v1003 = vrcp.pop %v998
      %v1004 = vrcp.pop %v1001
      %v1005 = vmul.f32 %v988, %v1002
      %v1006 = vmul.f32 %v990, %v1003
      %v1007 = vmul.f32 %v992, %v1004
      %v1008 = vpack.c.bf16 %v1006, %v1005
      %v1009 = vpack.c.bf16 %v1007, %v1007
      %1012 = vrot.lane.b32.xlu0 %v846, 96
      %v1013 = vpop.permute.xlu0 %1012
      %1014 = vrot.lane.b32.xlu0 %v847, 96
      %v1015 = vpop.permute.xlu0 %1014
      %v1017 = vsel %vm715, %v1013, 0
      %v1020 = vsel %vm715, %v1015, 0
      %1022 = vmatprep.subr.bf16.mxu0 0
      %1023 = vmatpush1.bf16.xpose.msra.mxu0 0
      %1024 = vmatprep.subr.bf16.mxu0 0
      %1025 = vmatpush1.bf16.xpose.msra.mxu0 0
      %1026 = vmatprep.subr.bf16.mxu0 0
      %1027 = vmatpush1.bf16.xpose.msra.mxu0 0
      %1028 = vmatprep.subr.bf16.mxu0 0
      %1029 = vmatpush1.bf16.xpose.msra.mxu0 0
      %1030 = vmatprep.subr.bf16.mxu0 0
      %1031 = vmatpush1.bf16.xpose.msra.mxu0 0
      %1032 = vmatprep.subr.bf16.mxu0 0
      %1033 = vmatpush1.bf16.xpose.msra.mxu0 0
      %1034 = vmatprep.subr.bf16.mxu0 0
      %1035 = vmatpush1.bf16.xpose.msra.mxu0 %v796
      %1036 = vmatprep.subr.bf16.mxu0 0
      %1037 = vmatpush1.bf16.xpose.msra.mxu0 %v793
      %1038 = vmatprep.subr.bf16.mxu0 0
      %1039 = vmatpush2.bf16.xpose.msra.mxu0 0
      %1040 = vmatprep.subr.bf16.mxu0 0
      %1041 = vmatpush2.bf16.xpose.msra.mxu0 0
      %1042 = vmatprep.subr.bf16.mxu0 0
      %1043 = vmatpush2.bf16.xpose.msra.mxu0 0
      %1044 = vmatprep.subr.bf16.mxu0 0
      %1045 = vmatpush2.bf16.xpose.msra.mxu0 0
      %1046 = vmatprep.subr.bf16.mxu0 0
      %1047 = vmatpush2.bf16.xpose.msra.mxu0 0
      %1048 = vmatprep.subr.bf16.mxu0 0
      %1049 = vmatpush2.bf16.xpose.msra.mxu0 0
      %1050 = vmatprep.subr.bf16.mxu0 0
      %1051 = vmatpush2.bf16.xpose.msra.mxu0 0
      %1052 = vmatprep.subr.bf16.mxu0 0
      %1053 = vmatpush2.bf16.xpose.msra.mxu0 0
      %1054 = vmatprep.mubr.bf16.mxu0 0
      %1055 = vmatmul.mubr.bf16.gmra.mxu0 %v1017
      %v1056 = vpop.f32.mrf.mxu0
      %v1057 = vadd.f32 0.0, %v1056
      %v1058 = vpop.f32.mrf.mxu0
      %v1059 = vpop.f32.mrf.mxu0
      %v1060 = vadd.f32 0.0, %v1059
      %v1061 = vpop.f32.mrf.mxu0
      %1062 = vmatprep.mubr.bf16.mxu0 0
      %1063 = vmatmul.mubr.bf16.gmra.mxu0 %v1020
      %v1064 = vpop.f32.mrf.mxu0
      %v1065 = vadd.f32 0.0, %v1064
      %v1066 = vpop.f32.mrf.mxu0
      %v1067 = vpop.f32.mrf.mxu0
      %v1068 = vpop.f32.mrf.mxu0
      %1069 = vdwg.mxu0
      %v1070 = vmul.f32 %v1057, 0.35355338
      %v1071 = vmul.f32 %v1060, 0.35355338
      %v1072 = vmul.f32 %v1065, 0.35355338
      %v1073 = vadd.f32 %v1070, %v606
      %v1074 = vadd.f32 %v1071, %v607
      %v1075 = vadd.f32 %v1072, %v608
      %v1076 = vsel %vm974, %v1073, -inf
      %1077 = vmax.xlane.f32.xlu0 %v1076
      %v1078 = vpop.xlane.xlu0 %1077
      %v1079 = vsel %vm974, %v1074, -inf
      %1080 = vmax.xlane.f32.xlu0 %v1079
      %v1081 = vpop.xlane.xlu0 %1080
      %v1082 = vsel %vm974, %v1075, -inf
      %1083 = vmax.xlane.f32.xlu0 %v1082
      %v1084 = vpop.xlane.xlu0 %1083
      %v1085 = vsub.f32 %v1073, %v1078
      %v1086 = vsub.f32 %v1074, %v1081
      %v1087 = vsub.f32 %v1075, %v1084
      %v1088 = vmul.f32 %v1085, 1.442695
      %v1089 = vpow.pop %v1088
      %v1090 = vmul.f32 %v1086, 1.442695
      %v1091 = vpow.pop %v1090
      %v1092 = vmul.f32 %v1087, 1.442695
      %v1093 = vpow.pop %v1092
      %v1094 = vsel %vm974, %v1089, 0.0
      %1095 = vadd.xlane.f32.xlu0 %v1094
      %v1096 = vpop.xlane.xlu0 %1095
      %v1097 = vsel %vm974, %v1091, 0.0
      %1098 = vadd.xlane.f32.xlu0 %v1097
      %v1099 = vpop.xlane.xlu0 %1098
      %v1100 = vsel %vm974, %v1093, 0.0
      %1101 = vadd.xlane.f32.xlu0 %v1100
      %v1102 = vpop.xlane.xlu0 %1101
      %v1103 = vrcp.pop %v1096
      %v1104 = vrcp.pop %v1099
      %v1105 = vrcp.pop %v1102
      %v1106 = vmul.f32 %v1089, %v1103
      %v1107 = vmul.f32 %v1091, %v1104
      %v1108 = vmul.f32 %v1093, %v1105
      %v1109 = vpack.c.bf16 %v1107, %v1106
      %v1110 = vpack.c.bf16 %v1108, %v1108
      %1113 = vrot.lane.b32.xlu0 %v912, 96
      %v1114 = vpop.permute.xlu0 %1113
      %1115 = vrot.lane.b32.xlu0 %v913, 96
      %v1116 = vpop.permute.xlu0 %1115
      %v1119 = vsel %vm974, %v1109, 0
      %v1122 = vsel %vm974, %v1110, 0
      %vm1124 = vcmask 1043456
      %v1126 = vsel %vm1124, %v1116, 0
      %1128 = vmatprep.subr.bf16.mxu0 0
      %1129 = vmatpush1.bf16.msra.mxu0 0
      %1130 = vmatprep.subr.bf16.mxu0 0
      %1131 = vmatpush1.bf16.msra.mxu0 0
      %1132 = vmatprep.subr.bf16.mxu0 0
      %1133 = vmatpush1.bf16.msra.mxu0 0
      %1134 = vmatprep.subr.bf16.mxu0 0
      %1135 = vmatpush1.bf16.msra.mxu0 0
      %1136 = vmatprep.subr.bf16.mxu0 0
      %1137 = vmatpush1.bf16.msra.mxu0 0
      %1138 = vmatprep.subr.bf16.mxu0 0
      %1139 = vmatpush1.bf16.msra.mxu0 0
      %1140 = vmatprep.subr.bf16.mxu0 0
      %1141 = vmatpush1.bf16.msra.mxu0 %v1126
      %1142 = vmatprep.subr.bf16.mxu0 0
      %1143 = vmatpush1.bf16.msra.mxu0 %v1114
      %1144 = vmatprep.subr.bf16.mxu0 0
      %1145 = vmatpush2.bf16.msra.mxu0 0
      %1146 = vmatprep.subr.bf16.mxu0 0
      %1147 = vmatpush2.bf16.msra.mxu0 0
      %1148 = vmatprep.subr.bf16.mxu0 0
      %1149 = vmatpush2.bf16.msra.mxu0 0
      %1150 = vmatprep.subr.bf16.mxu0 0
      %1151 = vmatpush2.bf16.msra.mxu0 0
      %1152 = vmatprep.subr.bf16.mxu0 0
      %1153 = vmatpush2.bf16.msra.mxu0 0
      %1154 = vmatprep.subr.bf16.mxu0 0
      %1155 = vmatpush2.bf16.msra.mxu0 0
      %1156 = vmatprep.subr.bf16.mxu0 0
      %1157 = vmatpush2.bf16.msra.mxu0 0
      %1158 = vmatprep.subr.bf16.mxu0 0
      %1159 = vmatpush2.bf16.msra.mxu0 0
      %1160 = vmatprep.mubr.bf16.mxu0 0
      %1161 = vmatmul.mubr.bf16.gmra.mxu0 %v1119
      %v1162 = vpop.f32.mrf.mxu0
      %v1163 = vadd.f32 0.0, %v1162
      %v1164 = vpop.f32.mrf.mxu0
      %v1165 = vpop.f32.mrf.mxu0
      %v1166 = vadd.f32 0.0, %v1165
      %v1167 = vpop.f32.mrf.mxu0
      %1168 = vmatprep.mubr.bf16.mxu0 0
      %1169 = vmatmul.mubr.bf16.gmra.mxu0 %v1122
      %v1170 = vpop.f32.mrf.mxu0
      %v1171 = vadd.f32 0.0, %v1170
      %v1172 = vpop.f32.mrf.mxu0
      %v1173 = vpop.f32.mrf.mxu0
      %v1174 = vpop.f32.mrf.mxu0
      %1175 = vdwg.mxu0
      %v1177 = vsel %vm974, %v1008, 0
      %v1180 = vsel %vm974, %v1009, 0
      %v1183 = vsel %vm1124, %v913, 0
      %1185 = vmatprep.subr.bf16.mxu0 0
      %1186 = vmatpush1.bf16.msra.mxu0 0
      %1187 = vmatprep.subr.bf16.mxu0 0
      %1188 = vmatpush1.bf16.msra.mxu0 0
      %1189 = vmatprep.subr.bf16.mxu0 0
      %1190 = vmatpush1.bf16.msra.mxu0 0
      %1191 = vmatprep.subr.bf16.mxu0 0
      %1192 = vmatpush1.bf16.msra.mxu0 0
      %1193 = vmatprep.subr.bf16.mxu0 0
      %1194 = vmatpush1.bf16.msra.mxu0 0
      %1195 = vmatprep.subr.bf16.mxu0 0
      %1196 = vmatpush1.bf16.msra.mxu0 0
      %1197 = vmatprep.subr.bf16.mxu0 0
      %1198 = vmatpush1.bf16.msra.mxu0 %v1183
      %1199 = vmatprep.subr.bf16.mxu0 0
      %1200 = vmatpush1.bf16.msra.mxu0 %v912
      %1201 = vmatprep.subr.bf16.mxu0 0
      %1202 = vmatpush2.bf16.msra.mxu0 0
      %1203 = vmatprep.subr.bf16.mxu0 0
      %1204 = vmatpush2.bf16.msra.mxu0 0
      %1205 = vmatprep.subr.bf16.mxu0 0
      %1206 = vmatpush2.bf16.msra.mxu0 0
      %1207 = vmatprep.subr.bf16.mxu0 0
      %1208 = vmatpush2.bf16.msra.mxu0 0
      %1209 = vmatprep.subr.bf16.mxu0 0
      %1210 = vmatpush2.bf16.msra.mxu0 0
      %1211 = vmatprep.subr.bf16.mxu0 0
      %1212 = vmatpush2.bf16.msra.mxu0 0
      %1213 = vmatprep.subr.bf16.mxu0 0
      %1214 = vmatpush2.bf16.msra.mxu0 0
      %1215 = vmatprep.subr.bf16.mxu0 0
      %1216 = vmatpush2.bf16.msra.mxu0 0
      %1217 = vmatprep.mubr.bf16.mxu0 0
      %1218 = vmatmul.mubr.bf16.gmra.mxu0 %v1177
      %v1219 = vpop.f32.mrf.mxu0
      %v1220 = vadd.f32 %v1163, %v1219
      %v1221 = vpop.f32.mrf.mxu0
      %v1222 = vpop.f32.mrf.mxu0
      %v1223 = vadd.f32 %v1166, %v1222
      %v1224 = vpop.f32.mrf.mxu0
      %1225 = vmatprep.mubr.bf16.mxu0 0
      %1226 = vmatmul.mubr.bf16.gmra.mxu0 %v1180
      %v1227 = vpop.f32.mrf.mxu0
      %v1228 = vadd.f32 %v1171, %v1227
      %v1229 = vpop.f32.mrf.mxu0
      %v1230 = vpop.f32.mrf.mxu0
      %v1231 = vpop.f32.mrf.mxu0
      %1232 = vdwg.mxu0
      %1233 = vrot.lane.b32.xlu0 %v846, 64
      %v1234 = vpop.permute.xlu0 %1233
      %1235 = vrot.lane.b32.xlu0 %v847, 64
      %v1236 = vpop.permute.xlu0 %1235
      %v1238 = vsel %vm715, %v1234, 0
      %v1241 = vsel %vm715, %v1236, 0
      %1243 = vmatprep.subr.bf16.mxu0 0
      %1244 = vmatpush1.bf16.xpose.msra.mxu0 0
      %1245 = vmatprep.subr.bf16.mxu0 0
      %1246 = vmatpush1.bf16.xpose.msra.mxu0 0
      %1247 = vmatprep.subr.bf16.mxu0 0
      %1248 = vmatpush1.bf16.xpose.msra.mxu0 0
      %1249 = vmatprep.subr.bf16.mxu0 0
      %1250 = vmatpush1.bf16.xpose.msra.mxu0 0
      %1251 = vmatprep.subr.bf16.mxu0 0
      %1252 = vmatpush1.bf16.xpose.msra.mxu0 0
      %1253 = vmatprep.subr.bf16.mxu0 0
      %1254 = vmatpush1.bf16.xpose.msra.mxu0 0
      %1255 = vmatprep.subr.bf16.mxu0 0
      %1256 = vmatpush1.bf16.xpose.msra.mxu0 %v796
      %1257 = vmatprep.subr.bf16.mxu0 0
      %1258 = vmatpush1.bf16.xpose.msra.mxu0 %v793
      %1259 = vmatprep.subr.bf16.mxu0 0
      %1260 = vmatpush2.bf16.xpose.msra.mxu0 0
      %1261 = vmatprep.subr.bf16.mxu0 0
      %1262 = vmatpush2.bf16.xpose.msra.mxu0 0
      %1263 = vmatprep.subr.bf16.mxu0 0
      %1264 = vmatpush2.bf16.xpose.msra.mxu0 0
      %1265 = vmatprep.subr.bf16.mxu0 0
      %1266 = vmatpush2.bf16.xpose.msra.mxu0 0
      %1267 = vmatprep.subr.bf16.mxu0 0
      %1268 = vmatpush2.bf16.xpose.msra.mxu0 0
      %1269 = vmatprep.subr.bf16.mxu0 0
      %1270 = vmatpush2.bf16.xpose.msra.mxu0 0
      %1271 = vmatprep.subr.bf16.mxu0 0
      %1272 = vmatpush2.bf16.xpose.msra.mxu0 0
      %1273 = vmatprep.subr.bf16.mxu0 0
      %1274 = vmatpush2.bf16.xpose.msra.mxu0 0
      %1275 = vmatprep.mubr.bf16.mxu0 0
      %1276 = vmatmul.mubr.bf16.gmra.mxu0 %v1238
      %v1277 = vpop.f32.mrf.mxu0
      %v1278 = vadd.f32 0.0, %v1277
      %v1279 = vpop.f32.mrf.mxu0
      %v1280 = vpop.f32.mrf.mxu0
      %v1281 = vadd.f32 0.0, %v1280
      %v1282 = vpop.f32.mrf.mxu0
      %1283 = vmatprep.mubr.bf16.mxu0 0
      %1284 = vmatmul.mubr.bf16.gmra.mxu0 %v1241
      %v1285 = vpop.f32.mrf.mxu0
      %v1286 = vadd.f32 0.0, %v1285
      %v1287 = vpop.f32.mrf.mxu0
      %v1288 = vpop.f32.mrf.mxu0
      %v1289 = vpop.f32.mrf.mxu0
      %1290 = vdwg.mxu0
      %v1291 = vmul.f32 %v1278, 0.35355338
      %v1292 = vmul.f32 %v1281, 0.35355338
      %v1293 = vmul.f32 %v1286, 0.35355338
      %v1294 = vadd.f32 %v1291, %v606
      %v1295 = vadd.f32 %v1292, %v607
      %v1296 = vadd.f32 %v1293, %v608
      %v1297 = vsel %vm974, %v1294, -inf
      %1298 = vmax.xlane.f32.xlu0 %v1297
      %v1299 = vpop.xlane.xlu0 %1298
      %v1300 = vsel %vm974, %v1295, -inf
      %1301 = vmax.xlane.f32.xlu0 %v1300
      %v1302 = vpop.xlane.xlu0 %1301
      %v1303 = vsel %vm974, %v1296, -inf
      %1304 = vmax.xlane.f32.xlu0 %v1303
      %v1305 = vpop.xlane.xlu0 %1304
      %v1306 = vsub.f32 %v1294, %v1299
      %v1307 = vsub.f32 %v1295, %v1302
      %v1308 = vsub.f32 %v1296, %v1305
      %v1309 = vmul.f32 %v1306, 1.442695
      %v1310 = vpow.pop %v1309
      %v1311 = vmul.f32 %v1307, 1.442695
      %v1312 = vpow.pop %v1311
      %v1313 = vmul.f32 %v1308, 1.442695
      %v1314 = vpow.pop %v1313
      %v1315 = vsel %vm974, %v1310, 0.0
      %1316 = vadd.xlane.f32.xlu0 %v1315
      %v1317 = vpop.xlane.xlu0 %1316
      %v1318 = vsel %vm974, %v1312, 0.0
      %1319 = vadd.xlane.f32.xlu0 %v1318
      %v1320 = vpop.xlane.xlu0 %1319
      %v1321 = vsel %vm974, %v1314, 0.0
      %1322 = vadd.xlane.f32.xlu0 %v1321
      %v1323 = vpop.xlane.xlu0 %1322
      %v1324 = vrcp.pop %v1317
      %v1325 = vrcp.pop %v1320
      %v1326 = vrcp.pop %v1323
      %v1327 = vmul.f32 %v1310, %v1324
      %v1328 = vmul.f32 %v1312, %v1325
      %v1329 = vmul.f32 %v1314, %v1326
      %v1330 = vpack.c.bf16 %v1328, %v1327
      %v1331 = vpack.c.bf16 %v1329, %v1329
      %1332 = vrot.lane.b32.xlu0 %v912, 64
      %v1333 = vpop.permute.xlu0 %1332
      %1334 = vrot.lane.b32.xlu0 %v913, 64
      %v1335 = vpop.permute.xlu0 %1334
      %v1338 = vsel %vm974, %v1330, 0
      %v1341 = vsel %vm974, %v1331, 0
      %v1344 = vsel %vm1124, %v1335, 0
      %1346 = vmatprep.subr.bf16.mxu0 0
      %1347 = vmatpush1.bf16.msra.mxu0 0
      %1348 = vmatprep.subr.bf16.mxu0 0
      %1349 = vmatpush1.bf16.msra.mxu0 0
      %1350 = vmatprep.subr.bf16.mxu0 0
      %1351 = vmatpush1.bf16.msra.mxu0 0
      %1352 = vmatprep.subr.bf16.mxu0 0
      %1353 = vmatpush1.bf16.msra.mxu0 0
      %1354 = vmatprep.subr.bf16.mxu0 0
      %1355 = vmatpush1.bf16.msra.mxu0 0
      %1356 = vmatprep.subr.bf16.mxu0 0
      %1357 = vmatpush1.bf16.msra.mxu0 0
      %1358 = vmatprep.subr.bf16.mxu0 0
      %1359 = vmatpush1.bf16.msra.mxu0 %v1344
      %1360 = vmatprep.subr.bf16.mxu0 0
      %1361 = vmatpush1.bf16.msra.mxu0 %v1333
      %1362 = vmatprep.subr.bf16.mxu0 0
      %1363 = vmatpush2.bf16.msra.mxu0 0
      %1364 = vmatprep.subr.bf16.mxu0 0
      %1365 = vmatpush2.bf16.msra.mxu0 0
      %1366 = vmatprep.subr.bf16.mxu0 0
      %1367 = vmatpush2.bf16.msra.mxu0 0
      %1368 = vmatprep.subr.bf16.mxu0 0
      %1369 = vmatpush2.bf16.msra.mxu0 0
      %1370 = vmatprep.subr.bf16.mxu0 0
      %1371 = vmatpush2.bf16.msra.mxu0 0
      %1372 = vmatprep.subr.bf16.mxu0 0
      %1373 = vmatpush2.bf16.msra.mxu0 0
      %1374 = vmatprep.subr.bf16.mxu0 0
      %1375 = vmatpush2.bf16.msra.mxu0 0
      %1376 = vmatprep.subr.bf16.mxu0 0
      %1377 = vmatpush2.bf16.msra.mxu0 0
      %1378 = vmatprep.mubr.bf16.mxu0 0
      %1379 = vmatmul.mubr.bf16.gmra.mxu0 %v1338
      %v1380 = vpop.f32.mrf.mxu0
      %v1381 = vadd.f32 0.0, %v1380
      %v1382 = vpop.f32.mrf.mxu0
      %v1383 = vpop.f32.mrf.mxu0
      %v1384 = vadd.f32 0.0, %v1383
      %v1385 = vpop.f32.mrf.mxu0
      %1386 = vmatprep.mubr.bf16.mxu0 0
      %1387 = vmatmul.mubr.bf16.gmra.mxu0 %v1341
      %v1388 = vpop.f32.mrf.mxu0
      %v1389 = vadd.f32 0.0, %v1388
      %v1390 = vpop.f32.mrf.mxu0
      %v1391 = vpop.f32.mrf.mxu0
      %v1392 = vpop.f32.mrf.mxu0
      %1393 = vdwg.mxu0
      %v1394 = vadd.f32 %v1220, %v1381
      %v1395 = vadd.f32 %v1223, %v1384
      %v1396 = vadd.f32 %v1228, %v1389
      %1397 = vrot.lane.b32.xlu0 %v846, 32
      %v1398 = vpop.permute.xlu0 %1397
      %1399 = vrot.lane.b32.xlu0 %v847, 32
      %v1400 = vpop.permute.xlu0 %1399
      %v1402 = vsel %vm715, %v1398, 0
      %v1405 = vsel %vm715, %v1400, 0
      %1407 = vmatprep.subr.bf16.mxu0 0
      %1408 = vmatpush1.bf16.xpose.msra.mxu0 0
      %1409 = vmatprep.subr.bf16.mxu0 0
      %1410 = vmatpush1.bf16.xpose.msra.mxu0 0
      %1411 = vmatprep.subr.bf16.mxu0 0
      %1412 = vmatpush1.bf16.xpose.msra.mxu0 0
      %1413 = vmatprep.subr.bf16.mxu0 0
      %1414 = vmatpush1.bf16.xpose.msra.mxu0 0
      %1415 = vmatprep.subr.bf16.mxu0 0
      %1416 = vmatpush1.bf16.xpose.msra.mxu0 0
      %1417 = vmatprep.subr.bf16.mxu0 0
      %1418 = vmatpush1.bf16.xpose.msra.mxu0 0
      %1419 = vmatprep.subr.bf16.mxu0 0
      %1420 = vmatpush1.bf16.xpose.msra.mxu0 %v796
      %1421 = vmatprep.subr.bf16.mxu0 0
      %1422 = vmatpush1.bf16.xpose.msra.mxu0 %v793
      %1423 = vmatprep.subr.bf16.mxu0 0
      %1424 = vmatpush2.bf16.xpose.msra.mxu0 0
      %1425 = vmatprep.subr.bf16.mxu0 0
      %1426 = vmatpush2.bf16.xpose.msra.mxu0 0
      %1427 = vmatprep.subr.bf16.mxu0 0
      %1428 = vmatpush2.bf16.xpose.msra.mxu0 0
      %1429 = vmatprep.subr.bf16.mxu0 0
      %1430 = vmatpush2.bf16.xpose.msra.mxu0 0
      %1431 = vmatprep.subr.bf16.mxu0 0
      %1432 = vmatpush2.bf16.xpose.msra.mxu0 0
      %1433 = vmatprep.subr.bf16.mxu0 0
      %1434 = vmatpush2.bf16.xpose.msra.mxu0 0
      %1435 = vmatprep.subr.bf16.mxu0 0
      %1436 = vmatpush2.bf16.xpose.msra.mxu0 0
      %1437 = vmatprep.subr.bf16.mxu0 0
      %1438 = vmatpush2.bf16.xpose.msra.mxu0 0
      %1439 = vmatprep.mubr.bf16.mxu0 0
      %1440 = vmatmul.mubr.bf16.gmra.mxu0 %v1402
      %v1441 = vpop.f32.mrf.mxu0
      %v1442 = vadd.f32 0.0, %v1441
      %v1443 = vpop.f32.mrf.mxu0
      %v1444 = vpop.f32.mrf.mxu0
      %v1445 = vadd.f32 0.0, %v1444
      %v1446 = vpop.f32.mrf.mxu0
      %1447 = vmatprep.mubr.bf16.mxu0 0
      %1448 = vmatmul.mubr.bf16.gmra.mxu0 %v1405
      %v1449 = vpop.f32.mrf.mxu0
      %v1450 = vadd.f32 0.0, %v1449
      %v1451 = vpop.f32.mrf.mxu0
      %v1452 = vpop.f32.mrf.mxu0
      %v1453 = vpop.f32.mrf.mxu0
      %1454 = vdwg.mxu0
      %v1455 = vmul.f32 %v1442, 0.35355338
      %v1456 = vmul.f32 %v1445, 0.35355338
      %v1457 = vmul.f32 %v1450, 0.35355338
      %v1458 = vadd.f32 %v1455, %v606
      %v1459 = vadd.f32 %v1456, %v607
      %v1460 = vadd.f32 %v1457, %v608
      %v1461 = vsel %vm974, %v1458, -inf
      %1462 = vmax.xlane.f32.xlu0 %v1461
      %v1463 = vpop.xlane.xlu0 %1462
      %v1464 = vsel %vm974, %v1459, -inf
      %1465 = vmax.xlane.f32.xlu0 %v1464
      %v1466 = vpop.xlane.xlu0 %1465
      %v1467 = vsel %vm974, %v1460, -inf
      %1468 = vmax.xlane.f32.xlu0 %v1467
      %v1469 = vpop.xlane.xlu0 %1468
      %v1470 = vsub.f32 %v1458, %v1463
      %v1471 = vsub.f32 %v1459, %v1466
      %v1472 = vsub.f32 %v1460, %v1469
      %v1473 = vmul.f32 %v1470, 1.442695
      %v1474 = vpow.pop %v1473
      %v1475 = vmul.f32 %v1471, 1.442695
      %v1476 = vpow.pop %v1475
      %v1477 = vmul.f32 %v1472, 1.442695
      %v1478 = vpow.pop %v1477
      %v1479 = vsel %vm974, %v1474, 0.0
      %1480 = vadd.xlane.f32.xlu0 %v1479
      %v1481 = vpop.xlane.xlu0 %1480
      %v1482 = vsel %vm974, %v1476, 0.0
      %1483 = vadd.xlane.f32.xlu0 %v1482
      %v1484 = vpop.xlane.xlu0 %1483
      %v1485 = vsel %vm974, %v1478, 0.0
      %1486 = vadd.xlane.f32.xlu0 %v1485
      %v1487 = vpop.xlane.xlu0 %1486
      %v1488 = vrcp.pop %v1481
      %v1489 = vrcp.pop %v1484
      %v1490 = vrcp.pop %v1487
      %v1491 = vmul.f32 %v1474, %v1488
      %v1492 = vmul.f32 %v1476, %v1489
      %v1493 = vmul.f32 %v1478, %v1490
      %v1494 = vpack.c.bf16 %v1492, %v1491
      %v1495 = vpack.c.bf16 %v1493, %v1493
      %1496 = vrot.lane.b32.xlu0 %v912, 32
      %v1497 = vpop.permute.xlu0 %1496
      %1498 = vrot.lane.b32.xlu0 %v913, 32
      %v1499 = vpop.permute.xlu0 %1498
      %v1502 = vsel %vm974, %v1494, 0
      %v1505 = vsel %vm974, %v1495, 0
      %v1508 = vsel %vm1124, %v1499, 0
      %1510 = vmatprep.subr.bf16.mxu0 0
      %1511 = vmatpush1.bf16.msra.mxu0 0
      %1512 = vmatprep.subr.bf16.mxu0 0
      %1513 = vmatpush1.bf16.msra.mxu0 0
      %1514 = vmatprep.subr.bf16.mxu0 0
      %1515 = vmatpush1.bf16.msra.mxu0 0
      %1516 = vmatprep.subr.bf16.mxu0 0
      %1517 = vmatpush1.bf16.msra.mxu0 0
      %1518 = vmatprep.subr.bf16.mxu0 0
      %1519 = vmatpush1.bf16.msra.mxu0 0
      %1520 = vmatprep.subr.bf16.mxu0 0
      %1521 = vmatpush1.bf16.msra.mxu0 0
      %1522 = vmatprep.subr.bf16.mxu0 0
      %1523 = vmatpush1.bf16.msra.mxu0 %v1508
      %1524 = vmatprep.subr.bf16.mxu0 0
      %1525 = vmatpush1.bf16.msra.mxu0 %v1497
      %1526 = vmatprep.subr.bf16.mxu0 0
      %1527 = vmatpush2.bf16.msra.mxu0 0
      %1528 = vmatprep.subr.bf16.mxu0 0
      %1529 = vmatpush2.bf16.msra.mxu0 0
      %1530 = vmatprep.subr.bf16.mxu0 0
      %1531 = vmatpush2.bf16.msra.mxu0 0
      %1532 = vmatprep.subr.bf16.mxu0 0
      %1533 = vmatpush2.bf16.msra.mxu0 0
      %1534 = vmatprep.subr.bf16.mxu0 0
      %1535 = vmatpush2.bf16.msra.mxu0 0
      %1536 = vmatprep.subr.bf16.mxu0 0
      %1537 = vmatpush2.bf16.msra.mxu0 0
      %1538 = vmatprep.subr.bf16.mxu0 0
      %1539 = vmatpush2.bf16.msra.mxu0 0
      %1540 = vmatprep.subr.bf16.mxu0 0
      %1541 = vmatpush2.bf16.msra.mxu0 0
      %1542 = vmatprep.mubr.bf16.mxu0 0
      %1543 = vmatmul.mubr.bf16.gmra.mxu0 %v1502
      %v1544 = vpop.f32.mrf.mxu0
      %v1545 = vadd.f32 0.0, %v1544
      %v1546 = vpop.f32.mrf.mxu0
      %v1547 = vpop.f32.mrf.mxu0
      %v1548 = vadd.f32 0.0, %v1547
      %v1549 = vpop.f32.mrf.mxu0
      %1550 = vmatprep.mubr.bf16.mxu0 0
      %1551 = vmatmul.mubr.bf16.gmra.mxu0 %v1505
      %v1552 = vpop.f32.mrf.mxu0
      %v1553 = vadd.f32 0.0, %v1552
      %v1554 = vpop.f32.mrf.mxu0
      %v1555 = vpop.f32.mrf.mxu0
      %v1556 = vpop.f32.mrf.mxu0
      %1557 = vdwg.mxu0
      %v1558 = vadd.f32 %v1394, %v1545
      %v1559 = vadd.f32 %v1395, %v1548
      %v1560 = vadd.f32 %v1396, %v1553
      %v1561 = vadd.f32 %v710, %v1558
      %v1562 = vadd.f32 %v711, %v1559
      %v1563 = vadd.f32 %v712, %v1560
      %v1564 = vld [vmem:[%s7] sm:$0x1]
      %v1565 = vld [vmem:[%s8] sm:$0x1]
      %v1566 = vsel %vm715, %v1561, 0.0
      %1567 = vadd.xlane.f32.xlu0 %v1566
      %v1568 = vpop.xlane.xlu0 %1567
      %v1569 = vsel %vm715, %v1562, 0.0
      %1570 = vadd.xlane.f32.xlu0 %v1569
      %v1571 = vpop.xlane.xlu0 %1570
      %v1572 = vsel %vm715, %v1563, 0.0
      %1573 = vadd.xlane.f32.xlu0 %v1572
      %v1574 = vpop.xlane.xlu0 %1573
      %v1575 = vmul.f32 %v1568, %v725
      %v1576 = vmul.f32 %v1571, %v725
      %v1577 = vmul.f32 %v1574, %v725
      %v1578 = vsub.f32 %v1561, %v1575
      %v1579 = vsub.f32 %v1562, %v1576
      %v1580 = vsub.f32 %v1563, %v1577
      %v1581 = vmul.f32 %v1578, %v1578
      %v1582 = vmul.f32 %v1579, %v1579
      %v1583 = vmul.f32 %v1580, %v1580
      %v1584 = vsel %vm715, %v1581, 0.0
      %1585 = vadd.xlane.f32.xlu0 %v1584
      %v1586 = vpop.xlane.xlu0 %1585
      %v1587 = vsel %vm715, %v1582, 0.0
      %1588 = vadd.xlane.f32.xlu0 %v1587
      %v1589 = vpop.xlane.xlu0 %1588
      %v1590 = vsel %vm715, %v1583, 0.0
      %1591 = vadd.xlane.f32.xlu0 %v1590
      %v1592 = vpop.xlane.xlu0 %1591
      %v1593 = vmul.f32 %v1586, %v725
      %v1594 = vmul.f32 %v1589, %v725
      %v1595 = vmul.f32 %v1592, %v725
      %v1596 = vadd.f32 %v1593, 1e-05
      %v1597 = vadd.f32 %v1594, 1e-05
      %v1598 = vadd.f32 %v1595, 1e-05
      %v1599 = vrsqrt.pop %v1596
      %v1600 = vrsqrt.pop %v1597
      %v1601 = vrsqrt.pop %v1598
      %v1602 = vmul.f32 %v1578, %v1599
      %v1603 = vmul.f32 %v1579, %v1600
      %v1604 = vmul.f32 %v1580, %v1601
      %v1606 = vlaneseq
      %v1607 = vshrl.u32 %v1606, 7
      %v1608 = vsub.s32 0, %v1607
      %v1609 = vrot.slane %v1564, %v1608
      %v1611 = vmul.f32 %v1602, %v1609
      %v1612 = vmul.f32 %v1603, %v1609
      %v1613 = vmul.f32 %v1604, %v1609
      %v1615 = vlaneseq
      %v1616 = vshrl.u32 %v1615, 7
      %v1617 = vsub.s32 0, %v1616
      %v1618 = vrot.slane %v1565, %v1617
      %v1620 = vadd.f32 %v1611, %v1618
      %v1621 = vadd.f32 %v1612, %v1618
      %v1622 = vadd.f32 %v1613, %v1618
      %v1623 = vpack.c.bf16 %v1621, %v1620
      %v1624 = vpack.c.bf16 %v1622, %v1622
      %v1625 = vld [vmem:[%s9] sm:$0xf]
      %v1626 = vld [vmem:[%s9 + $0x4] sm:$0xf]
      %v1627 = vld [vmem:[%s9 + $0x8] sm:$0xf]
      %v1628 = vld [vmem:[%s9 + $0xc] sm:$0xf]
      %v1629 = vld [vmem:[%s10] sm:$0x1]
      %v1631 = vlaneseq
      %v1632 = vshrl.u32 %v1631, 7
      %v1633 = vsub.s32 0, %v1632
      %v1634 = vrot.slane %v1629, %v1633
      %v1640 = vunpack.c.l.b16 %v1625
      %v1641 = vunpack.c.l.b16 %v1626
      %v1642 = vunpack.c.l.b16 %v1627
      %v1643 = vunpack.c.l.b16 %v1628
      %v1644 = vpack.c.b16 %v1641, %v1640
      %v1645 = vpack.c.b16 %v1643, %v1642
      %v1649 = vsel %vm715, %v1623, 0
      %v1652 = vsel %vm715, %v1624, 0
      %1654 = vmatprep.subr.bf16.mxu0 0
      %1655 = vmatpush1.bf16.msra.mxu0 0
      %1656 = vmatprep.subr.bf16.mxu0 0
      %1657 = vmatpush1.bf16.msra.mxu0 0
      %1658 = vmatprep.subr.bf16.mxu0 0
      %1659 = vmatpush1.bf16.msra.mxu0 0
      %1660 = vmatprep.subr.bf16.mxu0 0
      %1661 = vmatpush1.bf16.msra.mxu0 0
      %1662 = vmatprep.subr.bf16.mxu0 0
      %1663 = vmatpush1.bf16.msra.mxu0 0
      %1664 = vmatprep.subr.bf16.mxu0 0
      %1665 = vmatpush1.bf16.msra.mxu0 0
      %1666 = vmatprep.subr.bf16.mxu0 0
      %1667 = vmatpush1.bf16.msra.mxu0 %v1645
      %1668 = vmatprep.subr.bf16.mxu0 0
      %1669 = vmatpush1.bf16.msra.mxu0 %v1644
      %1670 = vmatprep.subr.bf16.mxu0 0
      %1671 = vmatpush2.bf16.msra.mxu0 0
      %1672 = vmatprep.subr.bf16.mxu0 0
      %1673 = vmatpush2.bf16.msra.mxu0 0
      %1674 = vmatprep.subr.bf16.mxu0 0
      %1675 = vmatpush2.bf16.msra.mxu0 0
      %1676 = vmatprep.subr.bf16.mxu0 0
      %1677 = vmatpush2.bf16.msra.mxu0 0
      %1678 = vmatprep.subr.bf16.mxu0 0
      %1679 = vmatpush2.bf16.msra.mxu0 0
      %1680 = vmatprep.subr.bf16.mxu0 0
      %1681 = vmatpush2.bf16.msra.mxu0 0
      %1682 = vmatprep.subr.bf16.mxu0 0
      %1683 = vmatpush2.bf16.msra.mxu0 0
      %1684 = vmatprep.subr.bf16.mxu0 0
      %1685 = vmatpush2.bf16.msra.mxu0 0
      %1686 = vmatprep.mubr.bf16.mxu0 0
      %1687 = vmatmul.mubr.bf16.gmra.mxu0 %v1649
      %v1688 = vpop.f32.mrf.mxu0
      %v1689 = vadd.f32 %v1634, %v1688
      %v1690 = vpop.f32.mrf.mxu0
      %v1691 = vpop.f32.mrf.mxu0
      %v1692 = vadd.f32 %v1634, %v1691
      %v1693 = vpop.f32.mrf.mxu0
      %1694 = vmatprep.mubr.bf16.mxu0 0
      %1695 = vmatmul.mubr.bf16.gmra.mxu0 %v1652
      %v1696 = vpop.f32.mrf.mxu0
      %v1697 = vadd.f32 %v1634, %v1696
      %v1698 = vpop.f32.mrf.mxu0
      %v1699 = vpop.f32.mrf.mxu0
      %v1700 = vpop.f32.mrf.mxu0
      %1701 = vdwg.mxu0
      %v1702 = vmul.f32 %v1689, 0.5
      %v1703 = vmul.f32 %v1692, 0.5
      %v1704 = vmul.f32 %v1697, 0.5
      %v1705 = vmul.f32 %v1689, 0.70710677
      %v1706 = vmul.f32 %v1692, 0.70710677
      %v1707 = vmul.f32 %v1697, 0.70710677
      %v1708 = verf.f32.pop %v1705
      %v1709 = verf.f32.pop %v1706
      %v1710 = verf.f32.pop %v1707
      %v1711 = vadd.f32 %v1708, 1.0
      %v1712 = vadd.f32 %v1709, 1.0
      %v1713 = vadd.f32 %v1710, 1.0
      %v1714 = vmul.f32 %v1702, %v1711
      %v1715 = vmul.f32 %v1703, %v1712
      %v1716 = vmul.f32 %v1704, %v1713
      %v1717 = vpack.c.bf16 %v1715, %v1714
      %v1718 = vpack.c.bf16 %v1716, %v1716
      %v1719 = vld [vmem:[%s11] sm:$0xf]
      %v1720 = vld [vmem:[%s11 + $0x4] sm:$0xf]
      %v1721 = vld [vmem:[%s11 + $0x8] sm:$0xf]
      %v1722 = vld [vmem:[%s11 + $0xc] sm:$0xf]
      %v1723 = vld [vmem:[%s11 + $0x10] sm:$0xf]
      %v1724 = vld [vmem:[%s11 + $0x14] sm:$0xf]
      %v1725 = vld [vmem:[%s11 + $0x18] sm:$0xf]
      %v1726 = vld [vmem:[%s11 + $0x1c] sm:$0xf]
      %v1727 = vld [vmem:[%s12] sm:$0x1]
      %v1729 = vlaneseq
      %v1730 = vshrl.u32 %v1729, 7
      %v1731 = vsub.s32 0, %v1730
      %v1732 = vrot.slane %v1727, %v1731
      %v1742 = vunpack.c.l.b16 %v1719
      %v1743 = vunpack.c.l.b16 %v1720
      %v1744 = vunpack.c.l.b16 %v1721
      %v1745 = vunpack.c.l.b16 %v1722
      %v1746 = vunpack.c.l.b16 %v1723
      %v1747 = vunpack.c.l.b16 %v1724
      %v1748 = vunpack.c.l.b16 %v1725
      %v1749 = vunpack.c.l.b16 %v1726
      %v1750 = vpack.c.b16 %v1743, %v1742
      %v1751 = vpack.c.b16 %v1745, %v1744
      %v1752 = vpack.c.b16 %v1747, %v1746
      %v1753 = vpack.c.b16 %v1749, %v1748
      %v1759 = vsel %vm655, %v1717, 0
      %v1762 = vsel %vm655, %v1718, 0
      %1764 = vmatprep.subr.bf16.mxu0 0
      %1765 = vmatpush1.bf16.msra.mxu0 0
      %1766 = vmatprep.subr.bf16.mxu0 0
      %1767 = vmatpush1.bf16.msra.mxu0 0
      %1768 = vmatprep.subr.bf16.mxu0 0
      %1769 = vmatpush1.bf16.msra.mxu0 0
      %1770 = vmatprep.subr.bf16.mxu0 0
      %1771 = vmatpush1.bf16.msra.mxu0 0
      %1772 = vmatprep.subr.bf16.mxu0 0
      %1773 = vmatpush1.bf16.msra.mxu0 %v1753
      %1774 = vmatprep.subr.bf16.mxu0 0
      %1775 = vmatpush1.bf16.msra.mxu0 %v1752
      %1776 = vmatprep.subr.bf16.mxu0 0
      %1777 = vmatpush1.bf16.msra.mxu0 %v1751
      %1778 = vmatprep.subr.bf16.mxu0 0
      %1779 = vmatpush1.bf16.msra.mxu0 %v1750
      %1780 = vmatprep.subr.bf16.mxu0 0
      %1781 = vmatpush2.bf16.msra.mxu0 0
      %1782 = vmatprep.subr.bf16.mxu0 0
      %1783 = vmatpush2.bf16.msra.mxu0 0
      %1784 = vmatprep.subr.bf16.mxu0 0
      %1785 = vmatpush2.bf16.msra.mxu0 0
      %1786 = vmatprep.subr.bf16.mxu0 0
      %1787 = vmatpush2.bf16.msra.mxu0 0
      %1788 = vmatprep.subr.bf16.mxu0 0
      %1789 = vmatpush2.bf16.msra.mxu0 0
      %1790 = vmatprep.subr.bf16.mxu0 0
      %1791 = vmatpush2.bf16.msra.mxu0 0
      %1792 = vmatprep.subr.bf16.mxu0 0
      %1793 = vmatpush2.bf16.msra.mxu0 0
      %1794 = vmatprep.subr.bf16.mxu0 0
      %1795 = vmatpush2.bf16.msra.mxu0 0
      %1796 = vmatprep.mubr.bf16.mxu0 0
      %1797 = vmatmul.mubr.bf16.gmra.mxu0 %v1759
      %v1798 = vpop.f32.mrf.mxu0
      %v1799 = vadd.f32 %v1732, %v1798
      %v1800 = vpop.f32.mrf.mxu0
      %v1801 = vpop.f32.mrf.mxu0
      %v1802 = vadd.f32 %v1732, %v1801
      %v1803 = vpop.f32.mrf.mxu0
      %1804 = vmatprep.mubr.bf16.mxu0 0
      %1805 = vmatmul.mubr.bf16.gmra.mxu0 %v1762
      %v1806 = vpop.f32.mrf.mxu0
      %v1807 = vadd.f32 %v1732, %v1806
      %v1808 = vpop.f32.mrf.mxu0
      %v1809 = vpop.f32.mrf.mxu0
      %v1810 = vpop.f32.mrf.mxu0
      %1811 = vdwg.mxu0
      %v1812 = vadd.f32 %v1561, %v1799
      %v1813 = vadd.f32 %v1562, %v1802
      %v1814 = vadd.f32 %v1563, %v1807
      %s1815 = scalar_lea.vmem %s5, 1
      %v1816 = vld [vmem:[%s1815] sm:$0x1]
      %s1817 = scalar_lea.vmem %s6, 1
      %v1818 = vld [vmem:[%s1817] sm:$0x1]
      %v1819 = vsel %vm715, %v1812, 0.0
      %1820 = vadd.xlane.f32.xlu0 %v1819
      %v1821 = vpop.xlane.xlu0 %1820
      %v1822 = vsel %vm715, %v1813, 0.0
      %1823 = vadd.xlane.f32.xlu0 %v1822
      %v1824 = vpop.xlane.xlu0 %1823
      %v1825 = vsel %vm715, %v1814, 0.0
      %1826 = vadd.xlane.f32.xlu0 %v1825
      %v1827 = vpop.xlane.xlu0 %1826
      %v1828 = vmul.f32 %v1821, %v725
      %v1829 = vmul.f32 %v1824, %v725
      %v1830 = vmul.f32 %v1827, %v725
      %v1831 = vsub.f32 %v1812, %v1828
      %v1832 = vsub.f32 %v1813, %v1829
      %v1833 = vsub.f32 %v1814, %v1830
      %v1834 = vmul.f32 %v1831, %v1831
      %v1835 = vmul.f32 %v1832, %v1832
      %v1836 = vmul.f32 %v1833, %v1833
      %v1837 = vsel %vm715, %v1834, 0.0
      %1838 = vadd.xlane.f32.xlu0 %v1837
      %v1839 = vpop.xlane.xlu0 %1838
      %v1840 = vsel %vm715, %v1835, 0.0
      %1841 = vadd.xlane.f32.xlu0 %v1840
      %v1842 = vpop.xlane.xlu0 %1841
      %v1843 = vsel %vm715, %v1836, 0.0
      %1844 = vadd.xlane.f32.xlu0 %v1843
      %v1845 = vpop.xlane.xlu0 %1844
      %v1846 = vmul.f32 %v1839, %v725
      %v1847 = vmul.f32 %v1842, %v725
      %v1848 = vmul.f32 %v1845, %v725
      %v1849 = vadd.f32 %v1846, 1e-05
      %v1850 = vadd.f32 %v1847, 1e-05
      %v1851 = vadd.f32 %v1848, 1e-05
      %v1852 = vrsqrt.pop %v1849
      %v1853 = vrsqrt.pop %v1850
      %v1854 = vrsqrt.pop %v1851
      %v1855 = vmul.f32 %v1831, %v1852
      %v1856 = vmul.f32 %v1832, %v1853
      %v1857 = vmul.f32 %v1833, %v1854
      %v1859 = vlaneseq
      %v1860 = vshrl.u32 %v1859, 7
      %v1861 = vsub.s32 0, %v1860
      %v1862 = vrot.slane %v1816, %v1861
      %v1864 = vmul.f32 %v1855, %v1862
      %v1865 = vmul.f32 %v1856, %v1862
      %v1866 = vmul.f32 %v1857, %v1862
      %v1868 = vlaneseq
      %v1869 = vshrl.u32 %v1868, 7
      %v1870 = vsub.s32 0, %v1869
      %v1871 = vrot.slane %v1818, %v1870
      %v1873 = vadd.f32 %v1864, %v1871
      %v1874 = vadd.f32 %v1865, %v1871
      %v1875 = vadd.f32 %v1866, %v1871
      %v1876 = vpack.c.bf16 %v1874, %v1873
      %v1877 = vpack.c.bf16 %v1875, %v1875
      %s1878 = scalar_lea.vmem %s3, 16
      %v1879 = vld [vmem:[%s1878] sm:$0xf]
      %v1880 = vld [vmem:[%s1878 + $0x4] sm:$0xf]
      %v1881 = vld [vmem:[%s1878 + $0x8] sm:$0xf]
      %v1882 = vld [vmem:[%s1878 + $0xc] sm:$0xf]
      %v1887 = vunpack.c.l.b16 %v1879
      %v1888 = vunpack.c.l.b16 %v1880
      %v1889 = vunpack.c.l.b16 %v1881
      %v1890 = vunpack.c.l.b16 %v1882
      %v1891 = vpack.c.b16 %v1888, %v1887
      %v1892 = vpack.c.b16 %v1890, %v1889
      %v1896 = vsel %vm715, %v1876, 0
      %v1899 = vsel %vm715, %v1877, 0
      %1901 = vmatprep.subr.bf16.mxu0 0
      %1902 = vmatpush1.bf16.msra.mxu0 0
      %1903 = vmatprep.subr.bf16.mxu0 0
      %1904 = vmatpush1.bf16.msra.mxu0 0
      %1905 = vmatprep.subr.bf16.mxu0 0
      %1906 = vmatpush1.bf16.msra.mxu0 0
      %1907 = vmatprep.subr.bf16.mxu0 0
      %1908 = vmatpush1.bf16.msra.mxu0 0
      %1909 = vmatprep.subr.bf16.mxu0 0
      %1910 = vmatpush1.bf16.msra.mxu0 0
      %1911 = vmatprep.subr.bf16.mxu0 0
      %1912 = vmatpush1.bf16.msra.mxu0 0
      %1913 = vmatprep.subr.bf16.mxu0 0
      %1914 = vmatpush1.bf16.msra.mxu0 %v1892
      %1915 = vmatprep.subr.bf16.mxu0 0
      %1916 = vmatpush1.bf16.msra.mxu0 %v1891
      %1917 = vmatprep.subr.bf16.mxu0 0
      %1918 = vmatpush2.bf16.msra.mxu0 0
      %1919 = vmatprep.subr.bf16.mxu0 0
      %1920 = vmatpush2.bf16.msra.mxu0 0
      %1921 = vmatprep.subr.bf16.mxu0 0
      %1922 = vmatpush2.bf16.msra.mxu0 0
      %1923 = vmatprep.subr.bf16.mxu0 0
      %1924 = vmatpush2.bf16.msra.mxu0 0
      %1925 = vmatprep.subr.bf16.mxu0 0
      %1926 = vmatpush2.bf16.msra.mxu0 0
      %1927 = vmatprep.subr.bf16.mxu0 0
      %1928 = vmatpush2.bf16.msra.mxu0 0
      %1929 = vmatprep.subr.bf16.mxu0 0
      %1930 = vmatpush2.bf16.msra.mxu0 0
      %1931 = vmatprep.subr.bf16.mxu0 0
      %1932 = vmatpush2.bf16.msra.mxu0 0
      %1933 = vmatprep.mubr.bf16.mxu0 0
      %1934 = vmatmul.mubr.bf16.gmra.mxu0 %v1896
      %v1935 = vpop.f32.mrf.mxu0
      %v1936 = vadd.f32 0.0, %v1935
      %v1937 = vpop.f32.mrf.mxu0
      %v1938 = vpop.f32.mrf.mxu0
      %v1939 = vadd.f32 0.0, %v1938
      %v1940 = vpop.f32.mrf.mxu0
      %1941 = vmatprep.mubr.bf16.mxu0 0
      %1942 = vmatmul.mubr.bf16.gmra.mxu0 %v1899
      %v1943 = vpop.f32.mrf.mxu0
      %v1944 = vadd.f32 0.0, %v1943
      %v1945 = vpop.f32.mrf.mxu0
      %v1946 = vpop.f32.mrf.mxu0
      %v1947 = vpop.f32.mrf.mxu0
      %1948 = vdwg.mxu0
      %v1949 = vpack.c.bf16 %v1939, %v1936
      %v1950 = vpack.c.bf16 %v1944, %v1944
      %s1951 = scalar_lea.vmem %s4, 16
      %v1952 = vld [vmem:[%s1951] sm:$0xf]
      %v1953 = vld [vmem:[%s1951 + $0x4] sm:$0xf]
      %v1954 = vld [vmem:[%s1951 + $0x8] sm:$0xf]
      %v1955 = vld [vmem:[%s1951 + $0xc] sm:$0xf]
      %v1960 = vunpack.c.l.b16 %v1952
      %v1961 = vunpack.c.l.b16 %v1953
      %v1962 = vunpack.c.l.b16 %v1954
      %v1963 = vunpack.c.l.b16 %v1955
      %v1964 = vpack.c.b16 %v1961, %v1960
      %v1965 = vpack.c.b16 %v1963, %v1962
      %1968 = vmatprep.subr.bf16.mxu0 0
      %1969 = vmatpush1.bf16.msra.mxu0 0
      %1970 = vmatprep.subr.bf16.mxu0 0
      %1971 = vmatpush1.bf16.msra.mxu0 0
      %1972 = vmatprep.subr.bf16.mxu0 0
      %1973 = vmatpush1.bf16.msra.mxu0 0
      %1974 = vmatprep.subr.bf16.mxu0 0
      %1975 = vmatpush1.bf16.msra.mxu0 0
      %1976 = vmatprep.subr.bf16.mxu0 0
      %1977 = vmatpush1.bf16.msra.mxu0 0
      %1978 = vmatprep.subr.bf16.mxu0 0
      %1979 = vmatpush1.bf16.msra.mxu0 0
      %1980 = vmatprep.subr.bf16.mxu0 0
      %1981 = vmatpush1.bf16.msra.mxu0 %v1965
      %1982 = vmatprep.subr.bf16.mxu0 0
      %1983 = vmatpush1.bf16.msra.mxu0 %v1964
      %1984 = vmatprep.subr.bf16.mxu0 0
      %1985 = vmatpush2.bf16.msra.mxu0 0
      %1986 = vmatprep.subr.bf16.mxu0 0
      %1987 = vmatpush2.bf16.msra.mxu0 0
      %1988 = vmatprep.subr.bf16.mxu0 0
      %1989 = vmatpush2.bf16.msra.mxu0 0
      %1990 = vmatprep.subr.bf16.mxu0 0
      %1991 = vmatpush2.bf16.msra.mxu0 0
      %1992 = vmatprep.subr.bf16.mxu0 0
      %1993 = vmatpush2.bf16.msra.mxu0 0
      %1994 = vmatprep.subr.bf16.mxu0 0
      %1995 = vmatpush2.bf16.msra.mxu0 0
      %1996 = vmatprep.subr.bf16.mxu0 0
      %1997 = vmatpush2.bf16.msra.mxu0 0
      %1998 = vmatprep.subr.bf16.mxu0 0
      %1999 = vmatpush2.bf16.msra.mxu0 0
      %2000 = vmatprep.mubr.bf16.mxu0 0
      %2001 = vmatmul.mubr.bf16.gmra.mxu0 %v1896
      %v2002 = vpop.f32.mrf.mxu0
      %v2003 = vadd.f32 0.0, %v2002
      %v2004 = vpop.f32.mrf.mxu0
      %v2005 = vpop.f32.mrf.mxu0
      %v2006 = vadd.f32 0.0, %v2005
      %v2007 = vpop.f32.mrf.mxu0
      %2008 = vmatprep.mubr.bf16.mxu0 0
      %2009 = vmatmul.mubr.bf16.gmra.mxu0 %v1899
      %v2010 = vpop.f32.mrf.mxu0
      %v2011 = vadd.f32 0.0, %v2010
      %v2012 = vpop.f32.mrf.mxu0
      %v2013 = vpop.f32.mrf.mxu0
      %v2014 = vpop.f32.mrf.mxu0
      %2015 = vdwg.mxu0
      %v2016 = vpack.c.bf16 %v2006, %v2003
      %v2017 = vpack.c.bf16 %v2011, %v2011
      %v2019 = vsel %vm715, %v1949, 0
      %v2022 = vsel %vm715, %v1950, 0
      %2024 = vmatprep.subr.bf16.mxu0 0
      %2025 = vmatpush1.bf16.xpose.msra.mxu0 0
      %2026 = vmatprep.subr.bf16.mxu0 0
      %2027 = vmatpush1.bf16.xpose.msra.mxu0 0
      %2028 = vmatprep.subr.bf16.mxu0 0
      %2029 = vmatpush1.bf16.xpose.msra.mxu0 0
      %2030 = vmatprep.subr.bf16.mxu0 0
      %2031 = vmatpush1.bf16.xpose.msra.mxu0 0
      %2032 = vmatprep.subr.bf16.mxu0 0
      %2033 = vmatpush1.bf16.xpose.msra.mxu0 0
      %2034 = vmatprep.subr.bf16.mxu0 0
      %2035 = vmatpush1.bf16.xpose.msra.mxu0 0
      %2036 = vmatprep.subr.bf16.mxu0 0
      %2037 = vmatpush1.bf16.xpose.msra.mxu0 %v1899
      %2038 = vmatprep.subr.bf16.mxu0 0
      %2039 = vmatpush1.bf16.xpose.msra.mxu0 %v1896
      %2040 = vmatprep.subr.bf16.mxu0 0
      %2041 = vmatpush2.bf16.xpose.msra.mxu0 0
      %2042 = vmatprep.subr.bf16.mxu0 0
      %2043 = vmatpush2.bf16.xpose.msra.mxu0 0
      %2044 = vmatprep.subr.bf16.mxu0 0
      %2045 = vmatpush2.bf16.xpose.msra.mxu0 0
      %2046 = vmatprep.subr.bf16.mxu0 0
      %2047 = vmatpush2.bf16.xpose.msra.mxu0 0
      %2048 = vmatprep.subr.bf16.mxu0 0
      %2049 = vmatpush2.bf16.xpose.msra.mxu0 0
      %2050 = vmatprep.subr.bf16.mxu0 0
      %2051 = vmatpush2.bf16.xpose.msra.mxu0 0
      %2052 = vmatprep.subr.bf16.mxu0 0
      %2053 = vmatpush2.bf16.xpose.msra.mxu0 0
      %2054 = vmatprep.subr.bf16.mxu0 0
      %2055 = vmatpush2.bf16.xpose.msra.mxu0 0
      %2056 = vmatprep.mubr.bf16.mxu0 0
      %2057 = vmatmul.mubr.bf16.gmra.mxu0 %v2019
      %v2058 = vpop.f32.mrf.mxu0
      %v2059 = vadd.f32 0.0, %v2058
      %v2060 = vpop.f32.mrf.mxu0
      %v2061 = vpop.f32.mrf.mxu0
      %v2062 = vadd.f32 0.0, %v2061
      %v2063 = vpop.f32.mrf.mxu0
      %2064 = vmatprep.mubr.bf16.mxu0 0
      %2065 = vmatmul.mubr.bf16.gmra.mxu0 %v2022
      %v2066 = vpop.f32.mrf.mxu0
      %v2067 = vadd.f32 0.0, %v2066
      %v2068 = vpop.f32.mrf.mxu0
      %v2069 = vpop.f32.mrf.mxu0
      %v2070 = vpop.f32.mrf.mxu0
      %2071 = vdwg.mxu0
      %v2072 = vmul.f32 %v2059, 0.35355338
      %v2073 = vmul.f32 %v2062, 0.35355338
      %v2074 = vmul.f32 %v2067, 0.35355338
      %v2075 = vadd.f32 %v2072, %v606
      %v2076 = vadd.f32 %v2073, %v607
      %v2077 = vadd.f32 %v2074, %v608
      %v2078 = vsel %vm974, %v2075, -inf
      %2079 = vmax.xlane.f32.xlu0 %v2078
      %v2080 = vpop.xlane.xlu0 %2079
      %v2081 = vsel %vm974, %v2076, -inf
      %2082 = vmax.xlane.f32.xlu0 %v2081
      %v2083 = vpop.xlane.xlu0 %2082
      %v2084 = vsel %vm974, %v2077, -inf
      %2085 = vmax.xlane.f32.xlu0 %v2084
      %v2086 = vpop.xlane.xlu0 %2085
      %v2087 = vsub.f32 %v2075, %v2080
      %v2088 = vsub.f32 %v2076, %v2083
      %v2089 = vsub.f32 %v2077, %v2086
      %v2090 = vmul.f32 %v2087, 1.442695
      %v2091 = vpow.pop %v2090
      %v2092 = vmul.f32 %v2088, 1.442695
      %v2093 = vpow.pop %v2092
      %v2094 = vmul.f32 %v2089, 1.442695
      %v2095 = vpow.pop %v2094
      %v2096 = vsel %vm974, %v2091, 0.0
      %2097 = vadd.xlane.f32.xlu0 %v2096
      %v2098 = vpop.xlane.xlu0 %2097
      %v2099 = vsel %vm974, %v2093, 0.0
      %2100 = vadd.xlane.f32.xlu0 %v2099
      %v2101 = vpop.xlane.xlu0 %2100
      %v2102 = vsel %vm974, %v2095, 0.0
      %2103 = vadd.xlane.f32.xlu0 %v2102
      %v2104 = vpop.xlane.xlu0 %2103
      %v2105 = vrcp.pop %v2098
      %v2106 = vrcp.pop %v2101
      %v2107 = vrcp.pop %v2104
      %v2108 = vmul.f32 %v2091, %v2105
      %v2109 = vmul.f32 %v2093, %v2106
      %v2110 = vmul.f32 %v2095, %v2107
      %v2111 = vpack.c.bf16 %v2109, %v2108
      %v2112 = vpack.c.bf16 %v2110, %v2110
      %2115 = vrot.lane.b32.xlu0 %v1949, 96
      %v2116 = vpop.permute.xlu0 %2115
      %2117 = vrot.lane.b32.xlu0 %v1950, 96
      %v2118 = vpop.permute.xlu0 %2117
      %v2120 = vsel %vm715, %v2116, 0
      %v2123 = vsel %vm715, %v2118, 0
      %2125 = vmatprep.subr.bf16.mxu0 0
      %2126 = vmatpush1.bf16.xpose.msra.mxu0 0
      %2127 = vmatprep.subr.bf16.mxu0 0
      %2128 = vmatpush1.bf16.xpose.msra.mxu0 0
      %2129 = vmatprep.subr.bf16.mxu0 0
      %2130 = vmatpush1.bf16.xpose.msra.mxu0 0
      %2131 = vmatprep.subr.bf16.mxu0 0
      %2132 = vmatpush1.bf16.xpose.msra.mxu0 0
      %2133 = vmatprep.subr.bf16.mxu0 0
      %2134 = vmatpush1.bf16.xpose.msra.mxu0 0
      %2135 = vmatprep.subr.bf16.mxu0 0
      %2136 = vmatpush1.bf16.xpose.msra.mxu0 0
      %2137 = vmatprep.subr.bf16.mxu0 0
      %2138 = vmatpush1.bf16.xpose.msra.mxu0 %v1899
      %2139 = vmatprep.subr.bf16.mxu0 0
      %2140 = vmatpush1.bf16.xpose.msra.mxu0 %v1896
      %2141 = vmatprep.subr.bf16.mxu0 0
      %2142 = vmatpush2.bf16.xpose.msra.mxu0 0
      %2143 = vmatprep.subr.bf16.mxu0 0
      %2144 = vmatpush2.bf16.xpose.msra.mxu0 0
      %2145 = vmatprep.subr.bf16.mxu0 0
      %2146 = vmatpush2.bf16.xpose.msra.mxu0 0
      %2147 = vmatprep.subr.bf16.mxu0 0
      %2148 = vmatpush2.bf16.xpose.msra.mxu0 0
      %2149 = vmatprep.subr.bf16.mxu0 0
      %2150 = vmatpush2.bf16.xpose.msra.mxu0 0
      %2151 = vmatprep.subr.bf16.mxu0 0
      %2152 = vmatpush2.bf16.xpose.msra.mxu0 0
      %2153 = vmatprep.subr.bf16.mxu0 0
      %2154 = vmatpush2.bf16.xpose.msra.mxu0 0
      %2155 = vmatprep.subr.bf16.mxu0 0
      %2156 = vmatpush2.bf16.xpose.msra.mxu0 0
      %2157 = vmatprep.mubr.bf16.mxu0 0
      %2158 = vmatmul.mubr.bf16.gmra.mxu0 %v2120
      %v2159 = vpop.f32.mrf.mxu0
      %v2160 = vadd.f32 0.0, %v2159
      %v2161 = vpop.f32.mrf.mxu0
      %v2162 = vpop.f32.mrf.mxu0
      %v2163 = vadd.f32 0.0, %v2162
      %v2164 = vpop.f32.mrf.mxu0
      %2165 = vmatprep.mubr.bf16.mxu0 0
      %2166 = vmatmul.mubr.bf16.gmra.mxu0 %v2123
      %v2167 = vpop.f32.mrf.mxu0
      %v2168 = vadd.f32 0.0, %v2167
      %v2169 = vpop.f32.mrf.mxu0
      %v2170 = vpop.f32.mrf.mxu0
      %v2171 = vpop.f32.mrf.mxu0
      %2172 = vdwg.mxu0
      %v2173 = vmul.f32 %v2160, 0.35355338
      %v2174 = vmul.f32 %v2163, 0.35355338
      %v2175 = vmul.f32 %v2168, 0.35355338
      %v2176 = vadd.f32 %v2173, %v606
      %v2177 = vadd.f32 %v2174, %v607
      %v2178 = vadd.f32 %v2175, %v608
      %v2179 = vsel %vm974, %v2176, -inf
      %2180 = vmax.xlane.f32.xlu0 %v2179
      %v2181 = vpop.xlane.xlu0 %2180
      %v2182 = vsel %vm974, %v2177, -inf
      %2183 = vmax.xlane.f32.xlu0 %v2182
      %v2184 = vpop.xlane.xlu0 %2183
      %v2185 = vsel %vm974, %v2178, -inf
      %2186 = vmax.xlane.f32.xlu0 %v2185
      %v2187 = vpop.xlane.xlu0 %2186
      %v2188 = vsub.f32 %v2176, %v2181
      %v2189 = vsub.f32 %v2177, %v2184
      %v2190 = vsub.f32 %v2178, %v2187
      %v2191 = vmul.f32 %v2188, 1.442695
      %v2192 = vpow.pop %v2191
      %v2193 = vmul.f32 %v2189, 1.442695
      %v2194 = vpow.pop %v2193
      %v2195 = vmul.f32 %v2190, 1.442695
      %v2196 = vpow.pop %v2195
      %v2197 = vsel %vm974, %v2192, 0.0
      %2198 = vadd.xlane.f32.xlu0 %v2197
      %v2199 = vpop.xlane.xlu0 %2198
      %v2200 = vsel %vm974, %v2194, 0.0
      %2201 = vadd.xlane.f32.xlu0 %v2200
      %v2202 = vpop.xlane.xlu0 %2201
      %v2203 = vsel %vm974, %v2196, 0.0
      %2204 = vadd.xlane.f32.xlu0 %v2203
      %v2205 = vpop.xlane.xlu0 %2204
      %v2206 = vrcp.pop %v2199
      %v2207 = vrcp.pop %v2202
      %v2208 = vrcp.pop %v2205
      %v2209 = vmul.f32 %v2192, %v2206
      %v2210 = vmul.f32 %v2194, %v2207
      %v2211 = vmul.f32 %v2196, %v2208
      %v2212 = vpack.c.bf16 %v2210, %v2209
      %v2213 = vpack.c.bf16 %v2211, %v2211
      %2216 = vrot.lane.b32.xlu0 %v2016, 96
      %v2217 = vpop.permute.xlu0 %2216
      %2218 = vrot.lane.b32.xlu0 %v2017, 96
      %v2219 = vpop.permute.xlu0 %2218
      %v2222 = vsel %vm974, %v2212, 0
      %v2225 = vsel %vm974, %v2213, 0
      %v2228 = vsel %vm1124, %v2219, 0
      %2230 = vmatprep.subr.bf16.mxu0 0
      %2231 = vmatpush1.bf16.msra.mxu0 0
      %2232 = vmatprep.subr.bf16.mxu0 0
      %2233 = vmatpush1.bf16.msra.mxu0 0
      %2234 = vmatprep.subr.bf16.mxu0 0
      %2235 = vmatpush1.bf16.msra.mxu0 0
      %2236 = vmatprep.subr.bf16.mxu0 0
      %2237 = vmatpush1.bf16.msra.mxu0 0
      %2238 = vmatprep.subr.bf16.mxu0 0
      %2239 = vmatpush1.bf16.msra.mxu0 0
      %2240 = vmatprep.subr.bf16.mxu0 0
      %2241 = vmatpush1.bf16.msra.mxu0 0
      %2242 = vmatprep.subr.bf16.mxu0 0
      %2243 = vmatpush1.bf16.msra.mxu0 %v2228
      %2244 = vmatprep.subr.bf16.mxu0 0
      %2245 = vmatpush1.bf16.msra.mxu0 %v2217
      %2246 = vmatprep.subr.bf16.mxu0 0
      %2247 = vmatpush2.bf16.msra.mxu0 0
      %2248 = vmatprep.subr.bf16.mxu0 0
      %2249 = vmatpush2.bf16.msra.mxu0 0
      %2250 = vmatprep.subr.bf16.mxu0 0
      %2251 = vmatpush2.bf16.msra.mxu0 0
      %2252 = vmatprep.subr.bf16.mxu0 0
      %2253 = vmatpush2.bf16.msra.mxu0 0
      %2254 = vmatprep.subr.bf16.mxu0 0
      %2255 = vmatpush2.bf16.msra.mxu0 0
      %2256 = vmatprep.subr.bf16.mxu0 0
      %2257 = vmatpush2.bf16.msra.mxu0 0
      %2258 = vmatprep.subr.bf16.mxu0 0
      %2259 = vmatpush2.bf16.msra.mxu0 0
      %2260 = vmatprep.subr.bf16.mxu0 0
      %2261 = vmatpush2.bf16.msra.mxu0 0
      %2262 = vmatprep.mubr.bf16.mxu0 0
      %2263 = vmatmul.mubr.bf16.gmra.mxu0 %v2222
      %v2264 = vpop.f32.mrf.mxu0
      %v2265 = vadd.f32 0.0, %v2264
      %v2266 = vpop.f32.mrf.mxu0
      %v2267 = vpop.f32.mrf.mxu0
      %v2268 = vadd.f32 0.0, %v2267
      %v2269 = vpop.f32.mrf.mxu0
      %2270 = vmatprep.mubr.bf16.mxu0 0
      %2271 = vmatmul.mubr.bf16.gmra.mxu0 %v2225
      %v2272 = vpop.f32.mrf.mxu0
      %v2273 = vadd.f32 0.0, %v2272
      %v2274 = vpop.f32.mrf.mxu0
      %v2275 = vpop.f32.mrf.mxu0
      %v2276 = vpop.f32.mrf.mxu0
      %2277 = vdwg.mxu0
      %v2279 = vsel %vm974, %v2111, 0
      %v2282 = vsel %vm974, %v2112, 0
      %v2285 = vsel %vm1124, %v2017, 0
      %2287 = vmatprep.subr.bf16.mxu0 0
      %2288 = vmatpush1.bf16.msra.mxu0 0
      %2289 = vmatprep.subr.bf16.mxu0 0
      %2290 = vmatpush1.bf16.msra.mxu0 0
      %2291 = vmatprep.subr.bf16.mxu0 0
      %2292 = vmatpush1.bf16.msra.mxu0 0
      %2293 = vmatprep.subr.bf16.mxu0 0
      %2294 = vmatpush1.bf16.msra.mxu0 0
      %2295 = vmatprep.subr.bf16.mxu0 0
      %2296 = vmatpush1.bf16.msra.mxu0 0
      %2297 = vmatprep.subr.bf16.mxu0 0
      %2298 = vmatpush1.bf16.msra.mxu0 0
      %2299 = vmatprep.subr.bf16.mxu0 0
      %2300 = vmatpush1.bf16.msra.mxu0 %v2285
      %2301 = vmatprep.subr.bf16.mxu0 0
      %2302 = vmatpush1.bf16.msra.mxu0 %v2016
      %2303 = vmatprep.subr.bf16.mxu0 0
      %2304 = vmatpush2.bf16.msra.mxu0 0
      %2305 = vmatprep.subr.bf16.mxu0 0
      %2306 = vmatpush2.bf16.msra.mxu0 0
      %2307 = vmatprep.subr.bf16.mxu0 0
      %2308 = vmatpush2.bf16.msra.mxu0 0
      %2309 = vmatprep.subr.bf16.mxu0 0
      %2310 = vmatpush2.bf16.msra.mxu0 0
      %2311 = vmatprep.subr.bf16.mxu0 0
      %2312 = vmatpush2.bf16.msra.mxu0 0
      %2313 = vmatprep.subr.bf16.mxu0 0
      %2314 = vmatpush2.bf16.msra.mxu0 0
      %2315 = vmatprep.subr.bf16.mxu0 0
      %2316 = vmatpush2.bf16.msra.mxu0 0
      %2317 = vmatprep.subr.bf16.mxu0 0
      %2318 = vmatpush2.bf16.msra.mxu0 0
      %2319 = vmatprep.mubr.bf16.mxu0 0
      %2320 = vmatmul.mubr.bf16.gmra.mxu0 %v2279
      %v2321 = vpop.f32.mrf.mxu0
      %v2322 = vadd.f32 %v2265, %v2321
      %v2323 = vpop.f32.mrf.mxu0
      %v2324 = vpop.f32.mrf.mxu0
      %v2325 = vadd.f32 %v2268, %v2324
      %v2326 = vpop.f32.mrf.mxu0
      %2327 = vmatprep.mubr.bf16.mxu0 0
      %2328 = vmatmul.mubr.bf16.gmra.mxu0 %v2282
      %v2329 = vpop.f32.mrf.mxu0
      %v2330 = vadd.f32 %v2273, %v2329
      %v2331 = vpop.f32.mrf.mxu0
      %v2332 = vpop.f32.mrf.mxu0
      %v2333 = vpop.f32.mrf.mxu0
      %2334 = vdwg.mxu0
      %2335 = vrot.lane.b32.xlu0 %v1949, 64
      %v2336 = vpop.permute.xlu0 %2335
      %2337 = vrot.lane.b32.xlu0 %v1950, 64
      %v2338 = vpop.permute.xlu0 %2337
      %v2340 = vsel %vm715, %v2336, 0
      %v2343 = vsel %vm715, %v2338, 0
      %2345 = vmatprep.subr.bf16.mxu0 0
      %2346 = vmatpush1.bf16.xpose.msra.mxu0 0
      %2347 = vmatprep.subr.bf16.mxu0 0
      %2348 = vmatpush1.bf16.xpose.msra.mxu0 0
      %2349 = vmatprep.subr.bf16.mxu0 0
      %2350 = vmatpush1.bf16.xpose.msra.mxu0 0
      %2351 = vmatprep.subr.bf16.mxu0 0
      %2352 = vmatpush1.bf16.xpose.msra.mxu0 0
      %2353 = vmatprep.subr.bf16.mxu0 0
      %2354 = vmatpush1.bf16.xpose.msra.mxu0 0
      %2355 = vmatprep.subr.bf16.mxu0 0
      %2356 = vmatpush1.bf16.xpose.msra.mxu0 0
      %2357 = vmatprep.subr.bf16.mxu0 0
      %2358 = vmatpush1.bf16.xpose.msra.mxu0 %v1899
      %2359 = vmatprep.subr.bf16.mxu0 0
      %2360 = vmatpush1.bf16.xpose.msra.mxu0 %v1896
      %2361 = vmatprep.subr.bf16.mxu0 0
      %2362 = vmatpush2.bf16.xpose.msra.mxu0 0
      %2363 = vmatprep.subr.bf16.mxu0 0
      %2364 = vmatpush2.bf16.xpose.msra.mxu0 0
      %2365 = vmatprep.subr.bf16.mxu0 0
      %2366 = vmatpush2.bf16.xpose.msra.mxu0 0
      %2367 = vmatprep.subr.bf16.mxu0 0
      %2368 = vmatpush2.bf16.xpose.msra.mxu0 0
      %2369 = vmatprep.subr.bf16.mxu0 0
      %2370 = vmatpush2.bf16.xpose.msra.mxu0 0
      %2371 = vmatprep.subr.bf16.mxu0 0
      %2372 = vmatpush2.bf16.xpose.msra.mxu0 0
      %2373 = vmatprep.subr.bf16.mxu0 0
      %2374 = vmatpush2.bf16.xpose.msra.mxu0 0
      %2375 = vmatprep.subr.bf16.mxu0 0
      %2376 = vmatpush2.bf16.xpose.msra.mxu0 0
      %2377 = vmatprep.mubr.bf16.mxu0 0
      %2378 = vmatmul.mubr.bf16.gmra.mxu0 %v2340
      %v2379 = vpop.f32.mrf.mxu0
      %v2380 = vadd.f32 0.0, %v2379
      %v2381 = vpop.f32.mrf.mxu0
      %v2382 = vpop.f32.mrf.mxu0
      %v2383 = vadd.f32 0.0, %v2382
      %v2384 = vpop.f32.mrf.mxu0
      %2385 = vmatprep.mubr.bf16.mxu0 0
      %2386 = vmatmul.mubr.bf16.gmra.mxu0 %v2343
      %v2387 = vpop.f32.mrf.mxu0
      %v2388 = vadd.f32 0.0, %v2387
      %v2389 = vpop.f32.mrf.mxu0
      %v2390 = vpop.f32.mrf.mxu0
      %v2391 = vpop.f32.mrf.mxu0
      %2392 = vdwg.mxu0
      %v2393 = vmul.f32 %v2380, 0.35355338
      %v2394 = vmul.f32 %v2383, 0.35355338
      %v2395 = vmul.f32 %v2388, 0.35355338
      %v2396 = vadd.f32 %v2393, %v606
      %v2397 = vadd.f32 %v2394, %v607
      %v2398 = vadd.f32 %v2395, %v608
      %v2399 = vsel %vm974, %v2396, -inf
      %2400 = vmax.xlane.f32.xlu0 %v2399
      %v2401 = vpop.xlane.xlu0 %2400
      %v2402 = vsel %vm974, %v2397, -inf
      %2403 = vmax.xlane.f32.xlu0 %v2402
      %v2404 = vpop.xlane.xlu0 %2403
      %v2405 = vsel %vm974, %v2398, -inf
      %2406 = vmax.xlane.f32.xlu0 %v2405
      %v2407 = vpop.xlane.xlu0 %2406
      %v2408 = vsub.f32 %v2396, %v2401
      %v2409 = vsub.f32 %v2397, %v2404
      %v2410 = vsub.f32 %v2398, %v2407
      %v2411 = vmul.f32 %v2408, 1.442695
      %v2412 = vpow.pop %v2411
      %v2413 = vmul.f32 %v2409, 1.442695
      %v2414 = vpow.pop %v2413
      %v2415 = vmul.f32 %v2410, 1.442695
      %v2416 = vpow.pop %v2415
      %v2417 = vsel %vm974, %v2412, 0.0
      %2418 = vadd.xlane.f32.xlu0 %v2417
      %v2419 = vpop.xlane.xlu0 %2418
      %v2420 = vsel %vm974, %v2414, 0.0
      %2421 = vadd.xlane.f32.xlu0 %v2420
      %v2422 = vpop.xlane.xlu0 %2421
      %v2423 = vsel %vm974, %v2416, 0.0
      %2424 = vadd.xlane.f32.xlu0 %v2423
      %v2425 = vpop.xlane.xlu0 %2424
      %v2426 = vrcp.pop %v2419
      %v2427 = vrcp.pop %v2422
      %v2428 = vrcp.pop %v2425
      %v2429 = vmul.f32 %v2412, %v2426
      %v2430 = vmul.f32 %v2414, %v2427
      %v2431 = vmul.f32 %v2416, %v2428
      %v2432 = vpack.c.bf16 %v2430, %v2429
      %v2433 = vpack.c.bf16 %v2431, %v2431
      %2434 = vrot.lane.b32.xlu0 %v2016, 64
      %v2435 = vpop.permute.xlu0 %2434
      %2436 = vrot.lane.b32.xlu0 %v2017, 64
      %v2437 = vpop.permute.xlu0 %2436
      %v2440 = vsel %vm974, %v2432, 0
      %v2443 = vsel %vm974, %v2433, 0
      %v2446 = vsel %vm1124, %v2437, 0
      %2448 = vmatprep.subr.bf16.mxu0 0
      %2449 = vmatpush1.bf16.msra.mxu0 0
      %2450 = vmatprep.subr.bf16.mxu0 0
      %2451 = vmatpush1.bf16.msra.mxu0 0
      %2452 = vmatprep.subr.bf16.mxu0 0
      %2453 = vmatpush1.bf16.msra.mxu0 0
      %2454 = vmatprep.subr.bf16.mxu0 0
      %2455 = vmatpush1.bf16.msra.mxu0 0
      %2456 = vmatprep.subr.bf16.mxu0 0
      %2457 = vmatpush1.bf16.msra.mxu0 0
      %2458 = vmatprep.subr.bf16.mxu0 0
      %2459 = vmatpush1.bf16.msra.mxu0 0
      %2460 = vmatprep.subr.bf16.mxu0 0
      %2461 = vmatpush1.bf16.msra.mxu0 %v2446
      %2462 = vmatprep.subr.bf16.mxu0 0
      %2463 = vmatpush1.bf16.msra.mxu0 %v2435
      %2464 = vmatprep.subr.bf16.mxu0 0
      %2465 = vmatpush2.bf16.msra.mxu0 0
      %2466 = vmatprep.subr.bf16.mxu0 0
      %2467 = vmatpush2.bf16.msra.mxu0 0
      %2468 = vmatprep.subr.bf16.mxu0 0
      %2469 = vmatpush2.bf16.msra.mxu0 0
      %2470 = vmatprep.subr.bf16.mxu0 0
      %2471 = vmatpush2.bf16.msra.mxu0 0
      %2472 = vmatprep.subr.bf16.mxu0 0
      %2473 = vmatpush2.bf16.msra.mxu0 0
      %2474 = vmatprep.subr.bf16.mxu0 0
      %2475 = vmatpush2.bf16.msra.mxu0 0
      %2476 = vmatprep.subr.bf16.mxu0 0
      %2477 = vmatpush2.bf16.msra.mxu0 0
      %2478 = vmatprep.subr.bf16.mxu0 0
      %2479 = vmatpush2.bf16.msra.mxu0 0
      %2480 = vmatprep.mubr.bf16.mxu0 0
      %2481 = vmatmul.mubr.bf16.gmra.mxu0 %v2440
      %v2482 = vpop.f32.mrf.mxu0
      %v2483 = vadd.f32 0.0, %v2482
      %v2484 = vpop.f32.mrf.mxu0
      %v2485 = vpop.f32.mrf.mxu0
      %v2486 = vadd.f32 0.0, %v2485
      %v2487 = vpop.f32.mrf.mxu0
      %2488 = vmatprep.mubr.bf16.mxu0 0
      %2489 = vmatmul.mubr.bf16.gmra.mxu0 %v2443
      %v2490 = vpop.f32.mrf.mxu0
      %v2491 = vadd.f32 0.0, %v2490
      %v2492 = vpop.f32.mrf.mxu0
      %v2493 = vpop.f32.mrf.mxu0
      %v2494 = vpop.f32.mrf.mxu0
      %2495 = vdwg.mxu0
      %v2496 = vadd.f32 %v2322, %v2483
      %v2497 = vadd.f32 %v2325, %v2486
      %v2498 = vadd.f32 %v2330, %v2491
      %2499 = vrot.lane.b32.xlu0 %v1949, 32
      %v2500 = vpop.permute.xlu0 %2499
      %2501 = vrot.lane.b32.xlu0 %v1950, 32
      %v2502 = vpop.permute.xlu0 %2501
      %v2504 = vsel %vm715, %v2500, 0
      %v2507 = vsel %vm715, %v2502, 0
      %2509 = vmatprep.subr.bf16.mxu0 0
      %2510 = vmatpush1.bf16.xpose.msra.mxu0 0
      %2511 = vmatprep.subr.bf16.mxu0 0
      %2512 = vmatpush1.bf16.xpose.msra.mxu0 0
      %2513 = vmatprep.subr.bf16.mxu0 0
      %2514 = vmatpush1.bf16.xpose.msra.mxu0 0
      %2515 = vmatprep.subr.bf16.mxu0 0
      %2516 = vmatpush1.bf16.xpose.msra.mxu0 0
      %2517 = vmatprep.subr.bf16.mxu0 0
      %2518 = vmatpush1.bf16.xpose.msra.mxu0 0
      %2519 = vmatprep.subr.bf16.mxu0 0
      %2520 = vmatpush1.bf16.xpose.msra.mxu0 0
      %2521 = vmatprep.subr.bf16.mxu0 0
      %2522 = vmatpush1.bf16.xpose.msra.mxu0 %v1899
      %2523 = vmatprep.subr.bf16.mxu0 0
      %2524 = vmatpush1.bf16.xpose.msra.mxu0 %v1896
      %2525 = vmatprep.subr.bf16.mxu0 0
      %2526 = vmatpush2.bf16.xpose.msra.mxu0 0
      %2527 = vmatprep.subr.bf16.mxu0 0
      %2528 = vmatpush2.bf16.xpose.msra.mxu0 0
      %2529 = vmatprep.subr.bf16.mxu0 0
      %2530 = vmatpush2.bf16.xpose.msra.mxu0 0
      %2531 = vmatprep.subr.bf16.mxu0 0
      %2532 = vmatpush2.bf16.xpose.msra.mxu0 0
      %2533 = vmatprep.subr.bf16.mxu0 0
      %2534 = vmatpush2.bf16.xpose.msra.mxu0 0
      %2535 = vmatprep.subr.bf16.mxu0 0
      %2536 = vmatpush2.bf16.xpose.msra.mxu0 0
      %2537 = vmatprep.subr.bf16.mxu0 0
      %2538 = vmatpush2.bf16.xpose.msra.mxu0 0
      %2539 = vmatprep.subr.bf16.mxu0 0
      %2540 = vmatpush2.bf16.xpose.msra.mxu0 0
      %2541 = vmatprep.mubr.bf16.mxu0 0
      %2542 = vmatmul.mubr.bf16.gmra.mxu0 %v2504
      %v2543 = vpop.f32.mrf.mxu0
      %v2544 = vadd.f32 0.0, %v2543
      %v2545 = vpop.f32.mrf.mxu0
      %v2546 = vpop.f32.mrf.mxu0
      %v2547 = vadd.f32 0.0, %v2546
      %v2548 = vpop.f32.mrf.mxu0
      %2549 = vmatprep.mubr.bf16.mxu0 0
      %2550 = vmatmul.mubr.bf16.gmra.mxu0 %v2507
      %v2551 = vpop.f32.mrf.mxu0
      %v2552 = vadd.f32 0.0, %v2551
      %v2553 = vpop.f32.mrf.mxu0
      %v2554 = vpop.f32.mrf.mxu0
      %v2555 = vpop.f32.mrf.mxu0
      %2556 = vdwg.mxu0
      %v2557 = vmul.f32 %v2544, 0.35355338
      %v2558 = vmul.f32 %v2547, 0.35355338
      %v2559 = vmul.f32 %v2552, 0.35355338
      %v2560 = vadd.f32 %v2557, %v606
      %v2561 = vadd.f32 %v2558, %v607
      %v2562 = vadd.f32 %v2559, %v608
      %v2563 = vsel %vm974, %v2560, -inf
      %2564 = vmax.xlane.f32.xlu0 %v2563
      %v2565 = vpop.xlane.xlu0 %2564
      %v2566 = vsel %vm974, %v2561, -inf
      %2567 = vmax.xlane.f32.xlu0 %v2566
      %v2568 = vpop.xlane.xlu0 %2567
      %v2569 = vsel %vm974, %v2562, -inf
      %2570 = vmax.xlane.f32.xlu0 %v2569
      %v2571 = vpop.xlane.xlu0 %2570
      %v2572 = vsub.f32 %v2560, %v2565
      %v2573 = vsub.f32 %v2561, %v2568
      %v2574 = vsub.f32 %v2562, %v2571
      %v2575 = vmul.f32 %v2572, 1.442695
      %v2576 = vpow.pop %v2575
      %v2577 = vmul.f32 %v2573, 1.442695
      %v2578 = vpow.pop %v2577
      %v2579 = vmul.f32 %v2574, 1.442695
      %v2580 = vpow.pop %v2579
      %v2581 = vsel %vm974, %v2576, 0.0
      %2582 = vadd.xlane.f32.xlu0 %v2581
      %v2583 = vpop.xlane.xlu0 %2582
      %v2584 = vsel %vm974, %v2578, 0.0
      %2585 = vadd.xlane.f32.xlu0 %v2584
      %v2586 = vpop.xlane.xlu0 %2585
      %v2587 = vsel %vm974, %v2580, 0.0
      %2588 = vadd.xlane.f32.xlu0 %v2587
      %v2589 = vpop.xlane.xlu0 %2588
      %v2590 = vrcp.pop %v2583
      %v2591 = vrcp.pop %v2586
      %v2592 = vrcp.pop %v2589
      %v2593 = vmul.f32 %v2576, %v2590
      %v2594 = vmul.f32 %v2578, %v2591
      %v2595 = vmul.f32 %v2580, %v2592
      %v2596 = vpack.c.bf16 %v2594, %v2593
      %v2597 = vpack.c.bf16 %v2595, %v2595
      %2598 = vrot.lane.b32.xlu0 %v2016, 32
      %v2599 = vpop.permute.xlu0 %2598
      %2600 = vrot.lane.b32.xlu0 %v2017, 32
      %v2601 = vpop.permute.xlu0 %2600
      %v2604 = vsel %vm974, %v2596, 0
      %v2607 = vsel %vm974, %v2597, 0
      %v2610 = vsel %vm1124, %v2601, 0
      %2612 = vmatprep.subr.bf16.mxu0 0
      %2613 = vmatpush1.bf16.msra.mxu0 0
      %2614 = vmatprep.subr.bf16.mxu0 0
      %2615 = vmatpush1.bf16.msra.mxu0 0
      %2616 = vmatprep.subr.bf16.mxu0 0
      %2617 = vmatpush1.bf16.msra.mxu0 0
      %2618 = vmatprep.subr.bf16.mxu0 0
      %2619 = vmatpush1.bf16.msra.mxu0 0
      %2620 = vmatprep.subr.bf16.mxu0 0
      %2621 = vmatpush1.bf16.msra.mxu0 0
      %2622 = vmatprep.subr.bf16.mxu0 0
      %2623 = vmatpush1.bf16.msra.mxu0 0
      %2624 = vmatprep.subr.bf16.mxu0 0
      %2625 = vmatpush1.bf16.msra.mxu0 %v2610
      %2626 = vmatprep.subr.bf16.mxu0 0
      %2627 = vmatpush1.bf16.msra.mxu0 %v2599
      %2628 = vmatprep.subr.bf16.mxu0 0
      %2629 = vmatpush2.bf16.msra.mxu0 0
      %2630 = vmatprep.subr.bf16.mxu0 0
      %2631 = vmatpush2.bf16.msra.mxu0 0
      %2632 = vmatprep.subr.bf16.mxu0 0
      %2633 = vmatpush2.bf16.msra.mxu0 0
      %2634 = vmatprep.subr.bf16.mxu0 0
      %2635 = vmatpush2.bf16.msra.mxu0 0
      %2636 = vmatprep.subr.bf16.mxu0 0
      %2637 = vmatpush2.bf16.msra.mxu0 0
      %2638 = vmatprep.subr.bf16.mxu0 0
      %2639 = vmatpush2.bf16.msra.mxu0 0
      %2640 = vmatprep.subr.bf16.mxu0 0
      %2641 = vmatpush2.bf16.msra.mxu0 0
      %2642 = vmatprep.subr.bf16.mxu0 0
      %2643 = vmatpush2.bf16.msra.mxu0 0
      %2644 = vmatprep.mubr.bf16.mxu0 0
      %2645 = vmatmul.mubr.bf16.gmra.mxu0 %v2604
      %v2646 = vpop.f32.mrf.mxu0
      %v2647 = vadd.f32 0.0, %v2646
      %v2648 = vpop.f32.mrf.mxu0
      %v2649 = vpop.f32.mrf.mxu0
      %v2650 = vadd.f32 0.0, %v2649
      %v2651 = vpop.f32.mrf.mxu0
      %2652 = vmatprep.mubr.bf16.mxu0 0
      %2653 = vmatmul.mubr.bf16.gmra.mxu0 %v2607
      %v2654 = vpop.f32.mrf.mxu0
      %v2655 = vadd.f32 0.0, %v2654
      %v2656 = vpop.f32.mrf.mxu0
      %v2657 = vpop.f32.mrf.mxu0
      %v2658 = vpop.f32.mrf.mxu0
      %2659 = vdwg.mxu0
      %v2660 = vadd.f32 %v2496, %v2647
      %v2661 = vadd.f32 %v2497, %v2650
      %v2662 = vadd.f32 %v2498, %v2655
      %v2663 = vadd.f32 %v1812, %v2660
      %v2664 = vadd.f32 %v1813, %v2661
      %v2665 = vadd.f32 %v1814, %v2662
      %s2666 = scalar_lea.vmem %s7, 1
      %v2667 = vld [vmem:[%s2666] sm:$0x1]
      %s2668 = scalar_lea.vmem %s8, 1
      %v2669 = vld [vmem:[%s2668] sm:$0x1]
      %v2670 = vsel %vm715, %v2663, 0.0
      %2671 = vadd.xlane.f32.xlu0 %v2670
      %v2672 = vpop.xlane.xlu0 %2671
      %v2673 = vsel %vm715, %v2664, 0.0
      %2674 = vadd.xlane.f32.xlu0 %v2673
      %v2675 = vpop.xlane.xlu0 %2674
      %v2676 = vsel %vm715, %v2665, 0.0
      %2677 = vadd.xlane.f32.xlu0 %v2676
      %v2678 = vpop.xlane.xlu0 %2677
      %v2679 = vmul.f32 %v2672, %v725
      %v2680 = vmul.f32 %v2675, %v725
      %v2681 = vmul.f32 %v2678, %v725
      %v2682 = vsub.f32 %v2663, %v2679
      %v2683 = vsub.f32 %v2664, %v2680
      %v2684 = vsub.f32 %v2665, %v2681
      %v2685 = vmul.f32 %v2682, %v2682
      %v2686 = vmul.f32 %v2683, %v2683
      %v2687 = vmul.f32 %v2684, %v2684
      %v2688 = vsel %vm715, %v2685, 0.0
      %2689 = vadd.xlane.f32.xlu0 %v2688
      %v2690 = vpop.xlane.xlu0 %2689
      %v2691 = vsel %vm715, %v2686, 0.0
      %2692 = vadd.xlane.f32.xlu0 %v2691
      %v2693 = vpop.xlane.xlu0 %2692
      %v2694 = vsel %vm715, %v2687, 0.0
      %2695 = vadd.xlane.f32.xlu0 %v2694
      %v2696 = vpop.xlane.xlu0 %2695
      %v2697 = vmul.f32 %v2690, %v725
      %v2698 = vmul.f32 %v2693, %v725
      %v2699 = vmul.f32 %v2696, %v725
      %v2700 = vadd.f32 %v2697, 1e-05
      %v2701 = vadd.f32 %v2698, 1e-05
      %v2702 = vadd.f32 %v2699, 1e-05
      %v2703 = vrsqrt.pop %v2700
      %v2704 = vrsqrt.pop %v2701
      %v2705 = vrsqrt.pop %v2702
      %v2706 = vmul.f32 %v2682, %v2703
      %v2707 = vmul.f32 %v2683, %v2704
      %v2708 = vmul.f32 %v2684, %v2705
      %v2710 = vlaneseq
      %v2711 = vshrl.u32 %v2710, 7
      %v2712 = vsub.s32 0, %v2711
      %v2713 = vrot.slane %v2667, %v2712
      %v2715 = vmul.f32 %v2706, %v2713
      %v2716 = vmul.f32 %v2707, %v2713
      %v2717 = vmul.f32 %v2708, %v2713
      %v2719 = vlaneseq
      %v2720 = vshrl.u32 %v2719, 7
      %v2721 = vsub.s32 0, %v2720
      %v2722 = vrot.slane %v2669, %v2721
      %v2724 = vadd.f32 %v2715, %v2722
      %v2725 = vadd.f32 %v2716, %v2722
      %v2726 = vadd.f32 %v2717, %v2722
      %v2727 = vpack.c.bf16 %v2725, %v2724
      %v2728 = vpack.c.bf16 %v2726, %v2726
      %s2729 = scalar_lea.vmem %s9, 16
      %v2730 = vld [vmem:[%s2729] sm:$0xf]
      %v2731 = vld [vmem:[%s2729 + $0x4] sm:$0xf]
      %v2732 = vld [vmem:[%s2729 + $0x8] sm:$0xf]
      %v2733 = vld [vmem:[%s2729 + $0xc] sm:$0xf]
      %s2734 = scalar_lea.vmem %s10, 1
      %v2735 = vld [vmem:[%s2734] sm:$0x1]
      %v2737 = vlaneseq
      %v2738 = vshrl.u32 %v2737, 7
      %v2739 = vsub.s32 0, %v2738
      %v2740 = vrot.slane %v2735, %v2739
      %v2746 = vunpack.c.l.b16 %v2730
      %v2747 = vunpack.c.l.b16 %v2731
      %v2748 = vunpack.c.l.b16 %v2732
      %v2749 = vunpack.c.l.b16 %v2733
      %v2750 = vpack.c.b16 %v2747, %v2746
      %v2751 = vpack.c.b16 %v2749, %v2748
      %v2755 = vsel %vm715, %v2727, 0
      %v2758 = vsel %vm715, %v2728, 0
      %2760 = vmatprep.subr.bf16.mxu0 0
      %2761 = vmatpush1.bf16.msra.mxu0 0
      %2762 = vmatprep.subr.bf16.mxu0 0
      %2763 = vmatpush1.bf16.msra.mxu0 0
      %2764 = vmatprep.subr.bf16.mxu0 0
      %2765 = vmatpush1.bf16.msra.mxu0 0
      %2766 = vmatprep.subr.bf16.mxu0 0
      %2767 = vmatpush1.bf16.msra.mxu0 0
      %2768 = vmatprep.subr.bf16.mxu0 0
      %2769 = vmatpush1.bf16.msra.mxu0 0
      %2770 = vmatprep.subr.bf16.mxu0 0
      %2771 = vmatpush1.bf16.msra.mxu0 0
      %2772 = vmatprep.subr.bf16.mxu0 0
      %2773 = vmatpush1.bf16.msra.mxu0 %v2751
      %2774 = vmatprep.subr.bf16.mxu0 0
      %2775 = vmatpush1.bf16.msra.mxu0 %v2750
      %2776 = vmatprep.subr.bf16.mxu0 0
      %2777 = vmatpush2.bf16.msra.mxu0 0
      %2778 = vmatprep.subr.bf16.mxu0 0
      %2779 = vmatpush2.bf16.msra.mxu0 0
      %2780 = vmatprep.subr.bf16.mxu0 0
      %2781 = vmatpush2.bf16.msra.mxu0 0
      %2782 = vmatprep.subr.bf16.mxu0 0
      %2783 = vmatpush2.bf16.msra.mxu0 0
      %2784 = vmatprep.subr.bf16.mxu0 0
      %2785 = vmatpush2.bf16.msra.mxu0 0
      %2786 = vmatprep.subr.bf16.mxu0 0
      %2787 = vmatpush2.bf16.msra.mxu0 0
      %2788 = vmatprep.subr.bf16.mxu0 0
      %2789 = vmatpush2.bf16.msra.mxu0 0
      %2790 = vmatprep.subr.bf16.mxu0 0
      %2791 = vmatpush2.bf16.msra.mxu0 0
      %2792 = vmatprep.mubr.bf16.mxu0 0
      %2793 = vmatmul.mubr.bf16.gmra.mxu0 %v2755
      %v2794 = vpop.f32.mrf.mxu0
      %v2795 = vadd.f32 %v2740, %v2794
      %v2796 = vpop.f32.mrf.mxu0
      %v2797 = vpop.f32.mrf.mxu0
      %v2798 = vadd.f32 %v2740, %v2797
      %v2799 = vpop.f32.mrf.mxu0
      %2800 = vmatprep.mubr.bf16.mxu0 0
      %2801 = vmatmul.mubr.bf16.gmra.mxu0 %v2758
      %v2802 = vpop.f32.mrf.mxu0
      %v2803 = vadd.f32 %v2740, %v2802
      %v2804 = vpop.f32.mrf.mxu0
      %v2805 = vpop.f32.mrf.mxu0
      %v2806 = vpop.f32.mrf.mxu0
      %2807 = vdwg.mxu0
      %v2808 = vmul.f32 %v2795, 0.5
      %v2809 = vmul.f32 %v2798, 0.5
      %v2810 = vmul.f32 %v2803, 0.5
      %v2811 = vmul.f32 %v2795, 0.70710677
      %v2812 = vmul.f32 %v2798, 0.70710677
      %v2813 = vmul.f32 %v2803, 0.70710677
      %v2814 = verf.f32.pop %v2811
      %v2815 = verf.f32.pop %v2812
      %v2816 = verf.f32.pop %v2813
      %v2817 = vadd.f32 %v2814, 1.0
      %v2818 = vadd.f32 %v2815, 1.0
      %v2819 = vadd.f32 %v2816, 1.0
      %v2820 = vmul.f32 %v2808, %v2817
      %v2821 = vmul.f32 %v2809, %v2818
      %v2822 = vmul.f32 %v2810, %v2819
      %v2823 = vpack.c.bf16 %v2821, %v2820
      %v2824 = vpack.c.bf16 %v2822, %v2822
      %s2825 = scalar_lea.vmem %s11, 32
      %v2826 = vld [vmem:[%s2825] sm:$0xf]
      %v2827 = vld [vmem:[%s2825 + $0x4] sm:$0xf]
      %v2828 = vld [vmem:[%s2825 + $0x8] sm:$0xf]
      %v2829 = vld [vmem:[%s2825 + $0xc] sm:$0xf]
      %v2830 = vld [vmem:[%s2825 + $0x10] sm:$0xf]
      %v2831 = vld [vmem:[%s2825 + $0x14] sm:$0xf]
      %v2832 = vld [vmem:[%s2825 + $0x18] sm:$0xf]
      %v2833 = vld [vmem:[%s2825 + $0x1c] sm:$0xf]
      %s2834 = scalar_lea.vmem %s12, 1
      %v2835 = vld [vmem:[%s2834] sm:$0x1]
      %v2837 = vlaneseq
      %v2838 = vshrl.u32 %v2837, 7
      %v2839 = vsub.s32 0, %v2838
      %v2840 = vrot.slane %v2835, %v2839
      %v2850 = vunpack.c.l.b16 %v2826
      %v2851 = vunpack.c.l.b16 %v2827
      %v2852 = vunpack.c.l.b16 %v2828
      %v2853 = vunpack.c.l.b16 %v2829
      %v2854 = vunpack.c.l.b16 %v2830
      %v2855 = vunpack.c.l.b16 %v2831
      %v2856 = vunpack.c.l.b16 %v2832
      %v2857 = vunpack.c.l.b16 %v2833
      %v2858 = vpack.c.b16 %v2851, %v2850
      %v2859 = vpack.c.b16 %v2853, %v2852
      %v2860 = vpack.c.b16 %v2855, %v2854
      %v2861 = vpack.c.b16 %v2857, %v2856
      %v2867 = vsel %vm655, %v2823, 0
      %v2870 = vsel %vm655, %v2824, 0
      %2872 = vmatprep.subr.bf16.mxu0 0
      %2873 = vmatpush1.bf16.msra.mxu0 0
      %2874 = vmatprep.subr.bf16.mxu0 0
      %2875 = vmatpush1.bf16.msra.mxu0 0
      %2876 = vmatprep.subr.bf16.mxu0 0
      %2877 = vmatpush1.bf16.msra.mxu0 0
      %2878 = vmatprep.subr.bf16.mxu0 0
      %2879 = vmatpush1.bf16.msra.mxu0 0
      %2880 = vmatprep.subr.bf16.mxu0 0
      %2881 = vmatpush1.bf16.msra.mxu0 %v2861
      %2882 = vmatprep.subr.bf16.mxu0 0
      %2883 = vmatpush1.bf16.msra.mxu0 %v2860
      %2884 = vmatprep.subr.bf16.mxu0 0
      %2885 = vmatpush1.bf16.msra.mxu0 %v2859
      %2886 = vmatprep.subr.bf16.mxu0 0
      %2887 = vmatpush1.bf16.msra.mxu0 %v2858
      %2888 = vmatprep.subr.bf16.mxu0 0
      %2889 = vmatpush2.bf16.msra.mxu0 0
      %2890 = vmatprep.subr.bf16.mxu0 0
      %2891 = vmatpush2.bf16.msra.mxu0 0
      %2892 = vmatprep.subr.bf16.mxu0 0
      %2893 = vmatpush2.bf16.msra.mxu0 0
      %2894 = vmatprep.subr.bf16.mxu0 0
      %2895 = vmatpush2.bf16.msra.mxu0 0
      %2896 = vmatprep.subr.bf16.mxu0 0
      %2897 = vmatpush2.bf16.msra.mxu0 0
      %2898 = vmatprep.subr.bf16.mxu0 0
      %2899 = vmatpush2.bf16.msra.mxu0 0
      %2900 = vmatprep.subr.bf16.mxu0 0
      %2901 = vmatpush2.bf16.msra.mxu0 0
      %2902 = vmatprep.subr.bf16.mxu0 0
      %2903 = vmatpush2.bf16.msra.mxu0 0
      %2904 = vmatprep.mubr.bf16.mxu0 0
      %2905 = vmatmul.mubr.bf16.gmra.mxu0 %v2867
      %v2906 = vpop.f32.mrf.mxu0
      %v2907 = vadd.f32 %v2840, %v2906
      %v2908 = vpop.f32.mrf.mxu0
      %v2909 = vpop.f32.mrf.mxu0
      %v2910 = vadd.f32 %v2840, %v2909
      %v2911 = vpop.f32.mrf.mxu0
      %2912 = vmatprep.mubr.bf16.mxu0 0
      %2913 = vmatmul.mubr.bf16.gmra.mxu0 %v2870
      %v2914 = vpop.f32.mrf.mxu0
      %v2915 = vadd.f32 %v2840, %v2914
      %v2916 = vpop.f32.mrf.mxu0
      %v2917 = vpop.f32.mrf.mxu0
      %v2918 = vpop.f32.mrf.mxu0
      %2919 = vdwg.mxu0
      %v2920 = vadd.f32 %v2663, %v2907
      %v2921 = vadd.f32 %v2664, %v2910
      %v2922 = vadd.f32 %v2665, %v2915
      %v2923 = vld [vmem:[%s13] sm:$0x1]
      %v2924 = vld [vmem:[%s14] sm:$0x1]
      %v2925 = vsel %vm715, %v2920, 0.0
      %2926 = vadd.xlane.f32.xlu0 %v2925
      %v2927 = vpop.xlane.xlu0 %2926
      %v2928 = vsel %vm715, %v2921, 0.0
      %2929 = vadd.xlane.f32.xlu0 %v2928
      %v2930 = vpop.xlane.xlu0 %2929
      %v2931 = vsel %vm715, %v2922, 0.0
      %2932 = vadd.xlane.f32.xlu0 %v2931
      %v2933 = vpop.xlane.xlu0 %2932
      %v2934 = vmul.f32 %v2927, %v725
      %v2935 = vmul.f32 %v2930, %v725
      %v2936 = vmul.f32 %v2933, %v725
      %v2937 = vsub.f32 %v2920, %v2934
      %v2938 = vsub.f32 %v2921, %v2935
      %v2939 = vsub.f32 %v2922, %v2936
      %v2940 = vmul.f32 %v2937, %v2937
      %v2941 = vmul.f32 %v2938, %v2938
      %v2942 = vmul.f32 %v2939, %v2939
      %v2943 = vsel %vm715, %v2940, 0.0
      %2944 = vadd.xlane.f32.xlu0 %v2943
      %v2945 = vpop.xlane.xlu0 %2944
      %v2946 = vsel %vm715, %v2941, 0.0
      %2947 = vadd.xlane.f32.xlu0 %v2946
      %v2948 = vpop.xlane.xlu0 %2947
      %v2949 = vsel %vm715, %v2942, 0.0
      %2950 = vadd.xlane.f32.xlu0 %v2949
      %v2951 = vpop.xlane.xlu0 %2950
      %v2952 = vmul.f32 %v2945, %v725
      %v2953 = vmul.f32 %v2948, %v725
      %v2954 = vmul.f32 %v2951, %v725
      %v2955 = vadd.f32 %v2952, 1e-05
      %v2956 = vadd.f32 %v2953, 1e-05
      %v2957 = vadd.f32 %v2954, 1e-05
      %v2958 = vrsqrt.pop %v2955
      %v2959 = vrsqrt.pop %v2956
      %v2960 = vrsqrt.pop %v2957
      %v2961 = vmul.f32 %v2937, %v2958
      %v2962 = vmul.f32 %v2938, %v2959
      %v2963 = vmul.f32 %v2939, %v2960
      %v2965 = vlaneseq
      %v2966 = vshrl.u32 %v2965, 7
      %v2967 = vsub.s32 0, %v2966
      %v2968 = vrot.slane %v2923, %v2967
      %v2970 = vmul.f32 %v2961, %v2968
      %v2971 = vmul.f32 %v2962, %v2968
      %v2972 = vmul.f32 %v2963, %v2968
      %v2974 = vlaneseq
      %v2975 = vshrl.u32 %v2974, 7
      %v2976 = vsub.s32 0, %v2975
      %v2977 = vrot.slane %v2924, %v2976
      %v2979 = vadd.f32 %v2970, %v2977
      %v2980 = vadd.f32 %v2971, %v2977
      %v2981 = vadd.f32 %v2972, %v2977
      %v2982 = vld [vmem:[%s15] sm:$0xff]
      %v2983 = vld [vmem:[%s15 + $0x8] sm:$0xff]
      %v2984 = vld [vmem:[%s15 + $0x10] sm:$0xff]
      %v2985 = vld [vmem:[%s15 + $0x18] sm:$0xff]
      %v2986 = vld [vmem:[%s16] sm:$0x1]
      %v2988 = vlaneseq
      %v2989 = vshrl.u32 %v2988, 7
      %v2990 = vsub.s32 0, %v2989
      %v2991 = vrot.slane %v2986, %v2990
      %v2994 = vsel %vm715, %v2979, 0
      %v2997 = vsel %vm715, %v2980, 0
      %v3000 = vsel %vm715, %v2981, 0
      %3002 = vmatprep.subr.mxu0 0.0
      %3003 = vmatpush1.msra.mxu0 0.0
      %3004 = vmatprep.subr.mxu0 0.0
      %3005 = vmatpush1.msra.mxu0 0.0
      %3006 = vmatprep.subr.mxu0 0.0
      %3007 = vmatpush1.msra.mxu0 0.0
      %3008 = vmatprep.subr.mxu0 0.0
      %3009 = vmatpush1.msra.mxu0 0.0
      %3010 = vmatprep.subr.mxu0 0.0
      %3011 = vmatpush1.msra.mxu0 0.0
      %3012 = vmatprep.subr.mxu0 0.0
      %3013 = vmatpush1.msra.mxu0 0.0
      %3014 = vmatprep.subr.mxu0 0.0
      %3015 = vmatpush1.msra.mxu0 0.0
      %3016 = vmatprep.subr.mxu0 0.0
      %3017 = vmatpush1.msra.mxu0 0.0
      %3018 = vmatprep.subr.mxu0 0.0
      %3019 = vmatpush1.msra.mxu0 0.0
      %3020 = vmatprep.subr.mxu0 0.0
      %3021 = vmatpush1.msra.mxu0 0.0
      %3022 = vmatprep.subr.mxu0 0.0
      %3023 = vmatpush1.msra.mxu0 0.0
      %3024 = vmatprep.subr.mxu0 0.0
      %3025 = vmatpush1.msra.mxu0 0.0
      %3026 = vmatprep.subr.mxu0 0.0
      %3027 = vmatpush1.msra.mxu0 %v2985
      %3028 = vmatprep.subr.mxu0 0.0
      %3029 = vmatpush1.msra.mxu0 %v2984
      %3030 = vmatprep.subr.mxu0 0.0
      %3031 = vmatpush1.msra.mxu0 %v2983
      %3032 = vmatprep.subr.mxu0 0.0
      %3033 = vmatpush1.msra.mxu0 %v2982
      %3034 = vmatprep.subr.mxu0 0.0
      %3035 = vmatpush2.msra.mxu0 0.0
      %3036 = vmatprep.subr.mxu0 0.0
      %3037 = vmatpush2.msra.mxu0 0.0
      %3038 = vmatprep.subr.mxu0 0.0
      %3039 = vmatpush2.msra.mxu0 0.0
      %3040 = vmatprep.subr.mxu0 0.0
      %3041 = vmatpush2.msra.mxu0 0.0
      %3042 = vmatprep.subr.mxu0 0.0
      %3043 = vmatpush2.msra.mxu0 0.0
      %3044 = vmatprep.subr.mxu0 0.0
      %3045 = vmatpush2.msra.mxu0 0.0
      %3046 = vmatprep.subr.mxu0 0.0
      %3047 = vmatpush2.msra.mxu0 0.0
      %3048 = vmatprep.subr.mxu0 0.0
      %3049 = vmatpush2.msra.mxu0 0.0
      %3050 = vmatprep.subr.mxu0 0.0
      %3051 = vmatpush2.msra.mxu0 0.0
      %3052 = vmatprep.subr.mxu0 0.0
      %3053 = vmatpush2.msra.mxu0 0.0
      %3054 = vmatprep.subr.mxu0 0.0
      %3055 = vmatpush2.msra.mxu0 0.0
      %3056 = vmatprep.subr.mxu0 0.0
      %3057 = vmatpush2.msra.mxu0 0.0
      %3058 = vmatprep.subr.mxu0 0.0
      %3059 = vmatpush2.msra.mxu0 0.0
      %3060 = vmatprep.subr.mxu0 0.0
      %3061 = vmatpush2.msra.mxu0 0.0
      %3062 = vmatprep.subr.mxu0 0.0
      %3063 = vmatpush2.msra.mxu0 0.0
      %3064 = vmatprep.subr.mxu0 0.0
      %3065 = vmatpush2.msra.mxu0 0.0
      %3066 = vmatprep.mubr.f32.mxu0 0.0
      %3067 = vmatmul.mubr.f32.gmra.mxu0 %v2994
      %v3068 = vpop.f32.mrf.mxu0
      %v3069 = vadd.f32 %v2991, %v3068
      %v3070 = vpop.f32.mrf.mxu0
      %3071 = vmatprep.mubr.f32.mxu0 0.0
      %3072 = vmatmul.mubr.f32.gmra.mxu0 %v2997
      %v3073 = vpop.f32.mrf.mxu0
      %v3074 = vadd.f32 %v2991, %v3073
      %v3075 = vpop.f32.mrf.mxu0
      %3076 = vmatprep.mubr.f32.mxu0 0.0
      %3077 = vmatmul.mubr.f32.gmra.mxu0 %v3000
      %v3078 = vpop.f32.mrf.mxu0
      %v3079 = vadd.f32 %v2991, %v3078
      %v3080 = vpop.f32.mrf.mxu0
      %3081 = vdwg.mxu0
      %3082 = vst [vmem:[%s572] sm:$0xff] %v3069
      %3083 = vst [vmem:[%s572 + $0x8] sm:$0xff] %v3074
      %3084 = vst [vmem:[%s572 + $0x10] sm:$0xff] %v3079
      %s3085 = smul.u32 3, %s28
      %p3086 = scmp.lt.s32.totalorder %s3085, 5
      %s3087 = scalar_select %p3086, %s3085, 5
      %s3088 = smul.addr %s3087, 8
      %s3089 = scalar_lea.vmem %s17, %s3088
      // Predicated region
      $region89: #{dit_forward.1} parent=87 // pred_check
        %p3090 = pneg %p413
      $region90: #{dit_forward.1} parent=87 // pred_check_branch
        %3092 = sbr.rel (%p3090) target = $region92
      $region91: #{dit_forward.1} parent=87 // pred_region
        %s3093 = smul.u32 3, %s28
      $region92: #{dit_forward.1} parent=87 // pred_fallthru
        _
    $region88: #{dit_forward.1} parent=5 // pred_fallthru
      _
    %p3094 = scmp.le.s32.totalorder 2, %s23
    // Predicated region
    $region93: #{dit_forward.1} parent=5 // pred_check
      %p3095 = pneg %p3094
    $region94: #{dit_forward.1} parent=5 // pred_check_branch
      %3097 = sbr.rel (%p3095) target = $region96
    $region95: #{dit_forward.1} parent=5 // pred_region
      %s3098 = ssub.s32 %s23, 2
      // Predicated region
      $region97: #{dit_forward.1} parent=95 // pred_check
        %p3099 = pneg %p419
      $region98: #{dit_forward.1} parent=95 // pred_check_branch
        %3101 = sbr.rel (%p3099) target = $region100
      $region99: #{dit_forward.1} parent=95 // pred_region
        %s3102 = smul.u32 3, %s29
        %p3103 = scmp.lt.s32.totalorder %s3102, 5
        %s3104 = scalar_select %p3103, %s3102, 5
        %s3105 = smul.addr %s3104, 8
        %s3106 = scalar_lea.vmem %s17, %s3105
      $region100: #{dit_forward.1} parent=95 // pred_fallthru
        _
    $region96: #{dit_forward.1} parent=5 // pred_fallthru
      _
  $region6: #{dit_forward.1} parent=0 // loop_footer
    %s27 = sadd.s32 1, %s23
  $region7: #{dit_forward.1} parent=0 // loop_footer_branch
    %22 = sbr.rel target = $region3
  $region8: #{dit_forward.1} parent=0 // loop_exit
    _

</llo_original>
